<compile_context>
chip_gen: v7x
topology: tpu7x:2x2x1
jax: 0.10.0
libtpu: 0.0.40
codegen_flags: <defaults>
</compile_context>

<pallas_src>
import functools

import jax
import jax.numpy as jnp
from jax.experimental import pallas as pl
from jax.experimental.pallas import tpu as pltpu


def _cdc_kernel(w_ref, x_ref, o_ref, *, C_in, Tco, tile_H, W_out):
    """One grid step: Tco output channels of one (tile_H x W_out) strip.

    w_ref: SMEM (C_out*C_in*9,)  folded 3x3 taps, flat index [co, ci, kh, kw]
    x_ref: VMEM (1, 1, C_in, tile_H+2, W_out+2)  halo'd input strip
    o_ref: VMEM (1, Tco, tile_H, W_out)          output block
    """
    co0 = pl.program_id(2) * Tco          # first output channel of this block
    accs = [None] * Tco

    for kh in range(3):
        for ci in range(C_in):
            # One lane-dense load per (ci, kh); the kw variants are derived
            # in-register (XLU lane shifts) and reused for all Tco channels.
            slab = x_ref[0, 0, ci, kh:kh + tile_H, :].astype(jnp.float32)
            shifted = [slab[:, kw:kw + W_out] for kw in range(3)]
            for co in range(Tco):
                base = (co0 + co) * (C_in * 9) + ci * 9 + kh * 3
                for kw in range(3):
                    contrib = w_ref[base + kw] * shifted[kw]   # SMEM scalar bcast
                    # First tap initialises the accumulator (no zero-fill pass).
                    accs[co] = contrib if accs[co] is None else accs[co] + contrib

    for co in range(Tco):
        o_ref[0, co] = accs[co].astype(o_ref.dtype)


def _round_up(x, m):
    return ((x + m - 1) // m) * m


def _largest_divisor_leq(n, cap):
    for d in range(min(n, cap), 0, -1):
        if n % d == 0:
            return d
    return 1


def _vmem_capacity_bytes():
    """Physical VMEM of the attached chip; conservative fallback = v7x (64 MiB)."""
    try:
        cap = getattr(pltpu.get_tpu_info(), "vmem_capacity_bytes", None)
        if cap:
            return int(cap)
    except Exception:
        pass
    return 64 << 20


def conv2d_cd(x_nchw, weight, theta=0.7, *, input_dtype=jnp.float32):
    """Forward pass of Conv2d_cd.

    x_nchw: (N, C_in, H, W)      input (NCHW, as in the PyTorch module)
    weight: (C_out, C_in, 3, 3)  torch-layout 3x3 conv weight
    theta : python float or traced scalar
    input_dtype: jnp.float32 (default) or jnp.bfloat16 (v6e/v7x bandwidth mode;
                 accumulation stays f32).
    Assumes module defaults: stride=1, padding=1, dilation=1, groups=1, bias=False.
    """
    N, C_in, H, W = x_nchw.shape
    C_out = weight.shape[0]
    assert weight.shape == (C_out, C_in, 3, 3), weight.shape

    # Exact fold of the theta * (1x1 sum) conv into the centre tap:
    #   out = conv(x, W')  with  W'[:,:,1,1] = W[:,:,1,1] - theta * W.sum((2,3))
    w = weight.astype(jnp.float32)
    kdiff = jnp.sum(w, axis=(2, 3))                          # (C_out, C_in)
    w_fold = w.at[:, :, 1, 1].add(-theta * kdiff)
    w_flat = w_fold.reshape(-1)                              # (C_out*C_in*9,)

    # Output-channel blocking (all C_out at once for small channel counts).
    Tco = _largest_divisor_leq(C_out, 8)
    CB = C_out // Tco

    # Lane-dense output width; the input keeps a 2-column halo on top of it.
    W_out = _round_up(W, 128)
    W_in = W_out + 2
    in_bytes = jnp.dtype(input_dtype).itemsize

    # Per-chip VMEM budget with headroom for compiler-internal scratch.
    vmem_cap = _vmem_capacity_bytes()
    budget = vmem_cap - (16 << 20)

    def acc_bytes(th):
        return Tco * th * W_out * 4

    def footprint(th):
        inp = C_in * (th + 2) * W_in * in_bytes              # input strip
        out = Tco * th * W_out * 4                           # output block
        return 2 * inp + 2 * out + acc_bytes(th)             # double-buffered

    # H-tiling: whole plane resident when it fits and the accumulator working
    # set stays modest; otherwise halo'd strips of tile_H rows (multiple of 8).
    acc_target = 2 << 20
    tile_H = H
    if footprint(tile_H) > budget or acc_bytes(tile_H) > acc_target:
        tile_H = max(8, (H // 8) * 8)
        while tile_H > 8 and (footprint(tile_H) > budget
                              or acc_bytes(tile_H) > acc_target):
            tile_H -= 8
    HT = pl.cdiv(H, tile_H)
    H_pad = HT * tile_H

    x = x_nchw.astype(input_dtype)
    # Single zero-pad pass: 1-row/col conv halo + alignment padding (NCHW, no
    # layout transposes; image width is the lane axis).
    x_p = jnp.pad(x, ((0, 0), (0, 0),
                      (1, H_pad - H + 1),
                      (1, W_in - W - 1)))
    if HT == 1:
        strips = x_p[:, None]                                # (N,1,C_in,H+2,W_in), no copy
    else:
        # Halo'd strips: strip h covers output rows [h*tile_H, (h+1)*tile_H).
        strips = jnp.stack(
            [x_p[:, :, h * tile_H:h * tile_H + tile_H + 2, :] for h in range(HT)],
            axis=1)                                          # (N,HT,C_in,tile_H+2,W_in)

    kernel = functools.partial(_cdc_kernel, C_in=C_in, Tco=Tco,
                               tile_H=tile_H, W_out=W_out)

    # Never clamp below the double-buffered footprint (we tiled to fit instead).
    vmem_bytes = int(min(vmem_cap - (8 << 20),
                         max(32 << 20, footprint(tile_H) + (8 << 20))))

    out = pl.pallas_call(
        kernel,
        out_shape=jax.ShapeDtypeStruct((N, C_out, H_pad, W_out), jnp.float32),
        grid=(N, HT, CB),
        in_specs=[
            # Folded tap table lives whole in SMEM (scalar broadcast source).
            pl.BlockSpec(memory_space=pltpu.MemorySpace.SMEM),
            # Halo'd input strip; its block index ignores the innermost
            # channel-block axis, so it stays resident in VMEM across cb.
            pl.BlockSpec((1, 1, C_in, tile_H + 2, W_in),
                         lambda n, h, cb: (n, h, 0, 0, 0)),
        ],
        out_specs=pl.BlockSpec((1, Tco, tile_H, W_out),
                               lambda n, h, cb: (n, cb, h, 0)),
        compiler_params=pltpu.CompilerParams(
            dimension_semantics=("parallel", "parallel", "parallel"),
            vmem_limit_bytes=vmem_bytes),
    )(w_flat, strips)

    return out[:, :, :H, :W]


def _reference(x, w, theta):
    """Pure-JAX reference reproducing the PyTorch forward."""
    dn = jax.lax.conv_dimension_numbers(x.shape, w.shape,
                                        ("NCHW", "OIHW", "NCHW"))
    out_normal = jax.lax.conv_general_dilated(
        x, w, window_strides=(1, 1), padding=((1, 1), (1, 1)),
        dimension_numbers=dn, precision=jax.lax.Precision.HIGHEST)
    kdiff = jnp.sum(w, axis=(2, 3))[:, :, None, None]
    out_diff = jax.lax.conv_general_dilated(
        x, kdiff, window_strides=(1, 1), padding=((0, 0), (0, 0)),
        dimension_numbers=dn, precision=jax.lax.Precision.HIGHEST)
    return out_normal - theta * out_diff


if __name__ == "__main__":
    key = jax.random.PRNGKey(0)
    kx, kw = jax.random.split(key)

    N, C_in, C_out, H, W = 2, 4, 4, 16, 16
    theta = 0.7

    x = jax.random.normal(kx, (N, C_in, H, W), dtype=jnp.float32)
    # deterministic stand-in for nn.Conv2d's kaiming-uniform init
    weight = jax.random.normal(kw, (C_out, C_in, 3, 3), dtype=jnp.float32) * 0.1

    out = conv2d_cd(x, weight, theta=theta)
    out = jax.block_until_ready(out)
    assert out.shape == (N, C_out, H, W)

    ref = jax.block_until_ready(_reference(x, weight, theta))
    err = float(jnp.max(jnp.abs(out - ref)))
    assert jnp.allclose(out, ref, rtol=1e-4, atol=1e-4), err

    print("KERNEL_OK")
</pallas_src>

<mosaic_0001>
module attributes {stable_mosaic.version = 11 : i64} {
  func.func @_cdc_kernel(%arg0: i32, %arg1: i32, %arg2: i32, %arg3: memref<144xf32, #tpu.memory_space<smem>>, %arg4: memref<1x1x4x18x130xf32, #tpu.memory_space<vmem>>, %arg5: memref<1x4x16x128xf32, #tpu.memory_space<vmem>>) attributes {dimension_semantics = [#tpu.dimension_semantics<parallel>, #tpu.dimension_semantics<parallel>, #tpu.dimension_semantics<parallel>], iteration_bounds = array<i64: 2, 1, 1>, scalar_prefetch = 0 : i64, scratch_operands = 0 : i64, tpu.core_type = #tpu.core_type<tc>, window_params = [{transform_indices = @transform_0, window_bounds = array<i64: 144>}, {transform_indices = @transform_1, window_bounds = array<i64: 1, 1, 4, 18, 130>}, {transform_indices = @transform_2, window_bounds = array<i64: 1, 4, 16, 128>}]} {
    %c4_i32 = arith.constant 4 : i32
    %0 = arith.muli %arg2, %c4_i32 : i32
    %c0 = arith.constant 0 : index
    %c0_0 = arith.constant 0 : index
    %c0_1 = arith.constant 0 : index
    %c0_2 = arith.constant 0 : index
    %c0_3 = arith.constant 0 : index
    %1 = vector.load %arg4[%c0, %c0_0, %c0_1, %c0_2, %c0_3] : memref<1x1x4x18x130xf32, #tpu.memory_space<vmem>>, vector<1x1x1x16x130xf32>
    %2 = vector.shape_cast %1 : vector<1x1x1x16x130xf32> to vector<16x130xf32>
    %3 = vector.extract_strided_slice %2 {offsets = [0, 0], sizes = [16, 128], strides = [1, 1]} : vector<16x130xf32> to vector<16x128xf32>
    %4 = vector.extract_strided_slice %2 {offsets = [0, 1], sizes = [16, 128], strides = [1, 1]} : vector<16x130xf32> to vector<16x128xf32>
    %5 = vector.extract_strided_slice %2 {offsets = [0, 2], sizes = [16, 128], strides = [1, 1]} : vector<16x130xf32> to vector<16x128xf32>
    %c0_i32 = arith.constant 0 : i32
    %6 = arith.addi %0, %c0_i32 : i32
    %c36_i32 = arith.constant 36 : i32
    %7 = arith.muli %6, %c36_i32 : i32
    %c0_i32_4 = arith.constant 0 : i32
    %8 = arith.addi %7, %c0_i32_4 : i32
    %c0_i32_5 = arith.constant 0 : i32
    %9 = arith.addi %8, %c0_i32_5 : i32
    %c0_i32_6 = arith.constant 0 : i32
    %10 = arith.addi %9, %c0_i32_6 : i32
    %11 = arith.index_cast %10 : i32 to index
    %12 = memref.load %arg3[%11] : memref<144xf32, #tpu.memory_space<smem>>
    %13 = vector.broadcast %12 : f32 to vector<16x128xf32>
    %14 = arith.mulf %13, %3 : vector<16x128xf32>
    %c1_i32 = arith.constant 1 : i32
    %15 = arith.addi %9, %c1_i32 : i32
    %16 = arith.index_cast %15 : i32 to index
    %17 = memref.load %arg3[%16] : memref<144xf32, #tpu.memory_space<smem>>
    %18 = vector.broadcast %17 : f32 to vector<16x128xf32>
    %19 = arith.mulf %18, %4 : vector<16x128xf32>
    %20 = arith.addf %14, %19 : vector<16x128xf32>
    %c2_i32 = arith.constant 2 : i32
    %21 = arith.addi %9, %c2_i32 : i32
    %22 = arith.index_cast %21 : i32 to index
    %23 = memref.load %arg3[%22] : memref<144xf32, #tpu.memory_space<smem>>
    %24 = vector.broadcast %23 : f32 to vector<16x128xf32>
    %25 = arith.mulf %24, %5 : vector<16x128xf32>
    %26 = arith.addf %20, %25 : vector<16x128xf32>
    %c1_i32_7 = arith.constant 1 : i32
    %27 = arith.addi %0, %c1_i32_7 : i32
    %c36_i32_8 = arith.constant 36 : i32
    %28 = arith.muli %27, %c36_i32_8 : i32
    %c0_i32_9 = arith.constant 0 : i32
    %29 = arith.addi %28, %c0_i32_9 : i32
    %c0_i32_10 = arith.constant 0 : i32
    %30 = arith.addi %29, %c0_i32_10 : i32
    %c0_i32_11 = arith.constant 0 : i32
    %31 = arith.addi %30, %c0_i32_11 : i32
    %32 = arith.index_cast %31 : i32 to index
    %33 = memref.load %arg3[%32] : memref<144xf32, #tpu.memory_space<smem>>
    %34 = vector.broadcast %33 : f32 to vector<16x128xf32>
    %35 = arith.mulf %34, %3 : vector<16x128xf32>
    %c1_i32_12 = arith.constant 1 : i32
    %36 = arith.addi %30, %c1_i32_12 : i32
    %37 = arith.index_cast %36 : i32 to index
    %38 = memref.load %arg3[%37] : memref<144xf32, #tpu.memory_space<smem>>
    %39 = vector.broadcast %38 : f32 to vector<16x128xf32>
    %40 = arith.mulf %39, %4 : vector<16x128xf32>
    %41 = arith.addf %35, %40 : vector<16x128xf32>
    %c2_i32_13 = arith.constant 2 : i32
    %42 = arith.addi %30, %c2_i32_13 : i32
    %43 = arith.index_cast %42 : i32 to index
    %44 = memref.load %arg3[%43] : memref<144xf32, #tpu.memory_space<smem>>
    %45 = vector.broadcast %44 : f32 to vector<16x128xf32>
    %46 = arith.mulf %45, %5 : vector<16x128xf32>
    %47 = arith.addf %41, %46 : vector<16x128xf32>
    %c2_i32_14 = arith.constant 2 : i32
    %48 = arith.addi %0, %c2_i32_14 : i32
    %c36_i32_15 = arith.constant 36 : i32
    %49 = arith.muli %48, %c36_i32_15 : i32
    %c0_i32_16 = arith.constant 0 : i32
    %50 = arith.addi %49, %c0_i32_16 : i32
    %c0_i32_17 = arith.constant 0 : i32
    %51 = arith.addi %50, %c0_i32_17 : i32
    %c0_i32_18 = arith.constant 0 : i32
    %52 = arith.addi %51, %c0_i32_18 : i32
    %53 = arith.index_cast %52 : i32 to index
    %54 = memref.load %arg3[%53] : memref<144xf32, #tpu.memory_space<smem>>
    %55 = vector.broadcast %54 : f32 to vector<16x128xf32>
    %56 = arith.mulf %55, %3 : vector<16x128xf32>
    %c1_i32_19 = arith.constant 1 : i32
    %57 = arith.addi %51, %c1_i32_19 : i32
    %58 = arith.index_cast %57 : i32 to index
    %59 = memref.load %arg3[%58] : memref<144xf32, #tpu.memory_space<smem>>
    %60 = vector.broadcast %59 : f32 to vector<16x128xf32>
    %61 = arith.mulf %60, %4 : vector<16x128xf32>
    %62 = arith.addf %56, %61 : vector<16x128xf32>
    %c2_i32_20 = arith.constant 2 : i32
    %63 = arith.addi %51, %c2_i32_20 : i32
    %64 = arith.index_cast %63 : i32 to index
    %65 = memref.load %arg3[%64] : memref<144xf32, #tpu.memory_space<smem>>
    %66 = vector.broadcast %65 : f32 to vector<16x128xf32>
    %67 = arith.mulf %66, %5 : vector<16x128xf32>
    %68 = arith.addf %62, %67 : vector<16x128xf32>
    %c3_i32 = arith.constant 3 : i32
    %69 = arith.addi %0, %c3_i32 : i32
    %c36_i32_21 = arith.constant 36 : i32
    %70 = arith.muli %69, %c36_i32_21 : i32
    %c0_i32_22 = arith.constant 0 : i32
    %71 = arith.addi %70, %c0_i32_22 : i32
    %c0_i32_23 = arith.constant 0 : i32
    %72 = arith.addi %71, %c0_i32_23 : i32
    %c0_i32_24 = arith.constant 0 : i32
    %73 = arith.addi %72, %c0_i32_24 : i32
    %74 = arith.index_cast %73 : i32 to index
    %75 = memref.load %arg3[%74] : memref<144xf32, #tpu.memory_space<smem>>
    %76 = vector.broadcast %75 : f32 to vector<16x128xf32>
    %77 = arith.mulf %76, %3 : vector<16x128xf32>
    %c1_i32_25 = arith.constant 1 : i32
    %78 = arith.addi %72, %c1_i32_25 : i32
    %79 = arith.index_cast %78 : i32 to index
    %80 = memref.load %arg3[%79] : memref<144xf32, #tpu.memory_space<smem>>
    %81 = vector.broadcast %80 : f32 to vector<16x128xf32>
    %82 = arith.mulf %81, %4 : vector<16x128xf32>
    %83 = arith.addf %77, %82 : vector<16x128xf32>
    %c2_i32_26 = arith.constant 2 : i32
    %84 = arith.addi %72, %c2_i32_26 : i32
    %85 = arith.index_cast %84 : i32 to index
    %86 = memref.load %arg3[%85] : memref<144xf32, #tpu.memory_space<smem>>
    %87 = vector.broadcast %86 : f32 to vector<16x128xf32>
    %88 = arith.mulf %87, %5 : vector<16x128xf32>
    %89 = arith.addf %83, %88 : vector<16x128xf32>
    %c0_27 = arith.constant 0 : index
    %c0_28 = arith.constant 0 : index
    %c1 = arith.constant 1 : index
    %c0_29 = arith.constant 0 : index
    %c0_30 = arith.constant 0 : index
    %90 = vector.load %arg4[%c0_27, %c0_28, %c1, %c0_29, %c0_30] : memref<1x1x4x18x130xf32, #tpu.memory_space<vmem>>, vector<1x1x1x16x130xf32>
    %91 = vector.shape_cast %90 : vector<1x1x1x16x130xf32> to vector<16x130xf32>
    %92 = vector.extract_strided_slice %91 {offsets = [0, 0], sizes = [16, 128], strides = [1, 1]} : vector<16x130xf32> to vector<16x128xf32>
    %93 = vector.extract_strided_slice %91 {offsets = [0, 1], sizes = [16, 128], strides = [1, 1]} : vector<16x130xf32> to vector<16x128xf32>
    %94 = vector.extract_strided_slice %91 {offsets = [0, 2], sizes = [16, 128], strides = [1, 1]} : vector<16x130xf32> to vector<16x128xf32>
    %c0_i32_31 = arith.constant 0 : i32
    %95 = arith.addi %0, %c0_i32_31 : i32
    %c36_i32_32 = arith.constant 36 : i32
    %96 = arith.muli %95, %c36_i32_32 : i32
    %c9_i32 = arith.constant 9 : i32
    %97 = arith.addi %96, %c9_i32 : i32
    %c0_i32_33 = arith.constant 0 : i32
    %98 = arith.addi %97, %c0_i32_33 : i32
    %c0_i32_34 = arith.constant 0 : i32
    %99 = arith.addi %98, %c0_i32_34 : i32
    %100 = arith.index_cast %99 : i32 to index
    %101 = memref.load %arg3[%100] : memref<144xf32, #tpu.memory_space<smem>>
    %102 = vector.broadcast %101 : f32 to vector<16x128xf32>
    %103 = arith.mulf %102, %92 : vector<16x128xf32>
    %104 = arith.addf %26, %103 : vector<16x128xf32>
    %c1_i32_35 = arith.constant 1 : i32
    %105 = arith.addi %98, %c1_i32_35 : i32
    %106 = arith.index_cast %105 : i32 to index
    %107 = memref.load %arg3[%106] : memref<144xf32, #tpu.memory_space<smem>>
    %108 = vector.broadcast %107 : f32 to vector<16x128xf32>
    %109 = arith.mulf %108, %93 : vector<16x128xf32>
    %110 = arith.addf %104, %109 : vector<16x128xf32>
    %c2_i32_36 = arith.constant 2 : i32
    %111 = arith.addi %98, %c2_i32_36 : i32
    %112 = arith.index_cast %111 : i32 to index
    %113 = memref.load %arg3[%112] : memref<144xf32, #tpu.memory_space<smem>>
    %114 = vector.broadcast %113 : f32 to vector<16x128xf32>
    %115 = arith.mulf %114, %94 : vector<16x128xf32>
    %116 = arith.addf %110, %115 : vector<16x128xf32>
    %c1_i32_37 = arith.constant 1 : i32
    %117 = arith.addi %0, %c1_i32_37 : i32
    %c36_i32_38 = arith.constant 36 : i32
    %118 = arith.muli %117, %c36_i32_38 : i32
    %c9_i32_39 = arith.constant 9 : i32
    %119 = arith.addi %118, %c9_i32_39 : i32
    %c0_i32_40 = arith.constant 0 : i32
    %120 = arith.addi %119, %c0_i32_40 : i32
    %c0_i32_41 = arith.constant 0 : i32
    %121 = arith.addi %120, %c0_i32_41 : i32
    %122 = arith.index_cast %121 : i32 to index
    %123 = memref.load %arg3[%122] : memref<144xf32, #tpu.memory_space<smem>>
    %124 = vector.broadcast %123 : f32 to vector<16x128xf32>
    %125 = arith.mulf %124, %92 : vector<16x128xf32>
    %126 = arith.addf %47, %125 : vector<16x128xf32>
    %c1_i32_42 = arith.constant 1 : i32
    %127 = arith.addi %120, %c1_i32_42 : i32
    %128 = arith.index_cast %127 : i32 to index
    %129 = memref.load %arg3[%128] : memref<144xf32, #tpu.memory_space<smem>>
    %130 = vector.broadcast %129 : f32 to vector<16x128xf32>
    %131 = arith.mulf %130, %93 : vector<16x128xf32>
    %132 = arith.addf %126, %131 : vector<16x128xf32>
    %c2_i32_43 = arith.constant 2 : i32
    %133 = arith.addi %120, %c2_i32_43 : i32
    %134 = arith.index_cast %133 : i32 to index
    %135 = memref.load %arg3[%134] : memref<144xf32, #tpu.memory_space<smem>>
    %136 = vector.broadcast %135 : f32 to vector<16x128xf32>
    %137 = arith.mulf %136, %94 : vector<16x128xf32>
    %138 = arith.addf %132, %137 : vector<16x128xf32>
    %c2_i32_44 = arith.constant 2 : i32
    %139 = arith.addi %0, %c2_i32_44 : i32
    %c36_i32_45 = arith.constant 36 : i32
    %140 = arith.muli %139, %c36_i32_45 : i32
    %c9_i32_46 = arith.constant 9 : i32
    %141 = arith.addi %140, %c9_i32_46 : i32
    %c0_i32_47 = arith.constant 0 : i32
    %142 = arith.addi %141, %c0_i32_47 : i32
    %c0_i32_48 = arith.constant 0 : i32
    %143 = arith.addi %142, %c0_i32_48 : i32
    %144 = arith.index_cast %143 : i32 to index
    %145 = memref.load %arg3[%144] : memref<144xf32, #tpu.memory_space<smem>>
    %146 = vector.broadcast %145 : f32 to vector<16x128xf32>
    %147 = arith.mulf %146, %92 : vector<16x128xf32>
    %148 = arith.addf %68, %147 : vector<16x128xf32>
    %c1_i32_49 = arith.constant 1 : i32
    %149 = arith.addi %142, %c1_i32_49 : i32
    %150 = arith.index_cast %149 : i32 to index
    %151 = memref.load %arg3[%150] : memref<144xf32, #tpu.memory_space<smem>>
    %152 = vector.broadcast %151 : f32 to vector<16x128xf32>
    %153 = arith.mulf %152, %93 : vector<16x128xf32>
    %154 = arith.addf %148, %153 : vector<16x128xf32>
    %c2_i32_50 = arith.constant 2 : i32
    %155 = arith.addi %142, %c2_i32_50 : i32
    %156 = arith.index_cast %155 : i32 to index
    %157 = memref.load %arg3[%156] : memref<144xf32, #tpu.memory_space<smem>>
    %158 = vector.broadcast %157 : f32 to vector<16x128xf32>
    %159 = arith.mulf %158, %94 : vector<16x128xf32>
    %160 = arith.addf %154, %159 : vector<16x128xf32>
    %c3_i32_51 = arith.constant 3 : i32
    %161 = arith.addi %0, %c3_i32_51 : i32
    %c36_i32_52 = arith.constant 36 : i32
    %162 = arith.muli %161, %c36_i32_52 : i32
    %c9_i32_53 = arith.constant 9 : i32
    %163 = arith.addi %162, %c9_i32_53 : i32
    %c0_i32_54 = arith.constant 0 : i32
    %164 = arith.addi %163, %c0_i32_54 : i32
    %c0_i32_55 = arith.constant 0 : i32
    %165 = arith.addi %164, %c0_i32_55 : i32
    %166 = arith.index_cast %165 : i32 to index
    %167 = memref.load %arg3[%166] : memref<144xf32, #tpu.memory_space<smem>>
    %168 = vector.broadcast %167 : f32 to vector<16x128xf32>
    %169 = arith.mulf %168, %92 : vector<16x128xf32>
    %170 = arith.addf %89, %169 : vector<16x128xf32>
    %c1_i32_56 = arith.constant 1 : i32
    %171 = arith.addi %164, %c1_i32_56 : i32
    %172 = arith.index_cast %171 : i32 to index
    %173 = memref.load %arg3[%172] : memref<144xf32, #tpu.memory_space<smem>>
    %174 = vector.broadcast %173 : f32 to vector<16x128xf32>
    %175 = arith.mulf %174, %93 : vector<16x128xf32>
    %176 = arith.addf %170, %175 : vector<16x128xf32>
    %c2_i32_57 = arith.constant 2 : i32
    %177 = arith.addi %164, %c2_i32_57 : i32
    %178 = arith.index_cast %177 : i32 to index
    %179 = memref.load %arg3[%178] : memref<144xf32, #tpu.memory_space<smem>>
    %180 = vector.broadcast %179 : f32 to vector<16x128xf32>
    %181 = arith.mulf %180, %94 : vector<16x128xf32>
    %182 = arith.addf %176, %181 : vector<16x128xf32>
    %c0_58 = arith.constant 0 : index
    %c0_59 = arith.constant 0 : index
    %c2 = arith.constant 2 : index
    %c0_60 = arith.constant 0 : index
    %c0_61 = arith.constant 0 : index
    %183 = vector.load %arg4[%c0_58, %c0_59, %c2, %c0_60, %c0_61] : memref<1x1x4x18x130xf32, #tpu.memory_space<vmem>>, vector<1x1x1x16x130xf32>
    %184 = vector.shape_cast %183 : vector<1x1x1x16x130xf32> to vector<16x130xf32>
    %185 = vector.extract_strided_slice %184 {offsets = [0, 0], sizes = [16, 128], strides = [1, 1]} : vector<16x130xf32> to vector<16x128xf32>
    %186 = vector.extract_strided_slice %184 {offsets = [0, 1], sizes = [16, 128], strides = [1, 1]} : vector<16x130xf32> to vector<16x128xf32>
    %187 = vector.extract_strided_slice %184 {offsets = [0, 2], sizes = [16, 128], strides = [1, 1]} : vector<16x130xf32> to vector<16x128xf32>
    %c0_i32_62 = arith.constant 0 : i32
    %188 = arith.addi %0, %c0_i32_62 : i32
    %c36_i32_63 = arith.constant 36 : i32
    %189 = arith.muli %188, %c36_i32_63 : i32
    %c18_i32 = arith.constant 18 : i32
    %190 = arith.addi %189, %c18_i32 : i32
    %c0_i32_64 = arith.constant 0 : i32
    %191 = arith.addi %190, %c0_i32_64 : i32
    %c0_i32_65 = arith.constant 0 : i32
    %192 = arith.addi %191, %c0_i32_65 : i32
    %193 = arith.index_cast %192 : i32 to index
    %194 = memref.load %arg3[%193] : memref<144xf32, #tpu.memory_space<smem>>
    %195 = vector.broadcast %194 : f32 to vector<16x128xf32>
    %196 = arith.mulf %195, %185 : vector<16x128xf32>
    %197 = arith.addf %116, %196 : vector<16x128xf32>
    %c1_i32_66 = arith.constant 1 : i32
    %198 = arith.addi %191, %c1_i32_66 : i32
    %199 = arith.index_cast %198 : i32 to index
    %200 = memref.load %arg3[%199] : memref<144xf32, #tpu.memory_space<smem>>
    %201 = vector.broadcast %200 : f32 to vector<16x128xf32>
    %202 = arith.mulf %201, %186 : vector<16x128xf32>
    %203 = arith.addf %197, %202 : vector<16x128xf32>
    %c2_i32_67 = arith.constant 2 : i32
    %204 = arith.addi %191, %c2_i32_67 : i32
    %205 = arith.index_cast %204 : i32 to index
    %206 = memref.load %arg3[%205] : memref<144xf32, #tpu.memory_space<smem>>
    %207 = vector.broadcast %206 : f32 to vector<16x128xf32>
    %208 = arith.mulf %207, %187 : vector<16x128xf32>
    %209 = arith.addf %203, %208 : vector<16x128xf32>
    %c1_i32_68 = arith.constant 1 : i32
    %210 = arith.addi %0, %c1_i32_68 : i32
    %c36_i32_69 = arith.constant 36 : i32
    %211 = arith.muli %210, %c36_i32_69 : i32
    %c18_i32_70 = arith.constant 18 : i32
    %212 = arith.addi %211, %c18_i32_70 : i32
    %c0_i32_71 = arith.constant 0 : i32
    %213 = arith.addi %212, %c0_i32_71 : i32
    %c0_i32_72 = arith.constant 0 : i32
    %214 = arith.addi %213, %c0_i32_72 : i32
    %215 = arith.index_cast %214 : i32 to index
    %216 = memref.load %arg3[%215] : memref<144xf32, #tpu.memory_space<smem>>
    %217 = vector.broadcast %216 : f32 to vector<16x128xf32>
    %218 = arith.mulf %217, %185 : vector<16x128xf32>
    %219 = arith.addf %138, %218 : vector<16x128xf32>
    %c1_i32_73 = arith.constant 1 : i32
    %220 = arith.addi %213, %c1_i32_73 : i32
    %221 = arith.index_cast %220 : i32 to index
    %222 = memref.load %arg3[%221] : memref<144xf32, #tpu.memory_space<smem>>
    %223 = vector.broadcast %222 : f32 to vector<16x128xf32>
    %224 = arith.mulf %223, %186 : vector<16x128xf32>
    %225 = arith.addf %219, %224 : vector<16x128xf32>
    %c2_i32_74 = arith.constant 2 : i32
    %226 = arith.addi %213, %c2_i32_74 : i32
    %227 = arith.index_cast %226 : i32 to index
    %228 = memref.load %arg3[%227] : memref<144xf32, #tpu.memory_space<smem>>
    %229 = vector.broadcast %228 : f32 to vector<16x128xf32>
    %230 = arith.mulf %229, %187 : vector<16x128xf32>
    %231 = arith.addf %225, %230 : vector<16x128xf32>
    %c2_i32_75 = arith.constant 2 : i32
    %232 = arith.addi %0, %c2_i32_75 : i32
    %c36_i32_76 = arith.constant 36 : i32
    %233 = arith.muli %232, %c36_i32_76 : i32
    %c18_i32_77 = arith.constant 18 : i32
    %234 = arith.addi %233, %c18_i32_77 : i32
    %c0_i32_78 = arith.constant 0 : i32
    %235 = arith.addi %234, %c0_i32_78 : i32
    %c0_i32_79 = arith.constant 0 : i32
    %236 = arith.addi %235, %c0_i32_79 : i32
    %237 = arith.index_cast %236 : i32 to index
    %238 = memref.load %arg3[%237] : memref<144xf32, #tpu.memory_space<smem>>
    %239 = vector.broadcast %238 : f32 to vector<16x128xf32>
    %240 = arith.mulf %239, %185 : vector<16x128xf32>
    %241 = arith.addf %160, %240 : vector<16x128xf32>
    %c1_i32_80 = arith.constant 1 : i32
    %242 = arith.addi %235, %c1_i32_80 : i32
    %243 = arith.index_cast %242 : i32 to index
    %244 = memref.load %arg3[%243] : memref<144xf32, #tpu.memory_space<smem>>
    %245 = vector.broadcast %244 : f32 to vector<16x128xf32>
    %246 = arith.mulf %245, %186 : vector<16x128xf32>
    %247 = arith.addf %241, %246 : vector<16x128xf32>
    %c2_i32_81 = arith.constant 2 : i32
    %248 = arith.addi %235, %c2_i32_81 : i32
    %249 = arith.index_cast %248 : i32 to index
    %250 = memref.load %arg3[%249] : memref<144xf32, #tpu.memory_space<smem>>
    %251 = vector.broadcast %250 : f32 to vector<16x128xf32>
    %252 = arith.mulf %251, %187 : vector<16x128xf32>
    %253 = arith.addf %247, %252 : vector<16x128xf32>
    %c3_i32_82 = arith.constant 3 : i32
    %254 = arith.addi %0, %c3_i32_82 : i32
    %c36_i32_83 = arith.constant 36 : i32
    %255 = arith.muli %254, %c36_i32_83 : i32
    %c18_i32_84 = arith.constant 18 : i32
    %256 = arith.addi %255, %c18_i32_84 : i32
    %c0_i32_85 = arith.constant 0 : i32
    %257 = arith.addi %256, %c0_i32_85 : i32
    %c0_i32_86 = arith.constant 0 : i32
    %258 = arith.addi %257, %c0_i32_86 : i32
    %259 = arith.index_cast %258 : i32 to index
    %260 = memref.load %arg3[%259] : memref<144xf32, #tpu.memory_space<smem>>
    %261 = vector.broadcast %260 : f32 to vector<16x128xf32>
    %262 = arith.mulf %261, %185 : vector<16x128xf32>
    %263 = arith.addf %182, %262 : vector<16x128xf32>
    %c1_i32_87 = arith.constant 1 : i32
    %264 = arith.addi %257, %c1_i32_87 : i32
    %265 = arith.index_cast %264 : i32 to index
    %266 = memref.load %arg3[%265] : memref<144xf32, #tpu.memory_space<smem>>
    %267 = vector.broadcast %266 : f32 to vector<16x128xf32>
    %268 = arith.mulf %267, %186 : vector<16x128xf32>
    %269 = arith.addf %263, %268 : vector<16x128xf32>
    %c2_i32_88 = arith.constant 2 : i32
    %270 = arith.addi %257, %c2_i32_88 : i32
    %271 = arith.index_cast %270 : i32 to index
    %272 = memref.load %arg3[%271] : memref<144xf32, #tpu.memory_space<smem>>
    %273 = vector.broadcast %272 : f32 to vector<16x128xf32>
    %274 = arith.mulf %273, %187 : vector<16x128xf32>
    %275 = arith.addf %269, %274 : vector<16x128xf32>
    %c0_89 = arith.constant 0 : index
    %c0_90 = arith.constant 0 : index
    %c3 = arith.constant 3 : index
    %c0_91 = arith.constant 0 : index
    %c0_92 = arith.constant 0 : index
    %276 = vector.load %arg4[%c0_89, %c0_90, %c3, %c0_91, %c0_92] : memref<1x1x4x18x130xf32, #tpu.memory_space<vmem>>, vector<1x1x1x16x130xf32>
    %277 = vector.shape_cast %276 : vector<1x1x1x16x130xf32> to vector<16x130xf32>
    %278 = vector.extract_strided_slice %277 {offsets = [0, 0], sizes = [16, 128], strides = [1, 1]} : vector<16x130xf32> to vector<16x128xf32>
    %279 = vector.extract_strided_slice %277 {offsets = [0, 1], sizes = [16, 128], strides = [1, 1]} : vector<16x130xf32> to vector<16x128xf32>
    %280 = vector.extract_strided_slice %277 {offsets = [0, 2], sizes = [16, 128], strides = [1, 1]} : vector<16x130xf32> to vector<16x128xf32>
    %c0_i32_93 = arith.constant 0 : i32
    %281 = arith.addi %0, %c0_i32_93 : i32
    %c36_i32_94 = arith.constant 36 : i32
    %282 = arith.muli %281, %c36_i32_94 : i32
    %c27_i32 = arith.constant 27 : i32
    %283 = arith.addi %282, %c27_i32 : i32
    %c0_i32_95 = arith.constant 0 : i32
    %284 = arith.addi %283, %c0_i32_95 : i32
    %c0_i32_96 = arith.constant 0 : i32
    %285 = arith.addi %284, %c0_i32_96 : i32
    %286 = arith.index_cast %285 : i32 to index
    %287 = memref.load %arg3[%286] : memref<144xf32, #tpu.memory_space<smem>>
    %288 = vector.broadcast %287 : f32 to vector<16x128xf32>
    %289 = arith.mulf %288, %278 : vector<16x128xf32>
    %290 = arith.addf %209, %289 : vector<16x128xf32>
    %c1_i32_97 = arith.constant 1 : i32
    %291 = arith.addi %284, %c1_i32_97 : i32
    %292 = arith.index_cast %291 : i32 to index
    %293 = memref.load %arg3[%292] : memref<144xf32, #tpu.memory_space<smem>>
    %294 = vector.broadcast %293 : f32 to vector<16x128xf32>
    %295 = arith.mulf %294, %279 : vector<16x128xf32>
    %296 = arith.addf %290, %295 : vector<16x128xf32>
    %c2_i32_98 = arith.constant 2 : i32
    %297 = arith.addi %284, %c2_i32_98 : i32
    %298 = arith.index_cast %297 : i32 to index
    %299 = memref.load %arg3[%298] : memref<144xf32, #tpu.memory_space<smem>>
    %300 = vector.broadcast %299 : f32 to vector<16x128xf32>
    %301 = arith.mulf %300, %280 : vector<16x128xf32>
    %302 = arith.addf %296, %301 : vector<16x128xf32>
    %c1_i32_99 = arith.constant 1 : i32
    %303 = arith.addi %0, %c1_i32_99 : i32
    %c36_i32_100 = arith.constant 36 : i32
    %304 = arith.muli %303, %c36_i32_100 : i32
    %c27_i32_101 = arith.constant 27 : i32
    %305 = arith.addi %304, %c27_i32_101 : i32
    %c0_i32_102 = arith.constant 0 : i32
    %306 = arith.addi %305, %c0_i32_102 : i32
    %c0_i32_103 = arith.constant 0 : i32
    %307 = arith.addi %306, %c0_i32_103 : i32
    %308 = arith.index_cast %307 : i32 to index
    %309 = memref.load %arg3[%308] : memref<144xf32, #tpu.memory_space<smem>>
    %310 = vector.broadcast %309 : f32 to vector<16x128xf32>
    %311 = arith.mulf %310, %278 : vector<16x128xf32>
    %312 = arith.addf %231, %311 : vector<16x128xf32>
    %c1_i32_104 = arith.constant 1 : i32
    %313 = arith.addi %306, %c1_i32_104 : i32
    %314 = arith.index_cast %313 : i32 to index
    %315 = memref.load %arg3[%314] : memref<144xf32, #tpu.memory_space<smem>>
    %316 = vector.broadcast %315 : f32 to vector<16x128xf32>
    %317 = arith.mulf %316, %279 : vector<16x128xf32>
    %318 = arith.addf %312, %317 : vector<16x128xf32>
    %c2_i32_105 = arith.constant 2 : i32
    %319 = arith.addi %306, %c2_i32_105 : i32
    %320 = arith.index_cast %319 : i32 to index
    %321 = memref.load %arg3[%320] : memref<144xf32, #tpu.memory_space<smem>>
    %322 = vector.broadcast %321 : f32 to vector<16x128xf32>
    %323 = arith.mulf %322, %280 : vector<16x128xf32>
    %324 = arith.addf %318, %323 : vector<16x128xf32>
    %c2_i32_106 = arith.constant 2 : i32
    %325 = arith.addi %0, %c2_i32_106 : i32
    %c36_i32_107 = arith.constant 36 : i32
    %326 = arith.muli %325, %c36_i32_107 : i32
    %c27_i32_108 = arith.constant 27 : i32
    %327 = arith.addi %326, %c27_i32_108 : i32
    %c0_i32_109 = arith.constant 0 : i32
    %328 = arith.addi %327, %c0_i32_109 : i32
    %c0_i32_110 = arith.constant 0 : i32
    %329 = arith.addi %328, %c0_i32_110 : i32
    %330 = arith.index_cast %329 : i32 to index
    %331 = memref.load %arg3[%330] : memref<144xf32, #tpu.memory_space<smem>>
    %332 = vector.broadcast %331 : f32 to vector<16x128xf32>
    %333 = arith.mulf %332, %278 : vector<16x128xf32>
    %334 = arith.addf %253, %333 : vector<16x128xf32>
    %c1_i32_111 = arith.constant 1 : i32
    %335 = arith.addi %328, %c1_i32_111 : i32
    %336 = arith.index_cast %335 : i32 to index
    %337 = memref.load %arg3[%336] : memref<144xf32, #tpu.memory_space<smem>>
    %338 = vector.broadcast %337 : f32 to vector<16x128xf32>
    %339 = arith.mulf %338, %279 : vector<16x128xf32>
    %340 = arith.addf %334, %339 : vector<16x128xf32>
    %c2_i32_112 = arith.constant 2 : i32
    %341 = arith.addi %328, %c2_i32_112 : i32
    %342 = arith.index_cast %341 : i32 to index
    %343 = memref.load %arg3[%342] : memref<144xf32, #tpu.memory_space<smem>>
    %344 = vector.broadcast %343 : f32 to vector<16x128xf32>
    %345 = arith.mulf %344, %280 : vector<16x128xf32>
    %346 = arith.addf %340, %345 : vector<16x128xf32>
    %c3_i32_113 = arith.constant 3 : i32
    %347 = arith.addi %0, %c3_i32_113 : i32
    %c36_i32_114 = arith.constant 36 : i32
    %348 = arith.muli %347, %c36_i32_114 : i32
    %c27_i32_115 = arith.constant 27 : i32
    %349 = arith.addi %348, %c27_i32_115 : i32
    %c0_i32_116 = arith.constant 0 : i32
    %350 = arith.addi %349, %c0_i32_116 : i32
    %c0_i32_117 = arith.constant 0 : i32
    %351 = arith.addi %350, %c0_i32_117 : i32
    %352 = arith.index_cast %351 : i32 to index
    %353 = memref.load %arg3[%352] : memref<144xf32, #tpu.memory_space<smem>>
    %354 = vector.broadcast %353 : f32 to vector<16x128xf32>
    %355 = arith.mulf %354, %278 : vector<16x128xf32>
    %356 = arith.addf %275, %355 : vector<16x128xf32>
    %c1_i32_118 = arith.constant 1 : i32
    %357 = arith.addi %350, %c1_i32_118 : i32
    %358 = arith.index_cast %357 : i32 to index
    %359 = memref.load %arg3[%358] : memref<144xf32, #tpu.memory_space<smem>>
    %360 = vector.broadcast %359 : f32 to vector<16x128xf32>
    %361 = arith.mulf %360, %279 : vector<16x128xf32>
    %362 = arith.addf %356, %361 : vector<16x128xf32>
    %c2_i32_119 = arith.constant 2 : i32
    %363 = arith.addi %350, %c2_i32_119 : i32
    %364 = arith.index_cast %363 : i32 to index
    %365 = memref.load %arg3[%364] : memref<144xf32, #tpu.memory_space<smem>>
    %366 = vector.broadcast %365 : f32 to vector<16x128xf32>
    %367 = arith.mulf %366, %280 : vector<16x128xf32>
    %368 = arith.addf %362, %367 : vector<16x128xf32>
    %c0_120 = arith.constant 0 : index
    %c0_121 = arith.constant 0 : index
    %c0_122 = arith.constant 0 : index
    %c1_123 = arith.constant 1 : index
    %c0_124 = arith.constant 0 : index
    %369 = vector.load %arg4[%c0_120, %c0_121, %c0_122, %c1_123, %c0_124] : memref<1x1x4x18x130xf32, #tpu.memory_space<vmem>>, vector<1x1x1x16x130xf32>
    %370 = vector.shape_cast %369 : vector<1x1x1x16x130xf32> to vector<16x130xf32>
    %371 = vector.extract_strided_slice %370 {offsets = [0, 0], sizes = [16, 128], strides = [1, 1]} : vector<16x130xf32> to vector<16x128xf32>
    %372 = vector.extract_strided_slice %370 {offsets = [0, 1], sizes = [16, 128], strides = [1, 1]} : vector<16x130xf32> to vector<16x128xf32>
    %373 = vector.extract_strided_slice %370 {offsets = [0, 2], sizes = [16, 128], strides = [1, 1]} : vector<16x130xf32> to vector<16x128xf32>
    %c0_i32_125 = arith.constant 0 : i32
    %374 = arith.addi %0, %c0_i32_125 : i32
    %c36_i32_126 = arith.constant 36 : i32
    %375 = arith.muli %374, %c36_i32_126 : i32
    %c0_i32_127 = arith.constant 0 : i32
    %376 = arith.addi %375, %c0_i32_127 : i32
    %c3_i32_128 = arith.constant 3 : i32
    %377 = arith.addi %376, %c3_i32_128 : i32
    %c0_i32_129 = arith.constant 0 : i32
    %378 = arith.addi %377, %c0_i32_129 : i32
    %379 = arith.index_cast %378 : i32 to index
    %380 = memref.load %arg3[%379] : memref<144xf32, #tpu.memory_space<smem>>
    %381 = vector.broadcast %380 : f32 to vector<16x128xf32>
    %382 = arith.mulf %381, %371 : vector<16x128xf32>
    %383 = arith.addf %302, %382 : vector<16x128xf32>
    %c1_i32_130 = arith.constant 1 : i32
    %384 = arith.addi %377, %c1_i32_130 : i32
    %385 = arith.index_cast %384 : i32 to index
    %386 = memref.load %arg3[%385] : memref<144xf32, #tpu.memory_space<smem>>
    %387 = vector.broadcast %386 : f32 to vector<16x128xf32>
    %388 = arith.mulf %387, %372 : vector<16x128xf32>
    %389 = arith.addf %383, %388 : vector<16x128xf32>
    %c2_i32_131 = arith.constant 2 : i32
    %390 = arith.addi %377, %c2_i32_131 : i32
    %391 = arith.index_cast %390 : i32 to index
    %392 = memref.load %arg3[%391] : memref<144xf32, #tpu.memory_space<smem>>
    %393 = vector.broadcast %392 : f32 to vector<16x128xf32>
    %394 = arith.mulf %393, %373 : vector<16x128xf32>
    %395 = arith.addf %389, %394 : vector<16x128xf32>
    %c1_i32_132 = arith.constant 1 : i32
    %396 = arith.addi %0, %c1_i32_132 : i32
    %c36_i32_133 = arith.constant 36 : i32
    %397 = arith.muli %396, %c36_i32_133 : i32
    %c0_i32_134 = arith.constant 0 : i32
    %398 = arith.addi %397, %c0_i32_134 : i32
    %c3_i32_135 = arith.constant 3 : i32
    %399 = arith.addi %398, %c3_i32_135 : i32
    %c0_i32_136 = arith.constant 0 : i32
    %400 = arith.addi %399, %c0_i32_136 : i32
    %401 = arith.index_cast %400 : i32 to index
    %402 = memref.load %arg3[%401] : memref<144xf32, #tpu.memory_space<smem>>
    %403 = vector.broadcast %402 : f32 to vector<16x128xf32>
    %404 = arith.mulf %403, %371 : vector<16x128xf32>
    %405 = arith.addf %324, %404 : vector<16x128xf32>
    %c1_i32_137 = arith.constant 1 : i32
    %406 = arith.addi %399, %c1_i32_137 : i32
    %407 = arith.index_cast %406 : i32 to index
    %408 = memref.load %arg3[%407] : memref<144xf32, #tpu.memory_space<smem>>
    %409 = vector.broadcast %408 : f32 to vector<16x128xf32>
    %410 = arith.mulf %409, %372 : vector<16x128xf32>
    %411 = arith.addf %405, %410 : vector<16x128xf32>
    %c2_i32_138 = arith.constant 2 : i32
    %412 = arith.addi %399, %c2_i32_138 : i32
    %413 = arith.index_cast %412 : i32 to index
    %414 = memref.load %arg3[%413] : memref<144xf32, #tpu.memory_space<smem>>
    %415 = vector.broadcast %414 : f32 to vector<16x128xf32>
    %416 = arith.mulf %415, %373 : vector<16x128xf32>
    %417 = arith.addf %411, %416 : vector<16x128xf32>
    %c2_i32_139 = arith.constant 2 : i32
    %418 = arith.addi %0, %c2_i32_139 : i32
    %c36_i32_140 = arith.constant 36 : i32
    %419 = arith.muli %418, %c36_i32_140 : i32
    %c0_i32_141 = arith.constant 0 : i32
    %420 = arith.addi %419, %c0_i32_141 : i32
    %c3_i32_142 = arith.constant 3 : i32
    %421 = arith.addi %420, %c3_i32_142 : i32
    %c0_i32_143 = arith.constant 0 : i32
    %422 = arith.addi %421, %c0_i32_143 : i32
    %423 = arith.index_cast %422 : i32 to index
    %424 = memref.load %arg3[%423] : memref<144xf32, #tpu.memory_space<smem>>
    %425 = vector.broadcast %424 : f32 to vector<16x128xf32>
    %426 = arith.mulf %425, %371 : vector<16x128xf32>
    %427 = arith.addf %346, %426 : vector<16x128xf32>
    %c1_i32_144 = arith.constant 1 : i32
    %428 = arith.addi %421, %c1_i32_144 : i32
    %429 = arith.index_cast %428 : i32 to index
    %430 = memref.load %arg3[%429] : memref<144xf32, #tpu.memory_space<smem>>
    %431 = vector.broadcast %430 : f32 to vector<16x128xf32>
    %432 = arith.mulf %431, %372 : vector<16x128xf32>
    %433 = arith.addf %427, %432 : vector<16x128xf32>
    %c2_i32_145 = arith.constant 2 : i32
    %434 = arith.addi %421, %c2_i32_145 : i32
    %435 = arith.index_cast %434 : i32 to index
    %436 = memref.load %arg3[%435] : memref<144xf32, #tpu.memory_space<smem>>
    %437 = vector.broadcast %436 : f32 to vector<16x128xf32>
    %438 = arith.mulf %437, %373 : vector<16x128xf32>
    %439 = arith.addf %433, %438 : vector<16x128xf32>
    %c3_i32_146 = arith.constant 3 : i32
    %440 = arith.addi %0, %c3_i32_146 : i32
    %c36_i32_147 = arith.constant 36 : i32
    %441 = arith.muli %440, %c36_i32_147 : i32
    %c0_i32_148 = arith.constant 0 : i32
    %442 = arith.addi %441, %c0_i32_148 : i32
    %c3_i32_149 = arith.constant 3 : i32
    %443 = arith.addi %442, %c3_i32_149 : i32
    %c0_i32_150 = arith.constant 0 : i32
    %444 = arith.addi %443, %c0_i32_150 : i32
    %445 = arith.index_cast %444 : i32 to index
    %446 = memref.load %arg3[%445] : memref<144xf32, #tpu.memory_space<smem>>
    %447 = vector.broadcast %446 : f32 to vector<16x128xf32>
    %448 = arith.mulf %447, %371 : vector<16x128xf32>
    %449 = arith.addf %368, %448 : vector<16x128xf32>
    %c1_i32_151 = arith.constant 1 : i32
    %450 = arith.addi %443, %c1_i32_151 : i32
    %451 = arith.index_cast %450 : i32 to index
    %452 = memref.load %arg3[%451] : memref<144xf32, #tpu.memory_space<smem>>
    %453 = vector.broadcast %452 : f32 to vector<16x128xf32>
    %454 = arith.mulf %453, %372 : vector<16x128xf32>
    %455 = arith.addf %449, %454 : vector<16x128xf32>
    %c2_i32_152 = arith.constant 2 : i32
    %456 = arith.addi %443, %c2_i32_152 : i32
    %457 = arith.index_cast %456 : i32 to index
    %458 = memref.load %arg3[%457] : memref<144xf32, #tpu.memory_space<smem>>
    %459 = vector.broadcast %458 : f32 to vector<16x128xf32>
    %460 = arith.mulf %459, %373 : vector<16x128xf32>
    %461 = arith.addf %455, %460 : vector<16x128xf32>
    %c0_153 = arith.constant 0 : index
    %c0_154 = arith.constant 0 : index
    %c1_155 = arith.constant 1 : index
    %c1_156 = arith.constant 1 : index
    %c0_157 = arith.constant 0 : index
    %462 = vector.load %arg4[%c0_153, %c0_154, %c1_155, %c1_156, %c0_157] : memref<1x1x4x18x130xf32, #tpu.memory_space<vmem>>, vector<1x1x1x16x130xf32>
    %463 = vector.shape_cast %462 : vector<1x1x1x16x130xf32> to vector<16x130xf32>
    %464 = vector.extract_strided_slice %463 {offsets = [0, 0], sizes = [16, 128], strides = [1, 1]} : vector<16x130xf32> to vector<16x128xf32>
    %465 = vector.extract_strided_slice %463 {offsets = [0, 1], sizes = [16, 128], strides = [1, 1]} : vector<16x130xf32> to vector<16x128xf32>
    %466 = vector.extract_strided_slice %463 {offsets = [0, 2], sizes = [16, 128], strides = [1, 1]} : vector<16x130xf32> to vector<16x128xf32>
    %c0_i32_158 = arith.constant 0 : i32
    %467 = arith.addi %0, %c0_i32_158 : i32
    %c36_i32_159 = arith.constant 36 : i32
    %468 = arith.muli %467, %c36_i32_159 : i32
    %c9_i32_160 = arith.constant 9 : i32
    %469 = arith.addi %468, %c9_i32_160 : i32
    %c3_i32_161 = arith.constant 3 : i32
    %470 = arith.addi %469, %c3_i32_161 : i32
    %c0_i32_162 = arith.constant 0 : i32
    %471 = arith.addi %470, %c0_i32_162 : i32
    %472 = arith.index_cast %471 : i32 to index
    %473 = memref.load %arg3[%472] : memref<144xf32, #tpu.memory_space<smem>>
    %474 = vector.broadcast %473 : f32 to vector<16x128xf32>
    %475 = arith.mulf %474, %464 : vector<16x128xf32>
    %476 = arith.addf %395, %475 : vector<16x128xf32>
    %c1_i32_163 = arith.constant 1 : i32
    %477 = arith.addi %470, %c1_i32_163 : i32
    %478 = arith.index_cast %477 : i32 to index
    %479 = memref.load %arg3[%478] : memref<144xf32, #tpu.memory_space<smem>>
    %480 = vector.broadcast %479 : f32 to vector<16x128xf32>
    %481 = arith.mulf %480, %465 : vector<16x128xf32>
    %482 = arith.addf %476, %481 : vector<16x128xf32>
    %c2_i32_164 = arith.constant 2 : i32
    %483 = arith.addi %470, %c2_i32_164 : i32
    %484 = arith.index_cast %483 : i32 to index
    %485 = memref.load %arg3[%484] : memref<144xf32, #tpu.memory_space<smem>>
    %486 = vector.broadcast %485 : f32 to vector<16x128xf32>
    %487 = arith.mulf %486, %466 : vector<16x128xf32>
    %488 = arith.addf %482, %487 : vector<16x128xf32>
    %c1_i32_165 = arith.constant 1 : i32
    %489 = arith.addi %0, %c1_i32_165 : i32
    %c36_i32_166 = arith.constant 36 : i32
    %490 = arith.muli %489, %c36_i32_166 : i32
    %c9_i32_167 = arith.constant 9 : i32
    %491 = arith.addi %490, %c9_i32_167 : i32
    %c3_i32_168 = arith.constant 3 : i32
    %492 = arith.addi %491, %c3_i32_168 : i32
    %c0_i32_169 = arith.constant 0 : i32
    %493 = arith.addi %492, %c0_i32_169 : i32
    %494 = arith.index_cast %493 : i32 to index
    %495 = memref.load %arg3[%494] : memref<144xf32, #tpu.memory_space<smem>>
    %496 = vector.broadcast %495 : f32 to vector<16x128xf32>
    %497 = arith.mulf %496, %464 : vector<16x128xf32>
    %498 = arith.addf %417, %497 : vector<16x128xf32>
    %c1_i32_170 = arith.constant 1 : i32
    %499 = arith.addi %492, %c1_i32_170 : i32
    %500 = arith.index_cast %499 : i32 to index
    %501 = memref.load %arg3[%500] : memref<144xf32, #tpu.memory_space<smem>>
    %502 = vector.broadcast %501 : f32 to vector<16x128xf32>
    %503 = arith.mulf %502, %465 : vector<16x128xf32>
    %504 = arith.addf %498, %503 : vector<16x128xf32>
    %c2_i32_171 = arith.constant 2 : i32
    %505 = arith.addi %492, %c2_i32_171 : i32
    %506 = arith.index_cast %505 : i32 to index
    %507 = memref.load %arg3[%506] : memref<144xf32, #tpu.memory_space<smem>>
    %508 = vector.broadcast %507 : f32 to vector<16x128xf32>
    %509 = arith.mulf %508, %466 : vector<16x128xf32>
    %510 = arith.addf %504, %509 : vector<16x128xf32>
    %c2_i32_172 = arith.constant 2 : i32
    %511 = arith.addi %0, %c2_i32_172 : i32
    %c36_i32_173 = arith.constant 36 : i32
    %512 = arith.muli %511, %c36_i32_173 : i32
    %c9_i32_174 = arith.constant 9 : i32
    %513 = arith.addi %512, %c9_i32_174 : i32
    %c3_i32_175 = arith.constant 3 : i32
    %514 = arith.addi %513, %c3_i32_175 : i32
    %c0_i32_176 = arith.constant 0 : i32
    %515 = arith.addi %514, %c0_i32_176 : i32
    %516 = arith.index_cast %515 : i32 to index
    %517 = memref.load %arg3[%516] : memref<144xf32, #tpu.memory_space<smem>>
    %518 = vector.broadcast %517 : f32 to vector<16x128xf32>
    %519 = arith.mulf %518, %464 : vector<16x128xf32>
    %520 = arith.addf %439, %519 : vector<16x128xf32>
    %c1_i32_177 = arith.constant 1 : i32
    %521 = arith.addi %514, %c1_i32_177 : i32
    %522 = arith.index_cast %521 : i32 to index
    %523 = memref.load %arg3[%522] : memref<144xf32, #tpu.memory_space<smem>>
    %524 = vector.broadcast %523 : f32 to vector<16x128xf32>
    %525 = arith.mulf %524, %465 : vector<16x128xf32>
    %526 = arith.addf %520, %525 : vector<16x128xf32>
    %c2_i32_178 = arith.constant 2 : i32
    %527 = arith.addi %514, %c2_i32_178 : i32
    %528 = arith.index_cast %527 : i32 to index
    %529 = memref.load %arg3[%528] : memref<144xf32, #tpu.memory_space<smem>>
    %530 = vector.broadcast %529 : f32 to vector<16x128xf32>
    %531 = arith.mulf %530, %466 : vector<16x128xf32>
    %532 = arith.addf %526, %531 : vector<16x128xf32>
    %c3_i32_179 = arith.constant 3 : i32
    %533 = arith.addi %0, %c3_i32_179 : i32
    %c36_i32_180 = arith.constant 36 : i32
    %534 = arith.muli %533, %c36_i32_180 : i32
    %c9_i32_181 = arith.constant 9 : i32
    %535 = arith.addi %534, %c9_i32_181 : i32
    %c3_i32_182 = arith.constant 3 : i32
    %536 = arith.addi %535, %c3_i32_182 : i32
    %c0_i32_183 = arith.constant 0 : i32
    %537 = arith.addi %536, %c0_i32_183 : i32
    %538 = arith.index_cast %537 : i32 to index
    %539 = memref.load %arg3[%538] : memref<144xf32, #tpu.memory_space<smem>>
    %540 = vector.broadcast %539 : f32 to vector<16x128xf32>
    %541 = arith.mulf %540, %464 : vector<16x128xf32>
    %542 = arith.addf %461, %541 : vector<16x128xf32>
    %c1_i32_184 = arith.constant 1 : i32
    %543 = arith.addi %536, %c1_i32_184 : i32
    %544 = arith.index_cast %543 : i32 to index
    %545 = memref.load %arg3[%544] : memref<144xf32, #tpu.memory_space<smem>>
    %546 = vector.broadcast %545 : f32 to vector<16x128xf32>
    %547 = arith.mulf %546, %465 : vector<16x128xf32>
    %548 = arith.addf %542, %547 : vector<16x128xf32>
    %c2_i32_185 = arith.constant 2 : i32
    %549 = arith.addi %536, %c2_i32_185 : i32
    %550 = arith.index_cast %549 : i32 to index
    %551 = memref.load %arg3[%550] : memref<144xf32, #tpu.memory_space<smem>>
    %552 = vector.broadcast %551 : f32 to vector<16x128xf32>
    %553 = arith.mulf %552, %466 : vector<16x128xf32>
    %554 = arith.addf %548, %553 : vector<16x128xf32>
    %c0_186 = arith.constant 0 : index
    %c0_187 = arith.constant 0 : index
    %c2_188 = arith.constant 2 : index
    %c1_189 = arith.constant 1 : index
    %c0_190 = arith.constant 0 : index
    %555 = vector.load %arg4[%c0_186, %c0_187, %c2_188, %c1_189, %c0_190] : memref<1x1x4x18x130xf32, #tpu.memory_space<vmem>>, vector<1x1x1x16x130xf32>
    %556 = vector.shape_cast %555 : vector<1x1x1x16x130xf32> to vector<16x130xf32>
    %557 = vector.extract_strided_slice %556 {offsets = [0, 0], sizes = [16, 128], strides = [1, 1]} : vector<16x130xf32> to vector<16x128xf32>
    %558 = vector.extract_strided_slice %556 {offsets = [0, 1], sizes = [16, 128], strides = [1, 1]} : vector<16x130xf32> to vector<16x128xf32>
    %559 = vector.extract_strided_slice %556 {offsets = [0, 2], sizes = [16, 128], strides = [1, 1]} : vector<16x130xf32> to vector<16x128xf32>
    %c0_i32_191 = arith.constant 0 : i32
    %560 = arith.addi %0, %c0_i32_191 : i32
    %c36_i32_192 = arith.constant 36 : i32
    %561 = arith.muli %560, %c36_i32_192 : i32
    %c18_i32_193 = arith.constant 18 : i32
    %562 = arith.addi %561, %c18_i32_193 : i32
    %c3_i32_194 = arith.constant 3 : i32
    %563 = arith.addi %562, %c3_i32_194 : i32
    %c0_i32_195 = arith.constant 0 : i32
    %564 = arith.addi %563, %c0_i32_195 : i32
    %565 = arith.index_cast %564 : i32 to index
    %566 = memref.load %arg3[%565] : memref<144xf32, #tpu.memory_space<smem>>
    %567 = vector.broadcast %566 : f32 to vector<16x128xf32>
    %568 = arith.mulf %567, %557 : vector<16x128xf32>
    %569 = arith.addf %488, %568 : vector<16x128xf32>
    %c1_i32_196 = arith.constant 1 : i32
    %570 = arith.addi %563, %c1_i32_196 : i32
    %571 = arith.index_cast %570 : i32 to index
    %572 = memref.load %arg3[%571] : memref<144xf32, #tpu.memory_space<smem>>
    %573 = vector.broadcast %572 : f32 to vector<16x128xf32>
    %574 = arith.mulf %573, %558 : vector<16x128xf32>
    %575 = arith.addf %569, %574 : vector<16x128xf32>
    %c2_i32_197 = arith.constant 2 : i32
    %576 = arith.addi %563, %c2_i32_197 : i32
    %577 = arith.index_cast %576 : i32 to index
    %578 = memref.load %arg3[%577] : memref<144xf32, #tpu.memory_space<smem>>
    %579 = vector.broadcast %578 : f32 to vector<16x128xf32>
    %580 = arith.mulf %579, %559 : vector<16x128xf32>
    %581 = arith.addf %575, %580 : vector<16x128xf32>
    %c1_i32_198 = arith.constant 1 : i32
    %582 = arith.addi %0, %c1_i32_198 : i32
    %c36_i32_199 = arith.constant 36 : i32
    %583 = arith.muli %582, %c36_i32_199 : i32
    %c18_i32_200 = arith.constant 18 : i32
    %584 = arith.addi %583, %c18_i32_200 : i32
    %c3_i32_201 = arith.constant 3 : i32
    %585 = arith.addi %584, %c3_i32_201 : i32
    %c0_i32_202 = arith.constant 0 : i32
    %586 = arith.addi %585, %c0_i32_202 : i32
    %587 = arith.index_cast %586 : i32 to index
    %588 = memref.load %arg3[%587] : memref<144xf32, #tpu.memory_space<smem>>
    %589 = vector.broadcast %588 : f32 to vector<16x128xf32>
    %590 = arith.mulf %589, %557 : vector<16x128xf32>
    %591 = arith.addf %510, %590 : vector<16x128xf32>
    %c1_i32_203 = arith.constant 1 : i32
    %592 = arith.addi %585, %c1_i32_203 : i32
    %593 = arith.index_cast %592 : i32 to index
    %594 = memref.load %arg3[%593] : memref<144xf32, #tpu.memory_space<smem>>
    %595 = vector.broadcast %594 : f32 to vector<16x128xf32>
    %596 = arith.mulf %595, %558 : vector<16x128xf32>
    %597 = arith.addf %591, %596 : vector<16x128xf32>
    %c2_i32_204 = arith.constant 2 : i32
    %598 = arith.addi %585, %c2_i32_204 : i32
    %599 = arith.index_cast %598 : i32 to index
    %600 = memref.load %arg3[%599] : memref<144xf32, #tpu.memory_space<smem>>
    %601 = vector.broadcast %600 : f32 to vector<16x128xf32>
    %602 = arith.mulf %601, %559 : vector<16x128xf32>
    %603 = arith.addf %597, %602 : vector<16x128xf32>
    %c2_i32_205 = arith.constant 2 : i32
    %604 = arith.addi %0, %c2_i32_205 : i32
    %c36_i32_206 = arith.constant 36 : i32
    %605 = arith.muli %604, %c36_i32_206 : i32
    %c18_i32_207 = arith.constant 18 : i32
    %606 = arith.addi %605, %c18_i32_207 : i32
    %c3_i32_208 = arith.constant 3 : i32
    %607 = arith.addi %606, %c3_i32_208 : i32
    %c0_i32_209 = arith.constant 0 : i32
    %608 = arith.addi %607, %c0_i32_209 : i32
    %609 = arith.index_cast %608 : i32 to index
    %610 = memref.load %arg3[%609] : memref<144xf32, #tpu.memory_space<smem>>
    %611 = vector.broadcast %610 : f32 to vector<16x128xf32>
    %612 = arith.mulf %611, %557 : vector<16x128xf32>
    %613 = arith.addf %532, %612 : vector<16x128xf32>
    %c1_i32_210 = arith.constant 1 : i32
    %614 = arith.addi %607, %c1_i32_210 : i32
    %615 = arith.index_cast %614 : i32 to index
    %616 = memref.load %arg3[%615] : memref<144xf32, #tpu.memory_space<smem>>
    %617 = vector.broadcast %616 : f32 to vector<16x128xf32>
    %618 = arith.mulf %617, %558 : vector<16x128xf32>
    %619 = arith.addf %613, %618 : vector<16x128xf32>
    %c2_i32_211 = arith.constant 2 : i32
    %620 = arith.addi %607, %c2_i32_211 : i32
    %621 = arith.index_cast %620 : i32 to index
    %622 = memref.load %arg3[%621] : memref<144xf32, #tpu.memory_space<smem>>
    %623 = vector.broadcast %622 : f32 to vector<16x128xf32>
    %624 = arith.mulf %623, %559 : vector<16x128xf32>
    %625 = arith.addf %619, %624 : vector<16x128xf32>
    %c3_i32_212 = arith.constant 3 : i32
    %626 = arith.addi %0, %c3_i32_212 : i32
    %c36_i32_213 = arith.constant 36 : i32
    %627 = arith.muli %626, %c36_i32_213 : i32
    %c18_i32_214 = arith.constant 18 : i32
    %628 = arith.addi %627, %c18_i32_214 : i32
    %c3_i32_215 = arith.constant 3 : i32
    %629 = arith.addi %628, %c3_i32_215 : i32
    %c0_i32_216 = arith.constant 0 : i32
    %630 = arith.addi %629, %c0_i32_216 : i32
    %631 = arith.index_cast %630 : i32 to index
    %632 = memref.load %arg3[%631] : memref<144xf32, #tpu.memory_space<smem>>
    %633 = vector.broadcast %632 : f32 to vector<16x128xf32>
    %634 = arith.mulf %633, %557 : vector<16x128xf32>
    %635 = arith.addf %554, %634 : vector<16x128xf32>
    %c1_i32_217 = arith.constant 1 : i32
    %636 = arith.addi %629, %c1_i32_217 : i32
    %637 = arith.index_cast %636 : i32 to index
    %638 = memref.load %arg3[%637] : memref<144xf32, #tpu.memory_space<smem>>
    %639 = vector.broadcast %638 : f32 to vector<16x128xf32>
    %640 = arith.mulf %639, %558 : vector<16x128xf32>
    %641 = arith.addf %635, %640 : vector<16x128xf32>
    %c2_i32_218 = arith.constant 2 : i32
    %642 = arith.addi %629, %c2_i32_218 : i32
    %643 = arith.index_cast %642 : i32 to index
    %644 = memref.load %arg3[%643] : memref<144xf32, #tpu.memory_space<smem>>
    %645 = vector.broadcast %644 : f32 to vector<16x128xf32>
    %646 = arith.mulf %645, %559 : vector<16x128xf32>
    %647 = arith.addf %641, %646 : vector<16x128xf32>
    %c0_219 = arith.constant 0 : index
    %c0_220 = arith.constant 0 : index
    %c3_221 = arith.constant 3 : index
    %c1_222 = arith.constant 1 : index
    %c0_223 = arith.constant 0 : index
    %648 = vector.load %arg4[%c0_219, %c0_220, %c3_221, %c1_222, %c0_223] : memref<1x1x4x18x130xf32, #tpu.memory_space<vmem>>, vector<1x1x1x16x130xf32>
    %649 = vector.shape_cast %648 : vector<1x1x1x16x130xf32> to vector<16x130xf32>
    %650 = vector.extract_strided_slice %649 {offsets = [0, 0], sizes = [16, 128], strides = [1, 1]} : vector<16x130xf32> to vector<16x128xf32>
    %651 = vector.extract_strided_slice %649 {offsets = [0, 1], sizes = [16, 128], strides = [1, 1]} : vector<16x130xf32> to vector<16x128xf32>
    %652 = vector.extract_strided_slice %649 {offsets = [0, 2], sizes = [16, 128], strides = [1, 1]} : vector<16x130xf32> to vector<16x128xf32>
    %c0_i32_224 = arith.constant 0 : i32
    %653 = arith.addi %0, %c0_i32_224 : i32
    %c36_i32_225 = arith.constant 36 : i32
    %654 = arith.muli %653, %c36_i32_225 : i32
    %c27_i32_226 = arith.constant 27 : i32
    %655 = arith.addi %654, %c27_i32_226 : i32
    %c3_i32_227 = arith.constant 3 : i32
    %656 = arith.addi %655, %c3_i32_227 : i32
    %c0_i32_228 = arith.constant 0 : i32
    %657 = arith.addi %656, %c0_i32_228 : i32
    %658 = arith.index_cast %657 : i32 to index
    %659 = memref.load %arg3[%658] : memref<144xf32, #tpu.memory_space<smem>>
    %660 = vector.broadcast %659 : f32 to vector<16x128xf32>
    %661 = arith.mulf %660, %650 : vector<16x128xf32>
    %662 = arith.addf %581, %661 : vector<16x128xf32>
    %c1_i32_229 = arith.constant 1 : i32
    %663 = arith.addi %656, %c1_i32_229 : i32
    %664 = arith.index_cast %663 : i32 to index
    %665 = memref.load %arg3[%664] : memref<144xf32, #tpu.memory_space<smem>>
    %666 = vector.broadcast %665 : f32 to vector<16x128xf32>
    %667 = arith.mulf %666, %651 : vector<16x128xf32>
    %668 = arith.addf %662, %667 : vector<16x128xf32>
    %c2_i32_230 = arith.constant 2 : i32
    %669 = arith.addi %656, %c2_i32_230 : i32
    %670 = arith.index_cast %669 : i32 to index
    %671 = memref.load %arg3[%670] : memref<144xf32, #tpu.memory_space<smem>>
    %672 = vector.broadcast %671 : f32 to vector<16x128xf32>
    %673 = arith.mulf %672, %652 : vector<16x128xf32>
    %674 = arith.addf %668, %673 : vector<16x128xf32>
    %c1_i32_231 = arith.constant 1 : i32
    %675 = arith.addi %0, %c1_i32_231 : i32
    %c36_i32_232 = arith.constant 36 : i32
    %676 = arith.muli %675, %c36_i32_232 : i32
    %c27_i32_233 = arith.constant 27 : i32
    %677 = arith.addi %676, %c27_i32_233 : i32
    %c3_i32_234 = arith.constant 3 : i32
    %678 = arith.addi %677, %c3_i32_234 : i32
    %c0_i32_235 = arith.constant 0 : i32
    %679 = arith.addi %678, %c0_i32_235 : i32
    %680 = arith.index_cast %679 : i32 to index
    %681 = memref.load %arg3[%680] : memref<144xf32, #tpu.memory_space<smem>>
    %682 = vector.broadcast %681 : f32 to vector<16x128xf32>
    %683 = arith.mulf %682, %650 : vector<16x128xf32>
    %684 = arith.addf %603, %683 : vector<16x128xf32>
    %c1_i32_236 = arith.constant 1 : i32
    %685 = arith.addi %678, %c1_i32_236 : i32
    %686 = arith.index_cast %685 : i32 to index
    %687 = memref.load %arg3[%686] : memref<144xf32, #tpu.memory_space<smem>>
    %688 = vector.broadcast %687 : f32 to vector<16x128xf32>
    %689 = arith.mulf %688, %651 : vector<16x128xf32>
    %690 = arith.addf %684, %689 : vector<16x128xf32>
    %c2_i32_237 = arith.constant 2 : i32
    %691 = arith.addi %678, %c2_i32_237 : i32
    %692 = arith.index_cast %691 : i32 to index
    %693 = memref.load %arg3[%692] : memref<144xf32, #tpu.memory_space<smem>>
    %694 = vector.broadcast %693 : f32 to vector<16x128xf32>
    %695 = arith.mulf %694, %652 : vector<16x128xf32>
    %696 = arith.addf %690, %695 : vector<16x128xf32>
    %c2_i32_238 = arith.constant 2 : i32
    %697 = arith.addi %0, %c2_i32_238 : i32
    %c36_i32_239 = arith.constant 36 : i32
    %698 = arith.muli %697, %c36_i32_239 : i32
    %c27_i32_240 = arith.constant 27 : i32
    %699 = arith.addi %698, %c27_i32_240 : i32
    %c3_i32_241 = arith.constant 3 : i32
    %700 = arith.addi %699, %c3_i32_241 : i32
    %c0_i32_242 = arith.constant 0 : i32
    %701 = arith.addi %700, %c0_i32_242 : i32
    %702 = arith.index_cast %701 : i32 to index
    %703 = memref.load %arg3[%702] : memref<144xf32, #tpu.memory_space<smem>>
    %704 = vector.broadcast %703 : f32 to vector<16x128xf32>
    %705 = arith.mulf %704, %650 : vector<16x128xf32>
    %706 = arith.addf %625, %705 : vector<16x128xf32>
    %c1_i32_243 = arith.constant 1 : i32
    %707 = arith.addi %700, %c1_i32_243 : i32
    %708 = arith.index_cast %707 : i32 to index
    %709 = memref.load %arg3[%708] : memref<144xf32, #tpu.memory_space<smem>>
    %710 = vector.broadcast %709 : f32 to vector<16x128xf32>
    %711 = arith.mulf %710, %651 : vector<16x128xf32>
    %712 = arith.addf %706, %711 : vector<16x128xf32>
    %c2_i32_244 = arith.constant 2 : i32
    %713 = arith.addi %700, %c2_i32_244 : i32
    %714 = arith.index_cast %713 : i32 to index
    %715 = memref.load %arg3[%714] : memref<144xf32, #tpu.memory_space<smem>>
    %716 = vector.broadcast %715 : f32 to vector<16x128xf32>
    %717 = arith.mulf %716, %652 : vector<16x128xf32>
    %718 = arith.addf %712, %717 : vector<16x128xf32>
    %c3_i32_245 = arith.constant 3 : i32
    %719 = arith.addi %0, %c3_i32_245 : i32
    %c36_i32_246 = arith.constant 36 : i32
    %720 = arith.muli %719, %c36_i32_246 : i32
    %c27_i32_247 = arith.constant 27 : i32
    %721 = arith.addi %720, %c27_i32_247 : i32
    %c3_i32_248 = arith.constant 3 : i32
    %722 = arith.addi %721, %c3_i32_248 : i32
    %c0_i32_249 = arith.constant 0 : i32
    %723 = arith.addi %722, %c0_i32_249 : i32
    %724 = arith.index_cast %723 : i32 to index
    %725 = memref.load %arg3[%724] : memref<144xf32, #tpu.memory_space<smem>>
    %726 = vector.broadcast %725 : f32 to vector<16x128xf32>
    %727 = arith.mulf %726, %650 : vector<16x128xf32>
    %728 = arith.addf %647, %727 : vector<16x128xf32>
    %c1_i32_250 = arith.constant 1 : i32
    %729 = arith.addi %722, %c1_i32_250 : i32
    %730 = arith.index_cast %729 : i32 to index
    %731 = memref.load %arg3[%730] : memref<144xf32, #tpu.memory_space<smem>>
    %732 = vector.broadcast %731 : f32 to vector<16x128xf32>
    %733 = arith.mulf %732, %651 : vector<16x128xf32>
    %734 = arith.addf %728, %733 : vector<16x128xf32>
    %c2_i32_251 = arith.constant 2 : i32
    %735 = arith.addi %722, %c2_i32_251 : i32
    %736 = arith.index_cast %735 : i32 to index
    %737 = memref.load %arg3[%736] : memref<144xf32, #tpu.memory_space<smem>>
    %738 = vector.broadcast %737 : f32 to vector<16x128xf32>
    %739 = arith.mulf %738, %652 : vector<16x128xf32>
    %740 = arith.addf %734, %739 : vector<16x128xf32>
    %c0_252 = arith.constant 0 : index
    %c0_253 = arith.constant 0 : index
    %c0_254 = arith.constant 0 : index
    %c2_255 = arith.constant 2 : index
    %c0_256 = arith.constant 0 : index
    %741 = vector.load %arg4[%c0_252, %c0_253, %c0_254, %c2_255, %c0_256] : memref<1x1x4x18x130xf32, #tpu.memory_space<vmem>>, vector<1x1x1x16x130xf32>
    %742 = vector.shape_cast %741 : vector<1x1x1x16x130xf32> to vector<16x130xf32>
    %743 = vector.extract_strided_slice %742 {offsets = [0, 0], sizes = [16, 128], strides = [1, 1]} : vector<16x130xf32> to vector<16x128xf32>
    %744 = vector.extract_strided_slice %742 {offsets = [0, 1], sizes = [16, 128], strides = [1, 1]} : vector<16x130xf32> to vector<16x128xf32>
    %745 = vector.extract_strided_slice %742 {offsets = [0, 2], sizes = [16, 128], strides = [1, 1]} : vector<16x130xf32> to vector<16x128xf32>
    %c0_i32_257 = arith.constant 0 : i32
    %746 = arith.addi %0, %c0_i32_257 : i32
    %c36_i32_258 = arith.constant 36 : i32
    %747 = arith.muli %746, %c36_i32_258 : i32
    %c0_i32_259 = arith.constant 0 : i32
    %748 = arith.addi %747, %c0_i32_259 : i32
    %c6_i32 = arith.constant 6 : i32
    %749 = arith.addi %748, %c6_i32 : i32
    %c0_i32_260 = arith.constant 0 : i32
    %750 = arith.addi %749, %c0_i32_260 : i32
    %751 = arith.index_cast %750 : i32 to index
    %752 = memref.load %arg3[%751] : memref<144xf32, #tpu.memory_space<smem>>
    %753 = vector.broadcast %752 : f32 to vector<16x128xf32>
    %754 = arith.mulf %753, %743 : vector<16x128xf32>
    %755 = arith.addf %674, %754 : vector<16x128xf32>
    %c1_i32_261 = arith.constant 1 : i32
    %756 = arith.addi %749, %c1_i32_261 : i32
    %757 = arith.index_cast %756 : i32 to index
    %758 = memref.load %arg3[%757] : memref<144xf32, #tpu.memory_space<smem>>
    %759 = vector.broadcast %758 : f32 to vector<16x128xf32>
    %760 = arith.mulf %759, %744 : vector<16x128xf32>
    %761 = arith.addf %755, %760 : vector<16x128xf32>
    %c2_i32_262 = arith.constant 2 : i32
    %762 = arith.addi %749, %c2_i32_262 : i32
    %763 = arith.index_cast %762 : i32 to index
    %764 = memref.load %arg3[%763] : memref<144xf32, #tpu.memory_space<smem>>
    %765 = vector.broadcast %764 : f32 to vector<16x128xf32>
    %766 = arith.mulf %765, %745 : vector<16x128xf32>
    %767 = arith.addf %761, %766 : vector<16x128xf32>
    %c1_i32_263 = arith.constant 1 : i32
    %768 = arith.addi %0, %c1_i32_263 : i32
    %c36_i32_264 = arith.constant 36 : i32
    %769 = arith.muli %768, %c36_i32_264 : i32
    %c0_i32_265 = arith.constant 0 : i32
    %770 = arith.addi %769, %c0_i32_265 : i32
    %c6_i32_266 = arith.constant 6 : i32
    %771 = arith.addi %770, %c6_i32_266 : i32
    %c0_i32_267 = arith.constant 0 : i32
    %772 = arith.addi %771, %c0_i32_267 : i32
    %773 = arith.index_cast %772 : i32 to index
    %774 = memref.load %arg3[%773] : memref<144xf32, #tpu.memory_space<smem>>
    %775 = vector.broadcast %774 : f32 to vector<16x128xf32>
    %776 = arith.mulf %775, %743 : vector<16x128xf32>
    %777 = arith.addf %696, %776 : vector<16x128xf32>
    %c1_i32_268 = arith.constant 1 : i32
    %778 = arith.addi %771, %c1_i32_268 : i32
    %779 = arith.index_cast %778 : i32 to index
    %780 = memref.load %arg3[%779] : memref<144xf32, #tpu.memory_space<smem>>
    %781 = vector.broadcast %780 : f32 to vector<16x128xf32>
    %782 = arith.mulf %781, %744 : vector<16x128xf32>
    %783 = arith.addf %777, %782 : vector<16x128xf32>
    %c2_i32_269 = arith.constant 2 : i32
    %784 = arith.addi %771, %c2_i32_269 : i32
    %785 = arith.index_cast %784 : i32 to index
    %786 = memref.load %arg3[%785] : memref<144xf32, #tpu.memory_space<smem>>
    %787 = vector.broadcast %786 : f32 to vector<16x128xf32>
    %788 = arith.mulf %787, %745 : vector<16x128xf32>
    %789 = arith.addf %783, %788 : vector<16x128xf32>
    %c2_i32_270 = arith.constant 2 : i32
    %790 = arith.addi %0, %c2_i32_270 : i32
    %c36_i32_271 = arith.constant 36 : i32
    %791 = arith.muli %790, %c36_i32_271 : i32
    %c0_i32_272 = arith.constant 0 : i32
    %792 = arith.addi %791, %c0_i32_272 : i32
    %c6_i32_273 = arith.constant 6 : i32
    %793 = arith.addi %792, %c6_i32_273 : i32
    %c0_i32_274 = arith.constant 0 : i32
    %794 = arith.addi %793, %c0_i32_274 : i32
    %795 = arith.index_cast %794 : i32 to index
    %796 = memref.load %arg3[%795] : memref<144xf32, #tpu.memory_space<smem>>
    %797 = vector.broadcast %796 : f32 to vector<16x128xf32>
    %798 = arith.mulf %797, %743 : vector<16x128xf32>
    %799 = arith.addf %718, %798 : vector<16x128xf32>
    %c1_i32_275 = arith.constant 1 : i32
    %800 = arith.addi %793, %c1_i32_275 : i32
    %801 = arith.index_cast %800 : i32 to index
    %802 = memref.load %arg3[%801] : memref<144xf32, #tpu.memory_space<smem>>
    %803 = vector.broadcast %802 : f32 to vector<16x128xf32>
    %804 = arith.mulf %803, %744 : vector<16x128xf32>
    %805 = arith.addf %799, %804 : vector<16x128xf32>
    %c2_i32_276 = arith.constant 2 : i32
    %806 = arith.addi %793, %c2_i32_276 : i32
    %807 = arith.index_cast %806 : i32 to index
    %808 = memref.load %arg3[%807] : memref<144xf32, #tpu.memory_space<smem>>
    %809 = vector.broadcast %808 : f32 to vector<16x128xf32>
    %810 = arith.mulf %809, %745 : vector<16x128xf32>
    %811 = arith.addf %805, %810 : vector<16x128xf32>
    %c3_i32_277 = arith.constant 3 : i32
    %812 = arith.addi %0, %c3_i32_277 : i32
    %c36_i32_278 = arith.constant 36 : i32
    %813 = arith.muli %812, %c36_i32_278 : i32
    %c0_i32_279 = arith.constant 0 : i32
    %814 = arith.addi %813, %c0_i32_279 : i32
    %c6_i32_280 = arith.constant 6 : i32
    %815 = arith.addi %814, %c6_i32_280 : i32
    %c0_i32_281 = arith.constant 0 : i32
    %816 = arith.addi %815, %c0_i32_281 : i32
    %817 = arith.index_cast %816 : i32 to index
    %818 = memref.load %arg3[%817] : memref<144xf32, #tpu.memory_space<smem>>
    %819 = vector.broadcast %818 : f32 to vector<16x128xf32>
    %820 = arith.mulf %819, %743 : vector<16x128xf32>
    %821 = arith.addf %740, %820 : vector<16x128xf32>
    %c1_i32_282 = arith.constant 1 : i32
    %822 = arith.addi %815, %c1_i32_282 : i32
    %823 = arith.index_cast %822 : i32 to index
    %824 = memref.load %arg3[%823] : memref<144xf32, #tpu.memory_space<smem>>
    %825 = vector.broadcast %824 : f32 to vector<16x128xf32>
    %826 = arith.mulf %825, %744 : vector<16x128xf32>
    %827 = arith.addf %821, %826 : vector<16x128xf32>
    %c2_i32_283 = arith.constant 2 : i32
    %828 = arith.addi %815, %c2_i32_283 : i32
    %829 = arith.index_cast %828 : i32 to index
    %830 = memref.load %arg3[%829] : memref<144xf32, #tpu.memory_space<smem>>
    %831 = vector.broadcast %830 : f32 to vector<16x128xf32>
    %832 = arith.mulf %831, %745 : vector<16x128xf32>
    %833 = arith.addf %827, %832 : vector<16x128xf32>
    %c0_284 = arith.constant 0 : index
    %c0_285 = arith.constant 0 : index
    %c1_286 = arith.constant 1 : index
    %c2_287 = arith.constant 2 : index
    %c0_288 = arith.constant 0 : index
    %834 = vector.load %arg4[%c0_284, %c0_285, %c1_286, %c2_287, %c0_288] : memref<1x1x4x18x130xf32, #tpu.memory_space<vmem>>, vector<1x1x1x16x130xf32>
    %835 = vector.shape_cast %834 : vector<1x1x1x16x130xf32> to vector<16x130xf32>
    %836 = vector.extract_strided_slice %835 {offsets = [0, 0], sizes = [16, 128], strides = [1, 1]} : vector<16x130xf32> to vector<16x128xf32>
    %837 = vector.extract_strided_slice %835 {offsets = [0, 1], sizes = [16, 128], strides = [1, 1]} : vector<16x130xf32> to vector<16x128xf32>
    %838 = vector.extract_strided_slice %835 {offsets = [0, 2], sizes = [16, 128], strides = [1, 1]} : vector<16x130xf32> to vector<16x128xf32>
    %c0_i32_289 = arith.constant 0 : i32
    %839 = arith.addi %0, %c0_i32_289 : i32
    %c36_i32_290 = arith.constant 36 : i32
    %840 = arith.muli %839, %c36_i32_290 : i32
    %c9_i32_291 = arith.constant 9 : i32
    %841 = arith.addi %840, %c9_i32_291 : i32
    %c6_i32_292 = arith.constant 6 : i32
    %842 = arith.addi %841, %c6_i32_292 : i32
    %c0_i32_293 = arith.constant 0 : i32
    %843 = arith.addi %842, %c0_i32_293 : i32
    %844 = arith.index_cast %843 : i32 to index
    %845 = memref.load %arg3[%844] : memref<144xf32, #tpu.memory_space<smem>>
    %846 = vector.broadcast %845 : f32 to vector<16x128xf32>
    %847 = arith.mulf %846, %836 : vector<16x128xf32>
    %848 = arith.addf %767, %847 : vector<16x128xf32>
    %c1_i32_294 = arith.constant 1 : i32
    %849 = arith.addi %842, %c1_i32_294 : i32
    %850 = arith.index_cast %849 : i32 to index
    %851 = memref.load %arg3[%850] : memref<144xf32, #tpu.memory_space<smem>>
    %852 = vector.broadcast %851 : f32 to vector<16x128xf32>
    %853 = arith.mulf %852, %837 : vector<16x128xf32>
    %854 = arith.addf %848, %853 : vector<16x128xf32>
    %c2_i32_295 = arith.constant 2 : i32
    %855 = arith.addi %842, %c2_i32_295 : i32
    %856 = arith.index_cast %855 : i32 to index
    %857 = memref.load %arg3[%856] : memref<144xf32, #tpu.memory_space<smem>>
    %858 = vector.broadcast %857 : f32 to vector<16x128xf32>
    %859 = arith.mulf %858, %838 : vector<16x128xf32>
    %860 = arith.addf %854, %859 : vector<16x128xf32>
    %c1_i32_296 = arith.constant 1 : i32
    %861 = arith.addi %0, %c1_i32_296 : i32
    %c36_i32_297 = arith.constant 36 : i32
    %862 = arith.muli %861, %c36_i32_297 : i32
    %c9_i32_298 = arith.constant 9 : i32
    %863 = arith.addi %862, %c9_i32_298 : i32
    %c6_i32_299 = arith.constant 6 : i32
    %864 = arith.addi %863, %c6_i32_299 : i32
    %c0_i32_300 = arith.constant 0 : i32
    %865 = arith.addi %864, %c0_i32_300 : i32
    %866 = arith.index_cast %865 : i32 to index
    %867 = memref.load %arg3[%866] : memref<144xf32, #tpu.memory_space<smem>>
    %868 = vector.broadcast %867 : f32 to vector<16x128xf32>
    %869 = arith.mulf %868, %836 : vector<16x128xf32>
    %870 = arith.addf %789, %869 : vector<16x128xf32>
    %c1_i32_301 = arith.constant 1 : i32
    %871 = arith.addi %864, %c1_i32_301 : i32
    %872 = arith.index_cast %871 : i32 to index
    %873 = memref.load %arg3[%872] : memref<144xf32, #tpu.memory_space<smem>>
    %874 = vector.broadcast %873 : f32 to vector<16x128xf32>
    %875 = arith.mulf %874, %837 : vector<16x128xf32>
    %876 = arith.addf %870, %875 : vector<16x128xf32>
    %c2_i32_302 = arith.constant 2 : i32
    %877 = arith.addi %864, %c2_i32_302 : i32
    %878 = arith.index_cast %877 : i32 to index
    %879 = memref.load %arg3[%878] : memref<144xf32, #tpu.memory_space<smem>>
    %880 = vector.broadcast %879 : f32 to vector<16x128xf32>
    %881 = arith.mulf %880, %838 : vector<16x128xf32>
    %882 = arith.addf %876, %881 : vector<16x128xf32>
    %c2_i32_303 = arith.constant 2 : i32
    %883 = arith.addi %0, %c2_i32_303 : i32
    %c36_i32_304 = arith.constant 36 : i32
    %884 = arith.muli %883, %c36_i32_304 : i32
    %c9_i32_305 = arith.constant 9 : i32
    %885 = arith.addi %884, %c9_i32_305 : i32
    %c6_i32_306 = arith.constant 6 : i32
    %886 = arith.addi %885, %c6_i32_306 : i32
    %c0_i32_307 = arith.constant 0 : i32
    %887 = arith.addi %886, %c0_i32_307 : i32
    %888 = arith.index_cast %887 : i32 to index
    %889 = memref.load %arg3[%888] : memref<144xf32, #tpu.memory_space<smem>>
    %890 = vector.broadcast %889 : f32 to vector<16x128xf32>
    %891 = arith.mulf %890, %836 : vector<16x128xf32>
    %892 = arith.addf %811, %891 : vector<16x128xf32>
    %c1_i32_308 = arith.constant 1 : i32
    %893 = arith.addi %886, %c1_i32_308 : i32
    %894 = arith.index_cast %893 : i32 to index
    %895 = memref.load %arg3[%894] : memref<144xf32, #tpu.memory_space<smem>>
    %896 = vector.broadcast %895 : f32 to vector<16x128xf32>
    %897 = arith.mulf %896, %837 : vector<16x128xf32>
    %898 = arith.addf %892, %897 : vector<16x128xf32>
    %c2_i32_309 = arith.constant 2 : i32
    %899 = arith.addi %886, %c2_i32_309 : i32
    %900 = arith.index_cast %899 : i32 to index
    %901 = memref.load %arg3[%900] : memref<144xf32, #tpu.memory_space<smem>>
    %902 = vector.broadcast %901 : f32 to vector<16x128xf32>
    %903 = arith.mulf %902, %838 : vector<16x128xf32>
    %904 = arith.addf %898, %903 : vector<16x128xf32>
    %c3_i32_310 = arith.constant 3 : i32
    %905 = arith.addi %0, %c3_i32_310 : i32
    %c36_i32_311 = arith.constant 36 : i32
    %906 = arith.muli %905, %c36_i32_311 : i32
    %c9_i32_312 = arith.constant 9 : i32
    %907 = arith.addi %906, %c9_i32_312 : i32
    %c6_i32_313 = arith.constant 6 : i32
    %908 = arith.addi %907, %c6_i32_313 : i32
    %c0_i32_314 = arith.constant 0 : i32
    %909 = arith.addi %908, %c0_i32_314 : i32
    %910 = arith.index_cast %909 : i32 to index
    %911 = memref.load %arg3[%910] : memref<144xf32, #tpu.memory_space<smem>>
    %912 = vector.broadcast %911 : f32 to vector<16x128xf32>
    %913 = arith.mulf %912, %836 : vector<16x128xf32>
    %914 = arith.addf %833, %913 : vector<16x128xf32>
    %c1_i32_315 = arith.constant 1 : i32
    %915 = arith.addi %908, %c1_i32_315 : i32
    %916 = arith.index_cast %915 : i32 to index
    %917 = memref.load %arg3[%916] : memref<144xf32, #tpu.memory_space<smem>>
    %918 = vector.broadcast %917 : f32 to vector<16x128xf32>
    %919 = arith.mulf %918, %837 : vector<16x128xf32>
    %920 = arith.addf %914, %919 : vector<16x128xf32>
    %c2_i32_316 = arith.constant 2 : i32
    %921 = arith.addi %908, %c2_i32_316 : i32
    %922 = arith.index_cast %921 : i32 to index
    %923 = memref.load %arg3[%922] : memref<144xf32, #tpu.memory_space<smem>>
    %924 = vector.broadcast %923 : f32 to vector<16x128xf32>
    %925 = arith.mulf %924, %838 : vector<16x128xf32>
    %926 = arith.addf %920, %925 : vector<16x128xf32>
    %c0_317 = arith.constant 0 : index
    %c0_318 = arith.constant 0 : index
    %c2_319 = arith.constant 2 : index
    %c2_320 = arith.constant 2 : index
    %c0_321 = arith.constant 0 : index
    %927 = vector.load %arg4[%c0_317, %c0_318, %c2_319, %c2_320, %c0_321] : memref<1x1x4x18x130xf32, #tpu.memory_space<vmem>>, vector<1x1x1x16x130xf32>
    %928 = vector.shape_cast %927 : vector<1x1x1x16x130xf32> to vector<16x130xf32>
    %929 = vector.extract_strided_slice %928 {offsets = [0, 0], sizes = [16, 128], strides = [1, 1]} : vector<16x130xf32> to vector<16x128xf32>
    %930 = vector.extract_strided_slice %928 {offsets = [0, 1], sizes = [16, 128], strides = [1, 1]} : vector<16x130xf32> to vector<16x128xf32>
    %931 = vector.extract_strided_slice %928 {offsets = [0, 2], sizes = [16, 128], strides = [1, 1]} : vector<16x130xf32> to vector<16x128xf32>
    %c0_i32_322 = arith.constant 0 : i32
    %932 = arith.addi %0, %c0_i32_322 : i32
    %c36_i32_323 = arith.constant 36 : i32
    %933 = arith.muli %932, %c36_i32_323 : i32
    %c18_i32_324 = arith.constant 18 : i32
    %934 = arith.addi %933, %c18_i32_324 : i32
    %c6_i32_325 = arith.constant 6 : i32
    %935 = arith.addi %934, %c6_i32_325 : i32
    %c0_i32_326 = arith.constant 0 : i32
    %936 = arith.addi %935, %c0_i32_326 : i32
    %937 = arith.index_cast %936 : i32 to index
    %938 = memref.load %arg3[%937] : memref<144xf32, #tpu.memory_space<smem>>
    %939 = vector.broadcast %938 : f32 to vector<16x128xf32>
    %940 = arith.mulf %939, %929 : vector<16x128xf32>
    %941 = arith.addf %860, %940 : vector<16x128xf32>
    %c1_i32_327 = arith.constant 1 : i32
    %942 = arith.addi %935, %c1_i32_327 : i32
    %943 = arith.index_cast %942 : i32 to index
    %944 = memref.load %arg3[%943] : memref<144xf32, #tpu.memory_space<smem>>
    %945 = vector.broadcast %944 : f32 to vector<16x128xf32>
    %946 = arith.mulf %945, %930 : vector<16x128xf32>
    %947 = arith.addf %941, %946 : vector<16x128xf32>
    %c2_i32_328 = arith.constant 2 : i32
    %948 = arith.addi %935, %c2_i32_328 : i32
    %949 = arith.index_cast %948 : i32 to index
    %950 = memref.load %arg3[%949] : memref<144xf32, #tpu.memory_space<smem>>
    %951 = vector.broadcast %950 : f32 to vector<16x128xf32>
    %952 = arith.mulf %951, %931 : vector<16x128xf32>
    %953 = arith.addf %947, %952 : vector<16x128xf32>
    %c1_i32_329 = arith.constant 1 : i32
    %954 = arith.addi %0, %c1_i32_329 : i32
    %c36_i32_330 = arith.constant 36 : i32
    %955 = arith.muli %954, %c36_i32_330 : i32
    %c18_i32_331 = arith.constant 18 : i32
    %956 = arith.addi %955, %c18_i32_331 : i32
    %c6_i32_332 = arith.constant 6 : i32
    %957 = arith.addi %956, %c6_i32_332 : i32
    %c0_i32_333 = arith.constant 0 : i32
    %958 = arith.addi %957, %c0_i32_333 : i32
    %959 = arith.index_cast %958 : i32 to index
    %960 = memref.load %arg3[%959] : memref<144xf32, #tpu.memory_space<smem>>
    %961 = vector.broadcast %960 : f32 to vector<16x128xf32>
    %962 = arith.mulf %961, %929 : vector<16x128xf32>
    %963 = arith.addf %882, %962 : vector<16x128xf32>
    %c1_i32_334 = arith.constant 1 : i32
    %964 = arith.addi %957, %c1_i32_334 : i32
    %965 = arith.index_cast %964 : i32 to index
    %966 = memref.load %arg3[%965] : memref<144xf32, #tpu.memory_space<smem>>
    %967 = vector.broadcast %966 : f32 to vector<16x128xf32>
    %968 = arith.mulf %967, %930 : vector<16x128xf32>
    %969 = arith.addf %963, %968 : vector<16x128xf32>
    %c2_i32_335 = arith.constant 2 : i32
    %970 = arith.addi %957, %c2_i32_335 : i32
    %971 = arith.index_cast %970 : i32 to index
    %972 = memref.load %arg3[%971] : memref<144xf32, #tpu.memory_space<smem>>
    %973 = vector.broadcast %972 : f32 to vector<16x128xf32>
    %974 = arith.mulf %973, %931 : vector<16x128xf32>
    %975 = arith.addf %969, %974 : vector<16x128xf32>
    %c2_i32_336 = arith.constant 2 : i32
    %976 = arith.addi %0, %c2_i32_336 : i32
    %c36_i32_337 = arith.constant 36 : i32
    %977 = arith.muli %976, %c36_i32_337 : i32
    %c18_i32_338 = arith.constant 18 : i32
    %978 = arith.addi %977, %c18_i32_338 : i32
    %c6_i32_339 = arith.constant 6 : i32
    %979 = arith.addi %978, %c6_i32_339 : i32
    %c0_i32_340 = arith.constant 0 : i32
    %980 = arith.addi %979, %c0_i32_340 : i32
    %981 = arith.index_cast %980 : i32 to index
    %982 = memref.load %arg3[%981] : memref<144xf32, #tpu.memory_space<smem>>
    %983 = vector.broadcast %982 : f32 to vector<16x128xf32>
    %984 = arith.mulf %983, %929 : vector<16x128xf32>
    %985 = arith.addf %904, %984 : vector<16x128xf32>
    %c1_i32_341 = arith.constant 1 : i32
    %986 = arith.addi %979, %c1_i32_341 : i32
    %987 = arith.index_cast %986 : i32 to index
    %988 = memref.load %arg3[%987] : memref<144xf32, #tpu.memory_space<smem>>
    %989 = vector.broadcast %988 : f32 to vector<16x128xf32>
    %990 = arith.mulf %989, %930 : vector<16x128xf32>
    %991 = arith.addf %985, %990 : vector<16x128xf32>
    %c2_i32_342 = arith.constant 2 : i32
    %992 = arith.addi %979, %c2_i32_342 : i32
    %993 = arith.index_cast %992 : i32 to index
    %994 = memref.load %arg3[%993] : memref<144xf32, #tpu.memory_space<smem>>
    %995 = vector.broadcast %994 : f32 to vector<16x128xf32>
    %996 = arith.mulf %995, %931 : vector<16x128xf32>
    %997 = arith.addf %991, %996 : vector<16x128xf32>
    %c3_i32_343 = arith.constant 3 : i32
    %998 = arith.addi %0, %c3_i32_343 : i32
    %c36_i32_344 = arith.constant 36 : i32
    %999 = arith.muli %998, %c36_i32_344 : i32
    %c18_i32_345 = arith.constant 18 : i32
    %1000 = arith.addi %999, %c18_i32_345 : i32
    %c6_i32_346 = arith.constant 6 : i32
    %1001 = arith.addi %1000, %c6_i32_346 : i32
    %c0_i32_347 = arith.constant 0 : i32
    %1002 = arith.addi %1001, %c0_i32_347 : i32
    %1003 = arith.index_cast %1002 : i32 to index
    %1004 = memref.load %arg3[%1003] : memref<144xf32, #tpu.memory_space<smem>>
    %1005 = vector.broadcast %1004 : f32 to vector<16x128xf32>
    %1006 = arith.mulf %1005, %929 : vector<16x128xf32>
    %1007 = arith.addf %926, %1006 : vector<16x128xf32>
    %c1_i32_348 = arith.constant 1 : i32
    %1008 = arith.addi %1001, %c1_i32_348 : i32
    %1009 = arith.index_cast %1008 : i32 to index
    %1010 = memref.load %arg3[%1009] : memref<144xf32, #tpu.memory_space<smem>>
    %1011 = vector.broadcast %1010 : f32 to vector<16x128xf32>
    %1012 = arith.mulf %1011, %930 : vector<16x128xf32>
    %1013 = arith.addf %1007, %1012 : vector<16x128xf32>
    %c2_i32_349 = arith.constant 2 : i32
    %1014 = arith.addi %1001, %c2_i32_349 : i32
    %1015 = arith.index_cast %1014 : i32 to index
    %1016 = memref.load %arg3[%1015] : memref<144xf32, #tpu.memory_space<smem>>
    %1017 = vector.broadcast %1016 : f32 to vector<16x128xf32>
    %1018 = arith.mulf %1017, %931 : vector<16x128xf32>
    %1019 = arith.addf %1013, %1018 : vector<16x128xf32>
    %c0_350 = arith.constant 0 : index
    %c0_351 = arith.constant 0 : index
    %c3_352 = arith.constant 3 : index
    %c2_353 = arith.constant 2 : index
    %c0_354 = arith.constant 0 : index
    %1020 = vector.load %arg4[%c0_350, %c0_351, %c3_352, %c2_353, %c0_354] : memref<1x1x4x18x130xf32, #tpu.memory_space<vmem>>, vector<1x1x1x16x130xf32>
    %1021 = vector.shape_cast %1020 : vector<1x1x1x16x130xf32> to vector<16x130xf32>
    %1022 = vector.extract_strided_slice %1021 {offsets = [0, 0], sizes = [16, 128], strides = [1, 1]} : vector<16x130xf32> to vector<16x128xf32>
    %1023 = vector.extract_strided_slice %1021 {offsets = [0, 1], sizes = [16, 128], strides = [1, 1]} : vector<16x130xf32> to vector<16x128xf32>
    %1024 = vector.extract_strided_slice %1021 {offsets = [0, 2], sizes = [16, 128], strides = [1, 1]} : vector<16x130xf32> to vector<16x128xf32>
    %c0_i32_355 = arith.constant 0 : i32
    %1025 = arith.addi %0, %c0_i32_355 : i32
    %c36_i32_356 = arith.constant 36 : i32
    %1026 = arith.muli %1025, %c36_i32_356 : i32
    %c27_i32_357 = arith.constant 27 : i32
    %1027 = arith.addi %1026, %c27_i32_357 : i32
    %c6_i32_358 = arith.constant 6 : i32
    %1028 = arith.addi %1027, %c6_i32_358 : i32
    %c0_i32_359 = arith.constant 0 : i32
    %1029 = arith.addi %1028, %c0_i32_359 : i32
    %1030 = arith.index_cast %1029 : i32 to index
    %1031 = memref.load %arg3[%1030] : memref<144xf32, #tpu.memory_space<smem>>
    %1032 = vector.broadcast %1031 : f32 to vector<16x128xf32>
    %1033 = arith.mulf %1032, %1022 : vector<16x128xf32>
    %1034 = arith.addf %953, %1033 : vector<16x128xf32>
    %c1_i32_360 = arith.constant 1 : i32
    %1035 = arith.addi %1028, %c1_i32_360 : i32
    %1036 = arith.index_cast %1035 : i32 to index
    %1037 = memref.load %arg3[%1036] : memref<144xf32, #tpu.memory_space<smem>>
    %1038 = vector.broadcast %1037 : f32 to vector<16x128xf32>
    %1039 = arith.mulf %1038, %1023 : vector<16x128xf32>
    %1040 = arith.addf %1034, %1039 : vector<16x128xf32>
    %c2_i32_361 = arith.constant 2 : i32
    %1041 = arith.addi %1028, %c2_i32_361 : i32
    %1042 = arith.index_cast %1041 : i32 to index
    %1043 = memref.load %arg3[%1042] : memref<144xf32, #tpu.memory_space<smem>>
    %1044 = vector.broadcast %1043 : f32 to vector<16x128xf32>
    %1045 = arith.mulf %1044, %1024 : vector<16x128xf32>
    %1046 = arith.addf %1040, %1045 : vector<16x128xf32>
    %c1_i32_362 = arith.constant 1 : i32
    %1047 = arith.addi %0, %c1_i32_362 : i32
    %c36_i32_363 = arith.constant 36 : i32
    %1048 = arith.muli %1047, %c36_i32_363 : i32
    %c27_i32_364 = arith.constant 27 : i32
    %1049 = arith.addi %1048, %c27_i32_364 : i32
    %c6_i32_365 = arith.constant 6 : i32
    %1050 = arith.addi %1049, %c6_i32_365 : i32
    %c0_i32_366 = arith.constant 0 : i32
    %1051 = arith.addi %1050, %c0_i32_366 : i32
    %1052 = arith.index_cast %1051 : i32 to index
    %1053 = memref.load %arg3[%1052] : memref<144xf32, #tpu.memory_space<smem>>
    %1054 = vector.broadcast %1053 : f32 to vector<16x128xf32>
    %1055 = arith.mulf %1054, %1022 : vector<16x128xf32>
    %1056 = arith.addf %975, %1055 : vector<16x128xf32>
    %c1_i32_367 = arith.constant 1 : i32
    %1057 = arith.addi %1050, %c1_i32_367 : i32
    %1058 = arith.index_cast %1057 : i32 to index
    %1059 = memref.load %arg3[%1058] : memref<144xf32, #tpu.memory_space<smem>>
    %1060 = vector.broadcast %1059 : f32 to vector<16x128xf32>
    %1061 = arith.mulf %1060, %1023 : vector<16x128xf32>
    %1062 = arith.addf %1056, %1061 : vector<16x128xf32>
    %c2_i32_368 = arith.constant 2 : i32
    %1063 = arith.addi %1050, %c2_i32_368 : i32
    %1064 = arith.index_cast %1063 : i32 to index
    %1065 = memref.load %arg3[%1064] : memref<144xf32, #tpu.memory_space<smem>>
    %1066 = vector.broadcast %1065 : f32 to vector<16x128xf32>
    %1067 = arith.mulf %1066, %1024 : vector<16x128xf32>
    %1068 = arith.addf %1062, %1067 : vector<16x128xf32>
    %c2_i32_369 = arith.constant 2 : i32
    %1069 = arith.addi %0, %c2_i32_369 : i32
    %c36_i32_370 = arith.constant 36 : i32
    %1070 = arith.muli %1069, %c36_i32_370 : i32
    %c27_i32_371 = arith.constant 27 : i32
    %1071 = arith.addi %1070, %c27_i32_371 : i32
    %c6_i32_372 = arith.constant 6 : i32
    %1072 = arith.addi %1071, %c6_i32_372 : i32
    %c0_i32_373 = arith.constant 0 : i32
    %1073 = arith.addi %1072, %c0_i32_373 : i32
    %1074 = arith.index_cast %1073 : i32 to index
    %1075 = memref.load %arg3[%1074] : memref<144xf32, #tpu.memory_space<smem>>
    %1076 = vector.broadcast %1075 : f32 to vector<16x128xf32>
    %1077 = arith.mulf %1076, %1022 : vector<16x128xf32>
    %1078 = arith.addf %997, %1077 : vector<16x128xf32>
    %c1_i32_374 = arith.constant 1 : i32
    %1079 = arith.addi %1072, %c1_i32_374 : i32
    %1080 = arith.index_cast %1079 : i32 to index
    %1081 = memref.load %arg3[%1080] : memref<144xf32, #tpu.memory_space<smem>>
    %1082 = vector.broadcast %1081 : f32 to vector<16x128xf32>
    %1083 = arith.mulf %1082, %1023 : vector<16x128xf32>
    %1084 = arith.addf %1078, %1083 : vector<16x128xf32>
    %c2_i32_375 = arith.constant 2 : i32
    %1085 = arith.addi %1072, %c2_i32_375 : i32
    %1086 = arith.index_cast %1085 : i32 to index
    %1087 = memref.load %arg3[%1086] : memref<144xf32, #tpu.memory_space<smem>>
    %1088 = vector.broadcast %1087 : f32 to vector<16x128xf32>
    %1089 = arith.mulf %1088, %1024 : vector<16x128xf32>
    %1090 = arith.addf %1084, %1089 : vector<16x128xf32>
    %c3_i32_376 = arith.constant 3 : i32
    %1091 = arith.addi %0, %c3_i32_376 : i32
    %c36_i32_377 = arith.constant 36 : i32
    %1092 = arith.muli %1091, %c36_i32_377 : i32
    %c27_i32_378 = arith.constant 27 : i32
    %1093 = arith.addi %1092, %c27_i32_378 : i32
    %c6_i32_379 = arith.constant 6 : i32
    %1094 = arith.addi %1093, %c6_i32_379 : i32
    %c0_i32_380 = arith.constant 0 : i32
    %1095 = arith.addi %1094, %c0_i32_380 : i32
    %1096 = arith.index_cast %1095 : i32 to index
    %1097 = memref.load %arg3[%1096] : memref<144xf32, #tpu.memory_space<smem>>
    %1098 = vector.broadcast %1097 : f32 to vector<16x128xf32>
    %1099 = arith.mulf %1098, %1022 : vector<16x128xf32>
    %1100 = arith.addf %1019, %1099 : vector<16x128xf32>
    %c1_i32_381 = arith.constant 1 : i32
    %1101 = arith.addi %1094, %c1_i32_381 : i32
    %1102 = arith.index_cast %1101 : i32 to index
    %1103 = memref.load %arg3[%1102] : memref<144xf32, #tpu.memory_space<smem>>
    %1104 = vector.broadcast %1103 : f32 to vector<16x128xf32>
    %1105 = arith.mulf %1104, %1023 : vector<16x128xf32>
    %1106 = arith.addf %1100, %1105 : vector<16x128xf32>
    %c2_i32_382 = arith.constant 2 : i32
    %1107 = arith.addi %1094, %c2_i32_382 : i32
    %1108 = arith.index_cast %1107 : i32 to index
    %1109 = memref.load %arg3[%1108] : memref<144xf32, #tpu.memory_space<smem>>
    %1110 = vector.broadcast %1109 : f32 to vector<16x128xf32>
    %1111 = arith.mulf %1110, %1024 : vector<16x128xf32>
    %1112 = arith.addf %1106, %1111 : vector<16x128xf32>
    %c0_383 = arith.constant 0 : index
    %c0_384 = arith.constant 0 : index
    %c0_385 = arith.constant 0 : index
    %c0_386 = arith.constant 0 : index
    %1113 = vector.load %arg5[%c0_383, %c0_384, %c0_385, %c0_386] : memref<1x4x16x128xf32, #tpu.memory_space<vmem>>, vector<1x1x16x128xf32>
    %1114 = vector.shape_cast %1113 : vector<1x1x16x128xf32> to vector<16x128xf32>
    %1115 = vector.shape_cast %1046 : vector<16x128xf32> to vector<1x1x16x128xf32>
    tpu.vector_store %arg5[%c0_383, %c0_384, %c0_385, %c0_386], %1115 {strides = array<i32>} : memref<1x4x16x128xf32, #tpu.memory_space<vmem>>, vector<1x1x16x128xf32>,
    %c0_387 = arith.constant 0 : index
    %c1_388 = arith.constant 1 : index
    %c0_389 = arith.constant 0 : index
    %c0_390 = arith.constant 0 : index
    %1116 = vector.load %arg5[%c0_387, %c1_388, %c0_389, %c0_390] : memref<1x4x16x128xf32, #tpu.memory_space<vmem>>, vector<1x1x16x128xf32>
    %1117 = vector.shape_cast %1116 : vector<1x1x16x128xf32> to vector<16x128xf32>
    %1118 = vector.shape_cast %1068 : vector<16x128xf32> to vector<1x1x16x128xf32>
    tpu.vector_store %arg5[%c0_387, %c1_388, %c0_389, %c0_390], %1118 {strides = array<i32>} : memref<1x4x16x128xf32, #tpu.memory_space<vmem>>, vector<1x1x16x128xf32>,
    %c0_391 = arith.constant 0 : index
    %c2_392 = arith.constant 2 : index
    %c0_393 = arith.constant 0 : index
    %c0_394 = arith.constant 0 : index
    %1119 = vector.load %arg5[%c0_391, %c2_392, %c0_393, %c0_394] : memref<1x4x16x128xf32, #tpu.memory_space<vmem>>, vector<1x1x16x128xf32>
    %1120 = vector.shape_cast %1119 : vector<1x1x16x128xf32> to vector<16x128xf32>
    %1121 = vector.shape_cast %1090 : vector<16x128xf32> to vector<1x1x16x128xf32>
    tpu.vector_store %arg5[%c0_391, %c2_392, %c0_393, %c0_394], %1121 {strides = array<i32>} : memref<1x4x16x128xf32, #tpu.memory_space<vmem>>, vector<1x1x16x128xf32>,
    %c0_395 = arith.constant 0 : index
    %c3_396 = arith.constant 3 : index
    %c0_397 = arith.constant 0 : index
    %c0_398 = arith.constant 0 : index
    %1122 = vector.load %arg5[%c0_395, %c3_396, %c0_397, %c0_398] : memref<1x4x16x128xf32, #tpu.memory_space<vmem>>, vector<1x1x16x128xf32>
    %1123 = vector.shape_cast %1122 : vector<1x1x16x128xf32> to vector<16x128xf32>
    %1124 = vector.shape_cast %1112 : vector<16x128xf32> to vector<1x1x16x128xf32>
    tpu.vector_store %arg5[%c0_395, %c3_396, %c0_397, %c0_398], %1124 {strides = array<i32>} : memref<1x4x16x128xf32, #tpu.memory_space<vmem>>, vector<1x1x16x128xf32>,
    return
  }
  func.func @transform_0(%arg0: i32, %arg1: i32, %arg2: i32) -> i32 {
    %c0_i32 = arith.constant 0 : i32
    %c0_i32_0 = arith.constant 0 : i32
    return %c0_i32 : i32
  }
  func.func @transform_1(%arg0: i32, %arg1: i32, %arg2: i32) -> (i32, i32, i32, i32, i32) {
    %c0_i32 = arith.constant 0 : i32
    %c0_i32_0 = arith.constant 0 : i32
    %c0_i32_1 = arith.constant 0 : i32
    %c0_i32_2 = arith.constant 0 : i32
    return %arg0, %arg1, %c0_i32, %c0_i32_0, %c0_i32_1 : i32, i32, i32, i32, i32
  }
  func.func @transform_2(%arg0: i32, %arg1: i32, %arg2: i32) -> (i32, i32, i32, i32) {
    %c0_i32 = arith.constant 0 : i32
    %c0_i32_0 = arith.constant 0 : i32
    return %arg0, %arg2, %arg1, %c0_i32 : i32, i32, i32, i32
  }
}

</mosaic_0001>

<llo_original>
// kernel: tpu_custom_call.1
$region0: #{tpu_custom_call.1}
  #allocation0 [shape = 'u32[]', space=smem, size = 0x4, offset = 0x4, fixed_abs, tag = 'smem constant byte address 0x4 - core index']
  #allocation1 [shape = 'u32[144,128]{1,0:T(1,128)}', space=vmem, size = 0x12000, scoped, tag = 'internal scratch']
  %s0 = inlined_call_operand.vmem [shape: f32[144], index: 0, kind: input, shape index: {}]
  %s1 = inlined_call_operand.vmem [shape: f32[2,1,4,18,130], index: 1, kind: input, shape index: {}]
  %s2 = inlined_call_operand.hbm [shape: f32[2,4,16,128], index: 2, kind: output, shape index: {}]
  %s3 = sld [smem:[#allocation0]]
  $region45: #{tpu_custom_call.1} parent=0
    _
  %s5 = ssub.s32 1, %s3
  %s6 = scalar_select 0, %s5, %s3
  $region1: #{tpu_custom_call.1} parent=0
    #allocation2 [shape = 'u8[1024]{0}', space=smem, size = 0x400, scoped, tag = 'input window, operand 0, single buffered']
    #allocation3 [shape = 's32[2]{0}', space=sflag, size = 0x8, scoped, tag = 'scoped memory for tpu_custom_call.1']
    #allocation4 [shape = 's32[2]{0}', space=sflag, size = 0x8, scoped, tag = 'scoped memory for tpu_custom_call.1']
    #allocation5 [shape = 'u8[65536]{0}', space=vmem, size = 0x10000, scoped, tag = 'output window, operand 0']
    %7 = vsyncpa [#allocation4], 0
    %8 = vsyncpa [#allocation3], 0
    %s9 = scalar_lea.sflag [#allocation3], 1
    %10 = vsyncpa %s9, 0
    loop: start=0, step=1, limit=4
    $region2: #{tpu_custom_call.1} parent=1 // loop_pre_header
      _
    $region3: #{tpu_custom_call.1} parent=1 // loop_header
      %s12 = sphi 0, %s16
      %p13 = scmp.ge.s32.totalorder %s12, 4
      %s19 = sphi 0, %s38
      %s20 = sphi 0, %s34
      %s21 = sphi 0, %s30
      %s22 = sphi 0, %s19
      %s23 = sphi 0, %s20
      %s24 = sphi 0, %s21
      %s25 = sphi 0, %s22
      %s26 = sphi 0, %s23
      %s27 = sphi 0, %s24
      %s39 = sphi 0, %s39
      %s41 = sphi 0, %s39
      %s42 = sphi 0, %s41
      %s56 = sphi 0, %s42
      %s64 = sphi 0, %s66
      %s67 = sphi 0, %s64
      %s68 = sphi 0, %s67
      %s84 = sphi 0, %s68
      %s94 = sphi 0, %s96
      %s97 = sphi 0, %s94
      %s98 = sphi 0, %s97
      %s114 = sphi 0, %s98
    $region4: #{tpu_custom_call.1} parent=1 // loop_header_branch
      %15 = sbr.rel (%p13) target = $region8
    $region5: #{tpu_custom_call.1} parent=1 // loop_body
      %s17 = ssub.s32 %s12, 1
      %s18 = ssub.s32 %s12, 2
      %s28 = sadd.s32 1, %s21
      %p29 = scmp.ge.s32.totalorder %s28, 1
      %s30 = scalar_select %p29, 0, %s28
      %s31 = sadd.s32 1, %s20
      %s32 = scalar_select %p29, %s31, %s20
      %p33 = scmp.ge.s32.totalorder %s32, 1
      %s34 = scalar_select %p33, 0, %s32
      %s35 = sadd.s32 1, %s19
      %s36 = scalar_select %p33, %s35, %s19
      %p37 = scmp.ge.s32.totalorder %s36, 2
      %s38 = scalar_select %p37, 0, %s36
      %s40 = sadd.s32 %s39, 1
      %p43 = scmp.eq.s32.totalorder %s12, 1
      %p44 = scmp.ne.s32.totalorder %s39, %s41
      %p45 = scmp.eq.s32.totalorder %s12, 0
      %p46 = por %p44, %p45
      %p47 = scmp.ne.s32.totalorder %s39, %s41
      %p48 = scmp.eq.s32.totalorder %s17, 1
      %p49 = por %p47, %p48
      %p50 = scmp.ne.s32.totalorder %s41, %s42
      %p51 = scmp.eq.s32.totalorder %s17, 0
      %p52 = por %p50, %p51
      %p53 = scmp.ne.s32.totalorder %s41, %s42
      %p54 = scmp.eq.s32.totalorder %s18, 1
      %p55 = por %p53, %p54
      %p57 = scmp.ne.s32.totalorder %s42, %s56
      %p58 = scmp.eq.s32.totalorder %s18, 0
      %p59 = por %p57, %p58
      %s60 = ssub.s32 %s19, %s38
      %s61 = ssub.s32 %s20, %s34
      %s62 = sor.u32 %s60, %s61
      %p63 = scmp.eq.s32.totalorder %s62, 0
      %s65 = sadd.s32 %s64, 1
      %s66 = scalar_select %p63, %s64, %s65
      %p69 = pneg %p63
      %p70 = scmp.eq.s32.totalorder %s12, 1
      %p71 = por %p69, %p70
      %p72 = scmp.ne.s32.totalorder %s64, %s67
      %p73 = scmp.eq.s32.totalorder %s12, 0
      %p74 = por %p72, %p73
      %p75 = scmp.ne.s32.totalorder %s64, %s67
      %p76 = scmp.eq.s32.totalorder %s17, 1
      %p77 = por %p75, %p76
      %p78 = scmp.ne.s32.totalorder %s67, %s68
      %p79 = scmp.eq.s32.totalorder %s17, 0
      %p80 = por %p78, %p79
      %p81 = scmp.ne.s32.totalorder %s67, %s68
      %p82 = scmp.eq.s32.totalorder %s18, 1
      %p83 = por %p81, %p82
      %p85 = scmp.ne.s32.totalorder %s68, %s84
      %p86 = scmp.eq.s32.totalorder %s18, 0
      %p87 = por %p85, %p86
      %s88 = ssub.s32 %s19, %s38
      %s89 = ssub.s32 %s21, %s30
      %s90 = sor.u32 %s88, %s89
      %s91 = ssub.s32 %s20, %s34
      %s92 = sor.u32 %s90, %s91
      %p93 = scmp.eq.s32.totalorder %s92, 0
      %s95 = sadd.s32 %s94, 1
      %s96 = scalar_select %p93, %s94, %s95
      %p99 = pneg %p93
      %p100 = scmp.eq.s32.totalorder %s12, 1
      %p101 = por %p99, %p100
      %p102 = scmp.ne.s32.totalorder %s94, %s97
      %p103 = scmp.eq.s32.totalorder %s12, 0
      %p104 = por %p102, %p103
      %p105 = scmp.ne.s32.totalorder %s94, %s97
      %p106 = scmp.eq.s32.totalorder %s17, 1
      %p107 = por %p105, %p106
      %p108 = scmp.ne.s32.totalorder %s97, %s98
      %p109 = scmp.eq.s32.totalorder %s17, 0
      %p110 = por %p108, %p109
      %p111 = scmp.ne.s32.totalorder %s97, %s98
      %p112 = scmp.eq.s32.totalorder %s18, 1
      %p113 = por %p111, %p112
      %p115 = scmp.ne.s32.totalorder %s98, %s114
      %p116 = scmp.eq.s32.totalorder %s18, 0
      %p117 = por %p115, %p116
      %p118 = scmp.le.s32.totalorder 1, %s12
      %p119 = scmp.lt.s32.totalorder %s12, 3
      %p120 = pnand %p118, %p119
      %p121 = pneg %p120
      // Predicated region
      $region9: #{tpu_custom_call.1} parent=5 // pred_check
        _
      $region10: #{tpu_custom_call.1} parent=5 // pred_check_branch
        %123 = sbr.rel (%p120) target = $region12
      $region11: #{tpu_custom_call.1} parent=5 // pred_region
        %s124 = ssub.s32 %s12, 1
        // Predicated region
        $region13: #{tpu_custom_call.1} parent=11 // pred_check
          %p125 = pneg %p52
        $region14: #{tpu_custom_call.1} parent=11 // pred_check_branch
          %127 = sbr.rel (%p125) target = $region16
        $region15: #{tpu_custom_call.1} parent=11 // pred_region
          %s129 = ssub.s32 32, 32
          %130 = vsyncadd [#allocation4], %s129
          %s132 = sshll.u32 %s0, 4
          %s133 = int_to_ptr.vmem [resolvable:$true] %s132
          %135 = dma.vmem_to_smem %s133, 32, [#allocation2], [#allocation4]
        $region16: #{tpu_custom_call.1} parent=11 // pred_fallthru
          _
      $region12: #{tpu_custom_call.1} parent=5 // pred_fallthru
        _
      %p136 = scmp.lt.s32.totalorder %s12, 2
      // Predicated region
      $region17: #{tpu_custom_call.1} parent=5 // pred_check
        %p137 = pneg %p136
      $region18: #{tpu_custom_call.1} parent=5 // pred_check_branch
        %139 = sbr.rel (%p137) target = $region20
      $region19: #{tpu_custom_call.1} parent=5 // pred_region
        // Predicated region
        $region21: #{tpu_custom_call.1} parent=19 // pred_check
          %p140 = pneg %p74
        $region22: #{tpu_custom_call.1} parent=19 // pred_check_branch
          %142 = sbr.rel (%p140) target = $region24
        $region23: #{tpu_custom_call.1} parent=19 // pred_region
          %p143 = scmp.lt.s32.totalorder %s19, 1
          %s144 = scalar_select %p143, %s19, 1
          %p145 = scmp.lt.s32.totalorder %s20, 0
          %s146 = scalar_select %p145, %s20, 0
          %s147 = smul.addr %s146, 24
          %s148 = smul.addr %s144, 24
          %s149 = sadd.s32 %s147, %s148
          %s150 = smul.addr %s149, 8
          %s151 = scalar_lea.vmem %s1, %s150
        $region24: #{tpu_custom_call.1} parent=19 // pred_fallthru
          _
      $region20: #{tpu_custom_call.1} parent=5 // pred_fallthru
        _
      %p152 = scmp.le.s32.totalorder 1, %s12
      %p153 = scmp.lt.s32.totalorder %s12, 3
      %p154 = pnand %p152, %p153
      %p155 = pneg %p154
      // Predicated region
      $region25: #{tpu_custom_call.1} parent=5 // pred_check
        _
      $region26: #{tpu_custom_call.1} parent=5 // pred_check_branch
        %157 = sbr.rel (%p154) target = $region28
      $region27: #{tpu_custom_call.1} parent=5 // pred_region
        %s158 = ssub.s32 %s12, 1
        // Predicated region
        $region29: #{tpu_custom_call.1} parent=27 // pred_check
          %p159 = pneg %p52
        $region30: #{tpu_custom_call.1} parent=27 // pred_check_branch
          %161 = sbr.rel (%p159) target = $region32
        $region31: #{tpu_custom_call.1} parent=27 // pred_region
          %162 = dma.done [#allocation4], 32
        $region32: #{tpu_custom_call.1} parent=27 // pred_fallthru
          _
        %163 = sfence
        %p164 = pneg %p52
        %p165 = pneg %p49
        %p166 = scmp.lt.s32.totalorder %s22, 1
        %s167 = scalar_select %p166, %s22, 1
        %p168 = scmp.lt.s32.totalorder %s23, 0
        %s169 = scalar_select %p168, %s23, 0
        %s170 = smul.addr %s169, 24
        %s171 = smul.addr %s167, 24
        %s172 = sadd.s32 %s170, %s171
        %s173 = smul.addr %s172, 8
        %s174 = scalar_lea.vmem %s1, %s173
        %p175 = pneg %p80
        %p176 = pneg %p77
        %p177 = pneg %p110
        %p178 = pneg %p107
        %s179 = sand.u32 %s97, 1
        %s180 = scalar_lea.sflag [#allocation3], %s179
        %s181 = sand.u32 %s97, 1
        %s182 = smul.addr %s181, 64
        %s183 = scalar_lea.vmem [#allocation5], %s182
        %p184 = scmp.lt.s32.totalorder %s22, 1
        %s185 = scalar_select %p184, %s22, 1
        %p186 = scmp.lt.s32.totalorder %s23, 0
        %s187 = scalar_select %p186, %s23, 0
        %s188 = smul.addr %s187, 24
        %s189 = smul.addr %s185, 24
        %s190 = sadd.s32 %s188, %s189
        %s191 = smul.addr %s190, 8
        %s192 = scalar_lea.vmem %s1, %s191
        %s193 = smul.u32 4, %s24
        %s194 = smul.u32 2, %s23
        %s195 = smul.u32 %s24, 4
        %v196 = vld [vmem:[%s192] sm:$0xff]
        %v197 = vld [vmem:[%s192 + $0x8] sm:$0xff]
        %v198 = vld [vmem:[%s192 + $0x10] sm:$0xff]
        %v199 = vld [vmem:[%s192 + $0x18] sm:$0xff]
        %s200 = smul.u32 %s24, 144
        %s201 = sld [smem:[#allocation2 + %s200]]
        %v202 = vstv %s201
        %v203 = vmul.f32 %v202, %v196
        %v204 = vmul.f32 %v202, %v198
        %s205 = sadd.s32 %s200, 1
        %s206 = sld [smem:[#allocation2 + %s205]]
        %v207 = vstv %s206
        %v208 = vmul.f32 %v207, %v196
        %v209 = vmul.f32 %v207, %v197
        %v210 = vmul.f32 %v207, %v198
        %v211 = vmul.f32 %v207, %v199
        %216 = vrot.lane.b32.xlu0 %v208, 127
        %v217 = vpop.permute.xlu0 %216
        %218 = vrot.lane.b32.xlu0 %v209, 127
        %v219 = vpop.permute.xlu0 %218
        %220 = vrot.lane.b32.xlu0 %v210, 127
        %v221 = vpop.permute.xlu0 %220
        %222 = vrot.lane.b32.xlu0 %v211, 127
        %v223 = vpop.permute.xlu0 %222
        %vm224 = vcmask 1039360
        %v225 = vsel %vm224, %v217, %v219
        %v226 = vsel %vm224, %v221, %v223
        %v229 = vadd.f32 %v203, %v225
        %v230 = vadd.f32 %v204, %v226
        %s231 = sadd.s32 %s200, 2
        %s232 = sld [smem:[#allocation2 + %s231]]
        %v233 = vstv %s232
        %v234 = vmul.f32 %v233, %v196
        %v235 = vmul.f32 %v233, %v197
        %v236 = vmul.f32 %v233, %v198
        %v237 = vmul.f32 %v233, %v199
        %242 = vrot.lane.b32.xlu0 %v234, 126
        %v243 = vpop.permute.xlu0 %242
        %244 = vrot.lane.b32.xlu0 %v235, 126
        %v245 = vpop.permute.xlu0 %244
        %246 = vrot.lane.b32.xlu0 %v236, 126
        %v247 = vpop.permute.xlu0 %246
        %248 = vrot.lane.b32.xlu0 %v237, 126
        %v249 = vpop.permute.xlu0 %248
        %vm250 = vcmask 1031168
        %v251 = vsel %vm250, %v243, %v245
        %v252 = vsel %vm250, %v247, %v249
        %v255 = vadd.f32 %v229, %v251
        %v256 = vadd.f32 %v230, %v252
        %s257 = sadd.s32 %s195, 1
        %s258 = smul.u32 %s257, 36
        %s259 = sld [smem:[#allocation2 + %s258]]
        %v260 = vstv %s259
        %v261 = vmul.f32 %v260, %v196
        %v262 = vmul.f32 %v260, %v198
        %s263 = sadd.s32 %s258, 1
        %s264 = sld [smem:[#allocation2 + %s263]]
        %v265 = vstv %s264
        %v266 = vmul.f32 %v265, %v196
        %v267 = vmul.f32 %v265, %v197
        %v268 = vmul.f32 %v265, %v198
        %v269 = vmul.f32 %v265, %v199
        %274 = vrot.lane.b32.xlu0 %v266, 127
        %v275 = vpop.permute.xlu0 %274
        %276 = vrot.lane.b32.xlu0 %v267, 127
        %v277 = vpop.permute.xlu0 %276
        %278 = vrot.lane.b32.xlu0 %v268, 127
        %v279 = vpop.permute.xlu0 %278
        %280 = vrot.lane.b32.xlu0 %v269, 127
        %v281 = vpop.permute.xlu0 %280
        %v282 = vsel %vm224, %v275, %v277
        %v283 = vsel %vm224, %v279, %v281
        %v286 = vadd.f32 %v261, %v282
        %v287 = vadd.f32 %v262, %v283
        %s288 = sadd.s32 %s258, 2
        %s289 = sld [smem:[#allocation2 + %s288]]
        %v290 = vstv %s289
        %v291 = vmul.f32 %v290, %v196
        %v292 = vmul.f32 %v290, %v197
        %v293 = vmul.f32 %v290, %v198
        %v294 = vmul.f32 %v290, %v199
        %299 = vrot.lane.b32.xlu0 %v291, 126
        %v300 = vpop.permute.xlu0 %299
        %301 = vrot.lane.b32.xlu0 %v292, 126
        %v302 = vpop.permute.xlu0 %301
        %303 = vrot.lane.b32.xlu0 %v293, 126
        %v304 = vpop.permute.xlu0 %303
        %305 = vrot.lane.b32.xlu0 %v294, 126
        %v306 = vpop.permute.xlu0 %305
        %v307 = vsel %vm250, %v300, %v302
        %v308 = vsel %vm250, %v304, %v306
        %v311 = vadd.f32 %v286, %v307
        %v312 = vadd.f32 %v287, %v308
        %s313 = sadd.s32 %s195, 2
        %s314 = smul.u32 %s313, 36
        %s315 = sld [smem:[#allocation2 + %s314]]
        %v316 = vstv %s315
        %v317 = vmul.f32 %v316, %v196
        %v318 = vmul.f32 %v316, %v198
        %s319 = sadd.s32 %s314, 1
        %s320 = sld [smem:[#allocation2 + %s319]]
        %v321 = vstv %s320
        %v322 = vmul.f32 %v321, %v196
        %v323 = vmul.f32 %v321, %v197
        %v324 = vmul.f32 %v321, %v198
        %v325 = vmul.f32 %v321, %v199
        %330 = vrot.lane.b32.xlu0 %v322, 127
        %v331 = vpop.permute.xlu0 %330
        %332 = vrot.lane.b32.xlu0 %v323, 127
        %v333 = vpop.permute.xlu0 %332
        %334 = vrot.lane.b32.xlu0 %v324, 127
        %v335 = vpop.permute.xlu0 %334
        %336 = vrot.lane.b32.xlu0 %v325, 127
        %v337 = vpop.permute.xlu0 %336
        %v338 = vsel %vm224, %v331, %v333
        %v339 = vsel %vm224, %v335, %v337
        %v342 = vadd.f32 %v317, %v338
        %v343 = vadd.f32 %v318, %v339
        %s344 = sadd.s32 %s314, 2
        %s345 = sld [smem:[#allocation2 + %s344]]
        %v346 = vstv %s345
        %v347 = vmul.f32 %v346, %v196
        %v348 = vmul.f32 %v346, %v197
        %v349 = vmul.f32 %v346, %v198
        %v350 = vmul.f32 %v346, %v199
        %355 = vrot.lane.b32.xlu0 %v347, 126
        %v356 = vpop.permute.xlu0 %355
        %357 = vrot.lane.b32.xlu0 %v348, 126
        %v358 = vpop.permute.xlu0 %357
        %359 = vrot.lane.b32.xlu0 %v349, 126
        %v360 = vpop.permute.xlu0 %359
        %361 = vrot.lane.b32.xlu0 %v350, 126
        %v362 = vpop.permute.xlu0 %361
        %v363 = vsel %vm250, %v356, %v358
        %v364 = vsel %vm250, %v360, %v362
        %v367 = vadd.f32 %v342, %v363
        %v368 = vadd.f32 %v343, %v364
        %s369 = sadd.s32 %s195, 3
        %s370 = smul.u32 %s369, 36
        %s371 = sld [smem:[#allocation2 + %s370]]
        %v372 = vstv %s371
        %v373 = vmul.f32 %v372, %v196
        %v374 = vmul.f32 %v372, %v198
        %s375 = sadd.s32 %s370, 1
        %s376 = sld [smem:[#allocation2 + %s375]]
        %v377 = vstv %s376
        %v378 = vmul.f32 %v377, %v196
        %v379 = vmul.f32 %v377, %v197
        %v380 = vmul.f32 %v377, %v198
        %v381 = vmul.f32 %v377, %v199
        %386 = vrot.lane.b32.xlu0 %v378, 127
        %v387 = vpop.permute.xlu0 %386
        %388 = vrot.lane.b32.xlu0 %v379, 127
        %v389 = vpop.permute.xlu0 %388
        %390 = vrot.lane.b32.xlu0 %v380, 127
        %v391 = vpop.permute.xlu0 %390
        %392 = vrot.lane.b32.xlu0 %v381, 127
        %v393 = vpop.permute.xlu0 %392
        %v394 = vsel %vm224, %v387, %v389
        %v395 = vsel %vm224, %v391, %v393
        %v398 = vadd.f32 %v373, %v394
        %v399 = vadd.f32 %v374, %v395
        %s400 = sadd.s32 %s370, 2
        %s401 = sld [smem:[#allocation2 + %s400]]
        %v402 = vstv %s401
        %v403 = vmul.f32 %v402, %v196
        %v404 = vmul.f32 %v402, %v197
        %v405 = vmul.f32 %v402, %v198
        %v406 = vmul.f32 %v402, %v199
        %411 = vrot.lane.b32.xlu0 %v403, 126
        %v412 = vpop.permute.xlu0 %411
        %413 = vrot.lane.b32.xlu0 %v404, 126
        %v414 = vpop.permute.xlu0 %413
        %415 = vrot.lane.b32.xlu0 %v405, 126
        %v416 = vpop.permute.xlu0 %415
        %417 = vrot.lane.b32.xlu0 %v406, 126
        %v418 = vpop.permute.xlu0 %417
        %v419 = vsel %vm250, %v412, %v414
        %v420 = vsel %vm250, %v416, %v418
        %v423 = vadd.f32 %v398, %v419
        %v424 = vadd.f32 %v399, %v420
        %s425 = scalar_lea.vmem %s192, 48
        %v426 = vld [vmem:[%s425] sm:$0xff]
        %v427 = vld [vmem:[%s425 + $0x8] sm:$0xff]
        %v428 = vld [vmem:[%s425 + $0x10] sm:$0xff]
        %v429 = vld [vmem:[%s425 + $0x18] sm:$0xff]
        %s430 = sadd.s32 %s200, 9
        %s431 = sld [smem:[#allocation2 + %s430]]
        %v432 = vstv %s431
        %v433 = vmul.f32 %v432, %v426
        %v434 = vmul.f32 %v432, %v428
        %v435 = vadd.f32 %v255, %v433
        %v436 = vadd.f32 %v256, %v434
        %s437 = sadd.s32 %s200, 10
        %s438 = sld [smem:[#allocation2 + %s437]]
        %v439 = vstv %s438
        %v440 = vmul.f32 %v439, %v426
        %v441 = vmul.f32 %v439, %v427
        %v442 = vmul.f32 %v439, %v428
        %v443 = vmul.f32 %v439, %v429
        %448 = vrot.lane.b32.xlu0 %v440, 127
        %v449 = vpop.permute.xlu0 %448
        %450 = vrot.lane.b32.xlu0 %v441, 127
        %v451 = vpop.permute.xlu0 %450
        %452 = vrot.lane.b32.xlu0 %v442, 127
        %v453 = vpop.permute.xlu0 %452
        %454 = vrot.lane.b32.xlu0 %v443, 127
        %v455 = vpop.permute.xlu0 %454
        %v456 = vsel %vm224, %v449, %v451
        %v457 = vsel %vm224, %v453, %v455
        %v460 = vadd.f32 %v435, %v456
        %v461 = vadd.f32 %v436, %v457
        %s462 = sadd.s32 %s200, 11
        %s463 = sld [smem:[#allocation2 + %s462]]
        %v464 = vstv %s463
        %v465 = vmul.f32 %v464, %v426
        %v466 = vmul.f32 %v464, %v427
        %v467 = vmul.f32 %v464, %v428
        %v468 = vmul.f32 %v464, %v429
        %473 = vrot.lane.b32.xlu0 %v465, 126
        %v474 = vpop.permute.xlu0 %473
        %475 = vrot.lane.b32.xlu0 %v466, 126
        %v476 = vpop.permute.xlu0 %475
        %477 = vrot.lane.b32.xlu0 %v467, 126
        %v478 = vpop.permute.xlu0 %477
        %479 = vrot.lane.b32.xlu0 %v468, 126
        %v480 = vpop.permute.xlu0 %479
        %v481 = vsel %vm250, %v474, %v476
        %v482 = vsel %vm250, %v478, %v480
        %v485 = vadd.f32 %v460, %v481
        %v486 = vadd.f32 %v461, %v482
        %s487 = sadd.s32 %s258, 9
        %s488 = sld [smem:[#allocation2 + %s487]]
        %v489 = vstv %s488
        %v490 = vmul.f32 %v489, %v426
        %v491 = vmul.f32 %v489, %v428
        %v492 = vadd.f32 %v311, %v490
        %v493 = vadd.f32 %v312, %v491
        %s494 = sadd.s32 %s258, 10
        %s495 = sld [smem:[#allocation2 + %s494]]
        %v496 = vstv %s495
        %v497 = vmul.f32 %v496, %v426
        %v498 = vmul.f32 %v496, %v427
        %v499 = vmul.f32 %v496, %v428
        %v500 = vmul.f32 %v496, %v429
        %505 = vrot.lane.b32.xlu0 %v497, 127
        %v506 = vpop.permute.xlu0 %505
        %507 = vrot.lane.b32.xlu0 %v498, 127
        %v508 = vpop.permute.xlu0 %507
        %509 = vrot.lane.b32.xlu0 %v499, 127
        %v510 = vpop.permute.xlu0 %509
        %511 = vrot.lane.b32.xlu0 %v500, 127
        %v512 = vpop.permute.xlu0 %511
        %v513 = vsel %vm224, %v506, %v508
        %v514 = vsel %vm224, %v510, %v512
        %v517 = vadd.f32 %v492, %v513
        %v518 = vadd.f32 %v493, %v514
        %s519 = sadd.s32 %s258, 11
        %s520 = sld [smem:[#allocation2 + %s519]]
        %v521 = vstv %s520
        %v522 = vmul.f32 %v521, %v426
        %v523 = vmul.f32 %v521, %v427
        %v524 = vmul.f32 %v521, %v428
        %v525 = vmul.f32 %v521, %v429
        %530 = vrot.lane.b32.xlu0 %v522, 126
        %v531 = vpop.permute.xlu0 %530
        %532 = vrot.lane.b32.xlu0 %v523, 126
        %v533 = vpop.permute.xlu0 %532
        %534 = vrot.lane.b32.xlu0 %v524, 126
        %v535 = vpop.permute.xlu0 %534
        %536 = vrot.lane.b32.xlu0 %v525, 126
        %v537 = vpop.permute.xlu0 %536
        %v538 = vsel %vm250, %v531, %v533
        %v539 = vsel %vm250, %v535, %v537
        %v542 = vadd.f32 %v517, %v538
        %v543 = vadd.f32 %v518, %v539
        %s544 = sadd.s32 %s314, 9
        %s545 = sld [smem:[#allocation2 + %s544]]
        %v546 = vstv %s545
        %v547 = vmul.f32 %v546, %v426
        %v548 = vmul.f32 %v546, %v428
        %v549 = vadd.f32 %v367, %v547
        %v550 = vadd.f32 %v368, %v548
        %s551 = sadd.s32 %s314, 10
        %s552 = sld [smem:[#allocation2 + %s551]]
        %v553 = vstv %s552
        %v554 = vmul.f32 %v553, %v426
        %v555 = vmul.f32 %v553, %v427
        %v556 = vmul.f32 %v553, %v428
        %v557 = vmul.f32 %v553, %v429
        %562 = vrot.lane.b32.xlu0 %v554, 127
        %v563 = vpop.permute.xlu0 %562
        %564 = vrot.lane.b32.xlu0 %v555, 127
        %v565 = vpop.permute.xlu0 %564
        %566 = vrot.lane.b32.xlu0 %v556, 127
        %v567 = vpop.permute.xlu0 %566
        %568 = vrot.lane.b32.xlu0 %v557, 127
        %v569 = vpop.permute.xlu0 %568
        %v570 = vsel %vm224, %v563, %v565
        %v571 = vsel %vm224, %v567, %v569
        %v574 = vadd.f32 %v549, %v570
        %v575 = vadd.f32 %v550, %v571
        %s576 = sadd.s32 %s314, 11
        %s577 = sld [smem:[#allocation2 + %s576]]
        %v578 = vstv %s577
        %v579 = vmul.f32 %v578, %v426
        %v580 = vmul.f32 %v578, %v427
        %v581 = vmul.f32 %v578, %v428
        %v582 = vmul.f32 %v578, %v429
        %587 = vrot.lane.b32.xlu0 %v579, 126
        %v588 = vpop.permute.xlu0 %587
        %589 = vrot.lane.b32.xlu0 %v580, 126
        %v590 = vpop.permute.xlu0 %589
        %591 = vrot.lane.b32.xlu0 %v581, 126
        %v592 = vpop.permute.xlu0 %591
        %593 = vrot.lane.b32.xlu0 %v582, 126
        %v594 = vpop.permute.xlu0 %593
        %v595 = vsel %vm250, %v588, %v590
        %v596 = vsel %vm250, %v592, %v594
        %v599 = vadd.f32 %v574, %v595
        %v600 = vadd.f32 %v575, %v596
        %s601 = sadd.s32 %s370, 9
        %s602 = sld [smem:[#allocation2 + %s601]]
        %v603 = vstv %s602
        %v604 = vmul.f32 %v603, %v426
        %v605 = vmul.f32 %v603, %v428
        %v606 = vadd.f32 %v423, %v604
        %v607 = vadd.f32 %v424, %v605
        %s608 = sadd.s32 %s370, 10
        %s609 = sld [smem:[#allocation2 + %s608]]
        %v610 = vstv %s609
        %v611 = vmul.f32 %v610, %v426
        %v612 = vmul.f32 %v610, %v427
        %v613 = vmul.f32 %v610, %v428
        %v614 = vmul.f32 %v610, %v429
        %619 = vrot.lane.b32.xlu0 %v611, 127
        %v620 = vpop.permute.xlu0 %619
        %621 = vrot.lane.b32.xlu0 %v612, 127
        %v622 = vpop.permute.xlu0 %621
        %623 = vrot.lane.b32.xlu0 %v613, 127
        %v624 = vpop.permute.xlu0 %623
        %625 = vrot.lane.b32.xlu0 %v614, 127
        %v626 = vpop.permute.xlu0 %625
        %v627 = vsel %vm224, %v620, %v622
        %v628 = vsel %vm224, %v624, %v626
        %v631 = vadd.f32 %v606, %v627
        %v632 = vadd.f32 %v607, %v628
        %s633 = sadd.s32 %s370, 11
        %s634 = sld [smem:[#allocation2 + %s633]]
        %v635 = vstv %s634
        %v636 = vmul.f32 %v635, %v426
        %v637 = vmul.f32 %v635, %v427
        %v638 = vmul.f32 %v635, %v428
        %v639 = vmul.f32 %v635, %v429
        %644 = vrot.lane.b32.xlu0 %v636, 126
        %v645 = vpop.permute.xlu0 %644
        %646 = vrot.lane.b32.xlu0 %v637, 126
        %v647 = vpop.permute.xlu0 %646
        %648 = vrot.lane.b32.xlu0 %v638, 126
        %v649 = vpop.permute.xlu0 %648
        %650 = vrot.lane.b32.xlu0 %v639, 126
        %v651 = vpop.permute.xlu0 %650
        %v652 = vsel %vm250, %v645, %v647
        %v653 = vsel %vm250, %v649, %v651
        %v656 = vadd.f32 %v631, %v652
        %v657 = vadd.f32 %v632, %v653
        %s658 = scalar_lea.vmem %s192, 96
        %v659 = vld [vmem:[%s658] sm:$0xff]
        %v660 = vld [vmem:[%s658 + $0x8] sm:$0xff]
        %v661 = vld [vmem:[%s658 + $0x10] sm:$0xff]
        %v662 = vld [vmem:[%s658 + $0x18] sm:$0xff]
        %s663 = sadd.s32 %s200, 18
        %s664 = sld [smem:[#allocation2 + %s663]]
        %v665 = vstv %s664
        %v666 = vmul.f32 %v665, %v659
        %v667 = vmul.f32 %v665, %v661
        %v668 = vadd.f32 %v485, %v666
        %v669 = vadd.f32 %v486, %v667
        %s670 = sadd.s32 %s200, 19
        %s671 = sld [smem:[#allocation2 + %s670]]
        %v672 = vstv %s671
        %v673 = vmul.f32 %v672, %v659
        %v674 = vmul.f32 %v672, %v660
        %v675 = vmul.f32 %v672, %v661
        %v676 = vmul.f32 %v672, %v662
        %681 = vrot.lane.b32.xlu0 %v673, 127
        %v682 = vpop.permute.xlu0 %681
        %683 = vrot.lane.b32.xlu0 %v674, 127
        %v684 = vpop.permute.xlu0 %683
        %685 = vrot.lane.b32.xlu0 %v675, 127
        %v686 = vpop.permute.xlu0 %685
        %687 = vrot.lane.b32.xlu0 %v676, 127
        %v688 = vpop.permute.xlu0 %687
        %v689 = vsel %vm224, %v682, %v684
        %v690 = vsel %vm224, %v686, %v688
        %v693 = vadd.f32 %v668, %v689
        %v694 = vadd.f32 %v669, %v690
        %s695 = sadd.s32 %s200, 20
        %s696 = sld [smem:[#allocation2 + %s695]]
        %v697 = vstv %s696
        %v698 = vmul.f32 %v697, %v659
        %v699 = vmul.f32 %v697, %v660
        %v700 = vmul.f32 %v697, %v661
        %v701 = vmul.f32 %v697, %v662
        %706 = vrot.lane.b32.xlu0 %v698, 126
        %v707 = vpop.permute.xlu0 %706
        %708 = vrot.lane.b32.xlu0 %v699, 126
        %v709 = vpop.permute.xlu0 %708
        %710 = vrot.lane.b32.xlu0 %v700, 126
        %v711 = vpop.permute.xlu0 %710
        %712 = vrot.lane.b32.xlu0 %v701, 126
        %v713 = vpop.permute.xlu0 %712
        %v714 = vsel %vm250, %v707, %v709
        %v715 = vsel %vm250, %v711, %v713
        %v718 = vadd.f32 %v693, %v714
        %v719 = vadd.f32 %v694, %v715
        %s720 = sadd.s32 %s258, 18
        %s721 = sld [smem:[#allocation2 + %s720]]
        %v722 = vstv %s721
        %v723 = vmul.f32 %v722, %v659
        %v724 = vmul.f32 %v722, %v661
        %v725 = vadd.f32 %v542, %v723
        %v726 = vadd.f32 %v543, %v724
        %s727 = sadd.s32 %s258, 19
        %s728 = sld [smem:[#allocation2 + %s727]]
        %v729 = vstv %s728
        %v730 = vmul.f32 %v729, %v659
        %v731 = vmul.f32 %v729, %v660
        %v732 = vmul.f32 %v729, %v661
        %v733 = vmul.f32 %v729, %v662
        %738 = vrot.lane.b32.xlu0 %v730, 127
        %v739 = vpop.permute.xlu0 %738
        %740 = vrot.lane.b32.xlu0 %v731, 127
        %v741 = vpop.permute.xlu0 %740
        %742 = vrot.lane.b32.xlu0 %v732, 127
        %v743 = vpop.permute.xlu0 %742
        %744 = vrot.lane.b32.xlu0 %v733, 127
        %v745 = vpop.permute.xlu0 %744
        %v746 = vsel %vm224, %v739, %v741
        %v747 = vsel %vm224, %v743, %v745
        %v750 = vadd.f32 %v725, %v746
        %v751 = vadd.f32 %v726, %v747
        %s752 = sadd.s32 %s258, 20
        %s753 = sld [smem:[#allocation2 + %s752]]
        %v754 = vstv %s753
        %v755 = vmul.f32 %v754, %v659
        %v756 = vmul.f32 %v754, %v660
        %v757 = vmul.f32 %v754, %v661
        %v758 = vmul.f32 %v754, %v662
        %763 = vrot.lane.b32.xlu0 %v755, 126
        %v764 = vpop.permute.xlu0 %763
        %765 = vrot.lane.b32.xlu0 %v756, 126
        %v766 = vpop.permute.xlu0 %765
        %767 = vrot.lane.b32.xlu0 %v757, 126
        %v768 = vpop.permute.xlu0 %767
        %769 = vrot.lane.b32.xlu0 %v758, 126
        %v770 = vpop.permute.xlu0 %769
        %v771 = vsel %vm250, %v764, %v766
        %v772 = vsel %vm250, %v768, %v770
        %v775 = vadd.f32 %v750, %v771
        %v776 = vadd.f32 %v751, %v772
        %s777 = sadd.s32 %s314, 18
        %s778 = sld [smem:[#allocation2 + %s777]]
        %v779 = vstv %s778
        %v780 = vmul.f32 %v779, %v659
        %v781 = vmul.f32 %v779, %v661
        %v782 = vadd.f32 %v599, %v780
        %v783 = vadd.f32 %v600, %v781
        %s784 = sadd.s32 %s314, 19
        %s785 = sld [smem:[#allocation2 + %s784]]
        %v786 = vstv %s785
        %v787 = vmul.f32 %v786, %v659
        %v788 = vmul.f32 %v786, %v660
        %v789 = vmul.f32 %v786, %v661
        %v790 = vmul.f32 %v786, %v662
        %795 = vrot.lane.b32.xlu0 %v787, 127
        %v796 = vpop.permute.xlu0 %795
        %797 = vrot.lane.b32.xlu0 %v788, 127
        %v798 = vpop.permute.xlu0 %797
        %799 = vrot.lane.b32.xlu0 %v789, 127
        %v800 = vpop.permute.xlu0 %799
        %801 = vrot.lane.b32.xlu0 %v790, 127
        %v802 = vpop.permute.xlu0 %801
        %v803 = vsel %vm224, %v796, %v798
        %v804 = vsel %vm224, %v800, %v802
        %v807 = vadd.f32 %v782, %v803
        %v808 = vadd.f32 %v783, %v804
        %s809 = sadd.s32 %s314, 20
        %s810 = sld [smem:[#allocation2 + %s809]]
        %v811 = vstv %s810
        %v812 = vmul.f32 %v811, %v659
        %v813 = vmul.f32 %v811, %v660
        %v814 = vmul.f32 %v811, %v661
        %v815 = vmul.f32 %v811, %v662
        %820 = vrot.lane.b32.xlu0 %v812, 126
        %v821 = vpop.permute.xlu0 %820
        %822 = vrot.lane.b32.xlu0 %v813, 126
        %v823 = vpop.permute.xlu0 %822
        %824 = vrot.lane.b32.xlu0 %v814, 126
        %v825 = vpop.permute.xlu0 %824
        %826 = vrot.lane.b32.xlu0 %v815, 126
        %v827 = vpop.permute.xlu0 %826
        %v828 = vsel %vm250, %v821, %v823
        %v829 = vsel %vm250, %v825, %v827
        %v832 = vadd.f32 %v807, %v828
        %v833 = vadd.f32 %v808, %v829
        %s834 = sadd.s32 %s370, 18
        %s835 = sld [smem:[#allocation2 + %s834]]
        %v836 = vstv %s835
        %v837 = vmul.f32 %v836, %v659
        %v838 = vmul.f32 %v836, %v661
        %v839 = vadd.f32 %v656, %v837
        %v840 = vadd.f32 %v657, %v838
        %s841 = sadd.s32 %s370, 19
        %s842 = sld [smem:[#allocation2 + %s841]]
        %v843 = vstv %s842
        %v844 = vmul.f32 %v843, %v659
        %v845 = vmul.f32 %v843, %v660
        %v846 = vmul.f32 %v843, %v661
        %v847 = vmul.f32 %v843, %v662
        %852 = vrot.lane.b32.xlu0 %v844, 127
        %v853 = vpop.permute.xlu0 %852
        %854 = vrot.lane.b32.xlu0 %v845, 127
        %v855 = vpop.permute.xlu0 %854
        %856 = vrot.lane.b32.xlu0 %v846, 127
        %v857 = vpop.permute.xlu0 %856
        %858 = vrot.lane.b32.xlu0 %v847, 127
        %v859 = vpop.permute.xlu0 %858
        %v860 = vsel %vm224, %v853, %v855
        %v861 = vsel %vm224, %v857, %v859
        %v864 = vadd.f32 %v839, %v860
        %v865 = vadd.f32 %v840, %v861
        %s866 = sadd.s32 %s370, 20
        %s867 = sld [smem:[#allocation2 + %s866]]
        %v868 = vstv %s867
        %v869 = vmul.f32 %v868, %v659
        %v870 = vmul.f32 %v868, %v660
        %v871 = vmul.f32 %v868, %v661
        %v872 = vmul.f32 %v868, %v662
        %877 = vrot.lane.b32.xlu0 %v869, 126
        %v878 = vpop.permute.xlu0 %877
        %879 = vrot.lane.b32.xlu0 %v870, 126
        %v880 = vpop.permute.xlu0 %879
        %881 = vrot.lane.b32.xlu0 %v871, 126
        %v882 = vpop.permute.xlu0 %881
        %883 = vrot.lane.b32.xlu0 %v872, 126
        %v884 = vpop.permute.xlu0 %883
        %v885 = vsel %vm250, %v878, %v880
        %v886 = vsel %vm250, %v882, %v884
        %v889 = vadd.f32 %v864, %v885
        %v890 = vadd.f32 %v865, %v886
        %s891 = scalar_lea.vmem %s192, 144
        %v892 = vld [vmem:[%s891] sm:$0xff]
        %v893 = vld [vmem:[%s891 + $0x8] sm:$0xff]
        %v894 = vld [vmem:[%s891 + $0x10] sm:$0xff]
        %v895 = vld [vmem:[%s891 + $0x18] sm:$0xff]
        %s896 = sadd.s32 %s200, 27
        %s897 = sld [smem:[#allocation2 + %s896]]
        %v898 = vstv %s897
        %v899 = vmul.f32 %v898, %v892
        %v900 = vmul.f32 %v898, %v894
        %v901 = vadd.f32 %v718, %v899
        %v902 = vadd.f32 %v719, %v900
        %s903 = sadd.s32 %s200, 28
        %s904 = sld [smem:[#allocation2 + %s903]]
        %v905 = vstv %s904
        %v906 = vmul.f32 %v905, %v892
        %v907 = vmul.f32 %v905, %v893
        %v908 = vmul.f32 %v905, %v894
        %v909 = vmul.f32 %v905, %v895
        %914 = vrot.lane.b32.xlu0 %v906, 127
        %v915 = vpop.permute.xlu0 %914
        %916 = vrot.lane.b32.xlu0 %v907, 127
        %v917 = vpop.permute.xlu0 %916
        %918 = vrot.lane.b32.xlu0 %v908, 127
        %v919 = vpop.permute.xlu0 %918
        %920 = vrot.lane.b32.xlu0 %v909, 127
        %v921 = vpop.permute.xlu0 %920
        %v922 = vsel %vm224, %v915, %v917
        %v923 = vsel %vm224, %v919, %v921
        %v926 = vadd.f32 %v901, %v922
        %v927 = vadd.f32 %v902, %v923
        %s928 = sadd.s32 %s200, 29
        %s929 = sld [smem:[#allocation2 + %s928]]
        %v930 = vstv %s929
        %v931 = vmul.f32 %v930, %v892
        %v932 = vmul.f32 %v930, %v893
        %v933 = vmul.f32 %v930, %v894
        %v934 = vmul.f32 %v930, %v895
        %939 = vrot.lane.b32.xlu0 %v931, 126
        %v940 = vpop.permute.xlu0 %939
        %941 = vrot.lane.b32.xlu0 %v932, 126
        %v942 = vpop.permute.xlu0 %941
        %943 = vrot.lane.b32.xlu0 %v933, 126
        %v944 = vpop.permute.xlu0 %943
        %945 = vrot.lane.b32.xlu0 %v934, 126
        %v946 = vpop.permute.xlu0 %945
        %v947 = vsel %vm250, %v940, %v942
        %v948 = vsel %vm250, %v944, %v946
        %v951 = vadd.f32 %v926, %v947
        %v952 = vadd.f32 %v927, %v948
        %s953 = sadd.s32 %s258, 27
        %s954 = sld [smem:[#allocation2 + %s953]]
        %v955 = vstv %s954
        %v956 = vmul.f32 %v955, %v892
        %v957 = vmul.f32 %v955, %v894
        %v958 = vadd.f32 %v775, %v956
        %v959 = vadd.f32 %v776, %v957
        %s960 = sadd.s32 %s258, 28
        %s961 = sld [smem:[#allocation2 + %s960]]
        %v962 = vstv %s961
        %v963 = vmul.f32 %v962, %v892
        %v964 = vmul.f32 %v962, %v893
        %v965 = vmul.f32 %v962, %v894
        %v966 = vmul.f32 %v962, %v895
        %971 = vrot.lane.b32.xlu0 %v963, 127
        %v972 = vpop.permute.xlu0 %971
        %973 = vrot.lane.b32.xlu0 %v964, 127
        %v974 = vpop.permute.xlu0 %973
        %975 = vrot.lane.b32.xlu0 %v965, 127
        %v976 = vpop.permute.xlu0 %975
        %977 = vrot.lane.b32.xlu0 %v966, 127
        %v978 = vpop.permute.xlu0 %977
        %v979 = vsel %vm224, %v972, %v974
        %v980 = vsel %vm224, %v976, %v978
        %v983 = vadd.f32 %v958, %v979
        %v984 = vadd.f32 %v959, %v980
        %s985 = sadd.s32 %s258, 29
        %s986 = sld [smem:[#allocation2 + %s985]]
        %v987 = vstv %s986
        %v988 = vmul.f32 %v987, %v892
        %v989 = vmul.f32 %v987, %v893
        %v990 = vmul.f32 %v987, %v894
        %v991 = vmul.f32 %v987, %v895
        %996 = vrot.lane.b32.xlu0 %v988, 126
        %v997 = vpop.permute.xlu0 %996
        %998 = vrot.lane.b32.xlu0 %v989, 126
        %v999 = vpop.permute.xlu0 %998
        %1000 = vrot.lane.b32.xlu0 %v990, 126
        %v1001 = vpop.permute.xlu0 %1000
        %1002 = vrot.lane.b32.xlu0 %v991, 126
        %v1003 = vpop.permute.xlu0 %1002
        %v1004 = vsel %vm250, %v997, %v999
        %v1005 = vsel %vm250, %v1001, %v1003
        %v1008 = vadd.f32 %v983, %v1004
        %v1009 = vadd.f32 %v984, %v1005
        %s1010 = sadd.s32 %s314, 27
        %s1011 = sld [smem:[#allocation2 + %s1010]]
        %v1012 = vstv %s1011
        %v1013 = vmul.f32 %v1012, %v892
        %v1014 = vmul.f32 %v1012, %v894
        %v1015 = vadd.f32 %v832, %v1013
        %v1016 = vadd.f32 %v833, %v1014
        %s1017 = sadd.s32 %s314, 28
        %s1018 = sld [smem:[#allocation2 + %s1017]]
        %v1019 = vstv %s1018
        %v1020 = vmul.f32 %v1019, %v892
        %v1021 = vmul.f32 %v1019, %v893
        %v1022 = vmul.f32 %v1019, %v894
        %v1023 = vmul.f32 %v1019, %v895
        %1028 = vrot.lane.b32.xlu0 %v1020, 127
        %v1029 = vpop.permute.xlu0 %1028
        %1030 = vrot.lane.b32.xlu0 %v1021, 127
        %v1031 = vpop.permute.xlu0 %1030
        %1032 = vrot.lane.b32.xlu0 %v1022, 127
        %v1033 = vpop.permute.xlu0 %1032
        %1034 = vrot.lane.b32.xlu0 %v1023, 127
        %v1035 = vpop.permute.xlu0 %1034
        %v1036 = vsel %vm224, %v1029, %v1031
        %v1037 = vsel %vm224, %v1033, %v1035
        %v1040 = vadd.f32 %v1015, %v1036
        %v1041 = vadd.f32 %v1016, %v1037
        %s1042 = sadd.s32 %s314, 29
        %s1043 = sld [smem:[#allocation2 + %s1042]]
        %v1044 = vstv %s1043
        %v1045 = vmul.f32 %v1044, %v892
        %v1046 = vmul.f32 %v1044, %v893
        %v1047 = vmul.f32 %v1044, %v894
        %v1048 = vmul.f32 %v1044, %v895
        %1053 = vrot.lane.b32.xlu0 %v1045, 126
        %v1054 = vpop.permute.xlu0 %1053
        %1055 = vrot.lane.b32.xlu0 %v1046, 126
        %v1056 = vpop.permute.xlu0 %1055
        %1057 = vrot.lane.b32.xlu0 %v1047, 126
        %v1058 = vpop.permute.xlu0 %1057
        %1059 = vrot.lane.b32.xlu0 %v1048, 126
        %v1060 = vpop.permute.xlu0 %1059
        %v1061 = vsel %vm250, %v1054, %v1056
        %v1062 = vsel %vm250, %v1058, %v1060
        %v1065 = vadd.f32 %v1040, %v1061
        %v1066 = vadd.f32 %v1041, %v1062
        %s1067 = sadd.s32 %s370, 27
        %s1068 = sld [smem:[#allocation2 + %s1067]]
        %v1069 = vstv %s1068
        %v1070 = vmul.f32 %v1069, %v892
        %v1071 = vmul.f32 %v1069, %v894
        %v1072 = vadd.f32 %v889, %v1070
        %v1073 = vadd.f32 %v890, %v1071
        %s1074 = sadd.s32 %s370, 28
        %s1075 = sld [smem:[#allocation2 + %s1074]]
        %v1076 = vstv %s1075
        %v1077 = vmul.f32 %v1076, %v892
        %v1078 = vmul.f32 %v1076, %v893
        %v1079 = vmul.f32 %v1076, %v894
        %v1080 = vmul.f32 %v1076, %v895
        %1085 = vrot.lane.b32.xlu0 %v1077, 127
        %v1086 = vpop.permute.xlu0 %1085
        %1087 = vrot.lane.b32.xlu0 %v1078, 127
        %v1088 = vpop.permute.xlu0 %1087
        %1089 = vrot.lane.b32.xlu0 %v1079, 127
        %v1090 = vpop.permute.xlu0 %1089
        %1091 = vrot.lane.b32.xlu0 %v1080, 127
        %v1092 = vpop.permute.xlu0 %1091
        %v1093 = vsel %vm224, %v1086, %v1088
        %v1094 = vsel %vm224, %v1090, %v1092
        %v1097 = vadd.f32 %v1072, %v1093
        %v1098 = vadd.f32 %v1073, %v1094
        %s1099 = sadd.s32 %s370, 29
        %s1100 = sld [smem:[#allocation2 + %s1099]]
        %v1101 = vstv %s1100
        %v1102 = vmul.f32 %v1101, %v892
        %v1103 = vmul.f32 %v1101, %v893
        %v1104 = vmul.f32 %v1101, %v894
        %v1105 = vmul.f32 %v1101, %v895
        %1110 = vrot.lane.b32.xlu0 %v1102, 126
        %v1111 = vpop.permute.xlu0 %1110
        %1112 = vrot.lane.b32.xlu0 %v1103, 126
        %v1113 = vpop.permute.xlu0 %1112
        %1114 = vrot.lane.b32.xlu0 %v1104, 126
        %v1115 = vpop.permute.xlu0 %1114
        %1116 = vrot.lane.b32.xlu0 %v1105, 126
        %v1117 = vpop.permute.xlu0 %1116
        %v1118 = vsel %vm250, %v1111, %v1113
        %v1119 = vsel %vm250, %v1115, %v1117
        %v1122 = vadd.f32 %v1097, %v1118
        %v1123 = vadd.f32 %v1098, %v1119
        %v1124 = vld [vmem:[%s192] sm:$0xfe]
        %v1125 = vld [vmem:[%s192 + $0x8] sm:$0xfe]
        %v1126 = vld [vmem:[%s192 + $0x10] sm:$0xff]
        %v1127 = vld [vmem:[%s192 + $0x18] sm:$0xff]
        %v1128 = vld [vmem:[%s192 + $0x20] sm:$0x1]
        %v1129 = vld [vmem:[%s192 + $0x28] sm:$0x1]
        %s1130 = sadd.s32 %s200, 3
        %s1131 = sld [smem:[#allocation2 + %s1130]]
        %v1132 = vstv %s1131
        %v1133 = vmul.f32 %v1132, %v1124
        %v1134 = vmul.f32 %v1132, %v1126
        %v1135 = vmul.f32 %v1132, %v1128
        %vm1139 = vcmask 1046528
        %v1140 = vrot.slane %v1133, 1
        %v1141 = vrot.slane %v1134, 1
        %v1142 = vsel %vm1139, %v1140, %v1141
        %v1143 = vrot.slane %v1135, 1
        %v1144 = vsel %vm1139, %v1141, %v1143
        %v1147 = vadd.f32 %v951, %v1142
        %v1148 = vadd.f32 %v952, %v1144
        %s1149 = sadd.s32 %s200, 4
        %s1150 = sld [smem:[#allocation2 + %s1149]]
        %v1151 = vstv %s1150
        %v1152 = vmul.f32 %v1151, %v1124
        %v1153 = vmul.f32 %v1151, %v1125
        %v1154 = vmul.f32 %v1151, %v1126
        %v1155 = vmul.f32 %v1151, %v1127
        %v1156 = vmul.f32 %v1151, %v1128
        %v1157 = vmul.f32 %v1151, %v1129
        %v1164 = vrot.slane %v1152, 1
        %v1165 = vrot.slane %v1154, 1
        %v1166 = vsel %vm1139, %v1164, %v1165
        %v1167 = vrot.slane %v1153, 1
        %v1168 = vrot.slane %v1155, 1
        %v1169 = vsel %vm1139, %v1167, %v1168
        %v1170 = vrot.slane %v1156, 1
        %v1171 = vsel %vm1139, %v1165, %v1170
        %v1172 = vrot.slane %v1157, 1
        %v1173 = vsel %vm1139, %v1168, %v1172
        %1174 = vrot.lane.b32.xlu0 %v1166, 127
        %v1175 = vpop.permute.xlu0 %1174
        %1176 = vrot.lane.b32.xlu0 %v1169, 127
        %v1177 = vpop.permute.xlu0 %1176
        %1178 = vrot.lane.b32.xlu0 %v1171, 127
        %v1179 = vpop.permute.xlu0 %1178
        %1180 = vrot.lane.b32.xlu0 %v1173, 127
        %v1181 = vpop.permute.xlu0 %1180
        %v1182 = vsel %vm224, %v1175, %v1177
        %v1183 = vsel %vm224, %v1179, %v1181
        %v1186 = vadd.f32 %v1147, %v1182
        %v1187 = vadd.f32 %v1148, %v1183
        %s1188 = sadd.s32 %s200, 5
        %s1189 = sld [smem:[#allocation2 + %s1188]]
        %v1190 = vstv %s1189
        %v1191 = vmul.f32 %v1190, %v1124
        %v1192 = vmul.f32 %v1190, %v1125
        %v1193 = vmul.f32 %v1190, %v1126
        %v1194 = vmul.f32 %v1190, %v1127
        %v1195 = vmul.f32 %v1190, %v1128
        %v1196 = vmul.f32 %v1190, %v1129
        %v1203 = vrot.slane %v1191, 1
        %v1204 = vrot.slane %v1193, 1
        %v1205 = vsel %vm1139, %v1203, %v1204
        %v1206 = vrot.slane %v1192, 1
        %v1207 = vrot.slane %v1194, 1
        %v1208 = vsel %vm1139, %v1206, %v1207
        %v1209 = vrot.slane %v1195, 1
        %v1210 = vsel %vm1139, %v1204, %v1209
        %v1211 = vrot.slane %v1196, 1
        %v1212 = vsel %vm1139, %v1207, %v1211
        %1213 = vrot.lane.b32.xlu0 %v1205, 126
        %v1214 = vpop.permute.xlu0 %1213
        %1215 = vrot.lane.b32.xlu0 %v1208, 126
        %v1216 = vpop.permute.xlu0 %1215
        %1217 = vrot.lane.b32.xlu0 %v1210, 126
        %v1218 = vpop.permute.xlu0 %1217
        %1219 = vrot.lane.b32.xlu0 %v1212, 126
        %v1220 = vpop.permute.xlu0 %1219
        %v1221 = vsel %vm250, %v1214, %v1216
        %v1222 = vsel %vm250, %v1218, %v1220
        %v1225 = vadd.f32 %v1186, %v1221
        %v1226 = vadd.f32 %v1187, %v1222
        %s1227 = sadd.s32 %s258, 3
        %s1228 = sld [smem:[#allocation2 + %s1227]]
        %v1229 = vstv %s1228
        %v1230 = vmul.f32 %v1229, %v1124
        %v1231 = vmul.f32 %v1229, %v1126
        %v1232 = vmul.f32 %v1229, %v1128
        %v1236 = vrot.slane %v1230, 1
        %v1237 = vrot.slane %v1231, 1
        %v1238 = vsel %vm1139, %v1236, %v1237
        %v1239 = vrot.slane %v1232, 1
        %v1240 = vsel %vm1139, %v1237, %v1239
        %v1243 = vadd.f32 %v1008, %v1238
        %v1244 = vadd.f32 %v1009, %v1240
        %s1245 = sadd.s32 %s258, 4
        %s1246 = sld [smem:[#allocation2 + %s1245]]
        %v1247 = vstv %s1246
        %v1248 = vmul.f32 %v1247, %v1124
        %v1249 = vmul.f32 %v1247, %v1125
        %v1250 = vmul.f32 %v1247, %v1126
        %v1251 = vmul.f32 %v1247, %v1127
        %v1252 = vmul.f32 %v1247, %v1128
        %v1253 = vmul.f32 %v1247, %v1129
        %v1260 = vrot.slane %v1248, 1
        %v1261 = vrot.slane %v1250, 1
        %v1262 = vsel %vm1139, %v1260, %v1261
        %v1263 = vrot.slane %v1249, 1
        %v1264 = vrot.slane %v1251, 1
        %v1265 = vsel %vm1139, %v1263, %v1264
        %v1266 = vrot.slane %v1252, 1
        %v1267 = vsel %vm1139, %v1261, %v1266
        %v1268 = vrot.slane %v1253, 1
        %v1269 = vsel %vm1139, %v1264, %v1268
        %1270 = vrot.lane.b32.xlu0 %v1262, 127
        %v1271 = vpop.permute.xlu0 %1270
        %1272 = vrot.lane.b32.xlu0 %v1265, 127
        %v1273 = vpop.permute.xlu0 %1272
        %1274 = vrot.lane.b32.xlu0 %v1267, 127
        %v1275 = vpop.permute.xlu0 %1274
        %1276 = vrot.lane.b32.xlu0 %v1269, 127
        %v1277 = vpop.permute.xlu0 %1276
        %v1278 = vsel %vm224, %v1271, %v1273
        %v1279 = vsel %vm224, %v1275, %v1277
        %v1282 = vadd.f32 %v1243, %v1278
        %v1283 = vadd.f32 %v1244, %v1279
        %s1284 = sadd.s32 %s258, 5
        %s1285 = sld [smem:[#allocation2 + %s1284]]
        %v1286 = vstv %s1285
        %v1287 = vmul.f32 %v1286, %v1124
        %v1288 = vmul.f32 %v1286, %v1125
        %v1289 = vmul.f32 %v1286, %v1126
        %v1290 = vmul.f32 %v1286, %v1127
        %v1291 = vmul.f32 %v1286, %v1128
        %v1292 = vmul.f32 %v1286, %v1129
        %v1299 = vrot.slane %v1287, 1
        %v1300 = vrot.slane %v1289, 1
        %v1301 = vsel %vm1139, %v1299, %v1300
        %v1302 = vrot.slane %v1288, 1
        %v1303 = vrot.slane %v1290, 1
        %v1304 = vsel %vm1139, %v1302, %v1303
        %v1305 = vrot.slane %v1291, 1
        %v1306 = vsel %vm1139, %v1300, %v1305
        %v1307 = vrot.slane %v1292, 1
        %v1308 = vsel %vm1139, %v1303, %v1307
        %1309 = vrot.lane.b32.xlu0 %v1301, 126
        %v1310 = vpop.permute.xlu0 %1309
        %1311 = vrot.lane.b32.xlu0 %v1304, 126
        %v1312 = vpop.permute.xlu0 %1311
        %1313 = vrot.lane.b32.xlu0 %v1306, 126
        %v1314 = vpop.permute.xlu0 %1313
        %1315 = vrot.lane.b32.xlu0 %v1308, 126
        %v1316 = vpop.permute.xlu0 %1315
        %v1317 = vsel %vm250, %v1310, %v1312
        %v1318 = vsel %vm250, %v1314, %v1316
        %v1321 = vadd.f32 %v1282, %v1317
        %v1322 = vadd.f32 %v1283, %v1318
        %s1323 = sadd.s32 %s314, 3
        %s1324 = sld [smem:[#allocation2 + %s1323]]
        %v1325 = vstv %s1324
        %v1326 = vmul.f32 %v1325, %v1124
        %v1327 = vmul.f32 %v1325, %v1126
        %v1328 = vmul.f32 %v1325, %v1128
        %v1332 = vrot.slane %v1326, 1
        %v1333 = vrot.slane %v1327, 1
        %v1334 = vsel %vm1139, %v1332, %v1333
        %v1335 = vrot.slane %v1328, 1
        %v1336 = vsel %vm1139, %v1333, %v1335
        %v1339 = vadd.f32 %v1065, %v1334
        %v1340 = vadd.f32 %v1066, %v1336
        %s1341 = sadd.s32 %s314, 4
        %s1342 = sld [smem:[#allocation2 + %s1341]]
        %v1343 = vstv %s1342
        %v1344 = vmul.f32 %v1343, %v1124
        %v1345 = vmul.f32 %v1343, %v1125
        %v1346 = vmul.f32 %v1343, %v1126
        %v1347 = vmul.f32 %v1343, %v1127
        %v1348 = vmul.f32 %v1343, %v1128
        %v1349 = vmul.f32 %v1343, %v1129
        %v1356 = vrot.slane %v1344, 1
        %v1357 = vrot.slane %v1346, 1
        %v1358 = vsel %vm1139, %v1356, %v1357
        %v1359 = vrot.slane %v1345, 1
        %v1360 = vrot.slane %v1347, 1
        %v1361 = vsel %vm1139, %v1359, %v1360
        %v1362 = vrot.slane %v1348, 1
        %v1363 = vsel %vm1139, %v1357, %v1362
        %v1364 = vrot.slane %v1349, 1
        %v1365 = vsel %vm1139, %v1360, %v1364
        %1366 = vrot.lane.b32.xlu0 %v1358, 127
        %v1367 = vpop.permute.xlu0 %1366
        %1368 = vrot.lane.b32.xlu0 %v1361, 127
        %v1369 = vpop.permute.xlu0 %1368
        %1370 = vrot.lane.b32.xlu0 %v1363, 127
        %v1371 = vpop.permute.xlu0 %1370
        %1372 = vrot.lane.b32.xlu0 %v1365, 127
        %v1373 = vpop.permute.xlu0 %1372
        %v1374 = vsel %vm224, %v1367, %v1369
        %v1375 = vsel %vm224, %v1371, %v1373
        %v1378 = vadd.f32 %v1339, %v1374
        %v1379 = vadd.f32 %v1340, %v1375
        %s1380 = sadd.s32 %s314, 5
        %s1381 = sld [smem:[#allocation2 + %s1380]]
        %v1382 = vstv %s1381
        %v1383 = vmul.f32 %v1382, %v1124
        %v1384 = vmul.f32 %v1382, %v1125
        %v1385 = vmul.f32 %v1382, %v1126
        %v1386 = vmul.f32 %v1382, %v1127
        %v1387 = vmul.f32 %v1382, %v1128
        %v1388 = vmul.f32 %v1382, %v1129
        %v1395 = vrot.slane %v1383, 1
        %v1396 = vrot.slane %v1385, 1
        %v1397 = vsel %vm1139, %v1395, %v1396
        %v1398 = vrot.slane %v1384, 1
        %v1399 = vrot.slane %v1386, 1
        %v1400 = vsel %vm1139, %v1398, %v1399
        %v1401 = vrot.slane %v1387, 1
        %v1402 = vsel %vm1139, %v1396, %v1401
        %v1403 = vrot.slane %v1388, 1
        %v1404 = vsel %vm1139, %v1399, %v1403
        %1405 = vrot.lane.b32.xlu0 %v1397, 126
        %v1406 = vpop.permute.xlu0 %1405
        %1407 = vrot.lane.b32.xlu0 %v1400, 126
        %v1408 = vpop.permute.xlu0 %1407
        %1409 = vrot.lane.b32.xlu0 %v1402, 126
        %v1410 = vpop.permute.xlu0 %1409
        %1411 = vrot.lane.b32.xlu0 %v1404, 126
        %v1412 = vpop.permute.xlu0 %1411
        %v1413 = vsel %vm250, %v1406, %v1408
        %v1414 = vsel %vm250, %v1410, %v1412
        %v1417 = vadd.f32 %v1378, %v1413
        %v1418 = vadd.f32 %v1379, %v1414
        %s1419 = sadd.s32 %s370, 3
        %s1420 = sld [smem:[#allocation2 + %s1419]]
        %v1421 = vstv %s1420
        %v1422 = vmul.f32 %v1421, %v1124
        %v1423 = vmul.f32 %v1421, %v1126
        %v1424 = vmul.f32 %v1421, %v1128
        %v1428 = vrot.slane %v1422, 1
        %v1429 = vrot.slane %v1423, 1
        %v1430 = vsel %vm1139, %v1428, %v1429
        %v1431 = vrot.slane %v1424, 1
        %v1432 = vsel %vm1139, %v1429, %v1431
        %v1435 = vadd.f32 %v1122, %v1430
        %v1436 = vadd.f32 %v1123, %v1432
        %s1437 = sadd.s32 %s370, 4
        %s1438 = sld [smem:[#allocation2 + %s1437]]
        %v1439 = vstv %s1438
        %v1440 = vmul.f32 %v1439, %v1124
        %v1441 = vmul.f32 %v1439, %v1125
        %v1442 = vmul.f32 %v1439, %v1126
        %v1443 = vmul.f32 %v1439, %v1127
        %v1444 = vmul.f32 %v1439, %v1128
        %v1445 = vmul.f32 %v1439, %v1129
        %v1452 = vrot.slane %v1440, 1
        %v1453 = vrot.slane %v1442, 1
        %v1454 = vsel %vm1139, %v1452, %v1453
        %v1455 = vrot.slane %v1441, 1
        %v1456 = vrot.slane %v1443, 1
        %v1457 = vsel %vm1139, %v1455, %v1456
        %v1458 = vrot.slane %v1444, 1
        %v1459 = vsel %vm1139, %v1453, %v1458
        %v1460 = vrot.slane %v1445, 1
        %v1461 = vsel %vm1139, %v1456, %v1460
        %1462 = vrot.lane.b32.xlu0 %v1454, 127
        %v1463 = vpop.permute.xlu0 %1462
        %1464 = vrot.lane.b32.xlu0 %v1457, 127
        %v1465 = vpop.permute.xlu0 %1464
        %1466 = vrot.lane.b32.xlu0 %v1459, 127
        %v1467 = vpop.permute.xlu0 %1466
        %1468 = vrot.lane.b32.xlu0 %v1461, 127
        %v1469 = vpop.permute.xlu0 %1468
        %v1470 = vsel %vm224, %v1463, %v1465
        %v1471 = vsel %vm224, %v1467, %v1469
        %v1474 = vadd.f32 %v1435, %v1470
        %v1475 = vadd.f32 %v1436, %v1471
        %s1476 = sadd.s32 %s370, 5
        %s1477 = sld [smem:[#allocation2 + %s1476]]
        %v1478 = vstv %s1477
        %v1479 = vmul.f32 %v1478, %v1124
        %v1480 = vmul.f32 %v1478, %v1125
        %v1481 = vmul.f32 %v1478, %v1126
        %v1482 = vmul.f32 %v1478, %v1127
        %v1483 = vmul.f32 %v1478, %v1128
        %v1484 = vmul.f32 %v1478, %v1129
        %v1491 = vrot.slane %v1479, 1
        %v1492 = vrot.slane %v1481, 1
        %v1493 = vsel %vm1139, %v1491, %v1492
        %v1494 = vrot.slane %v1480, 1
        %v1495 = vrot.slane %v1482, 1
        %v1496 = vsel %vm1139, %v1494, %v1495
        %v1497 = vrot.slane %v1483, 1
        %v1498 = vsel %vm1139, %v1492, %v1497
        %v1499 = vrot.slane %v1484, 1
        %v1500 = vsel %vm1139, %v1495, %v1499
        %1501 = vrot.lane.b32.xlu0 %v1493, 126
        %v1502 = vpop.permute.xlu0 %1501
        %1503 = vrot.lane.b32.xlu0 %v1496, 126
        %v1504 = vpop.permute.xlu0 %1503
        %1505 = vrot.lane.b32.xlu0 %v1498, 126
        %v1506 = vpop.permute.xlu0 %1505
        %1507 = vrot.lane.b32.xlu0 %v1500, 126
        %v1508 = vpop.permute.xlu0 %1507
        %v1509 = vsel %vm250, %v1502, %v1504
        %v1510 = vsel %vm250, %v1506, %v1508
        %v1513 = vadd.f32 %v1474, %v1509
        %v1514 = vadd.f32 %v1475, %v1510
        %v1515 = vld [vmem:[%s425] sm:$0xfe]
        %v1516 = vld [vmem:[%s425 + $0x8] sm:$0xfe]
        %v1517 = vld [vmem:[%s425 + $0x10] sm:$0xff]
        %v1518 = vld [vmem:[%s425 + $0x18] sm:$0xff]
        %v1519 = vld [vmem:[%s425 + $0x20] sm:$0x1]
        %v1520 = vld [vmem:[%s425 + $0x28] sm:$0x1]
        %s1521 = sadd.s32 %s200, 12
        %s1522 = sld [smem:[#allocation2 + %s1521]]
        %v1523 = vstv %s1522
        %v1524 = vmul.f32 %v1523, %v1515
        %v1525 = vmul.f32 %v1523, %v1517
        %v1526 = vmul.f32 %v1523, %v1519
        %v1530 = vrot.slane %v1524, 1
        %v1531 = vrot.slane %v1525, 1
        %v1532 = vsel %vm1139, %v1530, %v1531
        %v1533 = vrot.slane %v1526, 1
        %v1534 = vsel %vm1139, %v1531, %v1533
        %v1537 = vadd.f32 %v1225, %v1532
        %v1538 = vadd.f32 %v1226, %v1534
        %s1539 = sadd.s32 %s200, 13
        %s1540 = sld [smem:[#allocation2 + %s1539]]
        %v1541 = vstv %s1540
        %v1542 = vmul.f32 %v1541, %v1515
        %v1543 = vmul.f32 %v1541, %v1516
        %v1544 = vmul.f32 %v1541, %v1517
        %v1545 = vmul.f32 %v1541, %v1518
        %v1546 = vmul.f32 %v1541, %v1519
        %v1547 = vmul.f32 %v1541, %v1520
        %v1554 = vrot.slane %v1542, 1
        %v1555 = vrot.slane %v1544, 1
        %v1556 = vsel %vm1139, %v1554, %v1555
        %v1557 = vrot.slane %v1543, 1
        %v1558 = vrot.slane %v1545, 1
        %v1559 = vsel %vm1139, %v1557, %v1558
        %v1560 = vrot.slane %v1546, 1
        %v1561 = vsel %vm1139, %v1555, %v1560
        %v1562 = vrot.slane %v1547, 1
        %v1563 = vsel %vm1139, %v1558, %v1562
        %1564 = vrot.lane.b32.xlu0 %v1556, 127
        %v1565 = vpop.permute.xlu0 %1564
        %1566 = vrot.lane.b32.xlu0 %v1559, 127
        %v1567 = vpop.permute.xlu0 %1566
        %1568 = vrot.lane.b32.xlu0 %v1561, 127
        %v1569 = vpop.permute.xlu0 %1568
        %1570 = vrot.lane.b32.xlu0 %v1563, 127
        %v1571 = vpop.permute.xlu0 %1570
        %v1572 = vsel %vm224, %v1565, %v1567
        %v1573 = vsel %vm224, %v1569, %v1571
        %v1576 = vadd.f32 %v1537, %v1572
        %v1577 = vadd.f32 %v1538, %v1573
        %s1578 = sadd.s32 %s200, 14
        %s1579 = sld [smem:[#allocation2 + %s1578]]
        %v1580 = vstv %s1579
        %v1581 = vmul.f32 %v1580, %v1515
        %v1582 = vmul.f32 %v1580, %v1516
        %v1583 = vmul.f32 %v1580, %v1517
        %v1584 = vmul.f32 %v1580, %v1518
        %v1585 = vmul.f32 %v1580, %v1519
        %v1586 = vmul.f32 %v1580, %v1520
        %v1593 = vrot.slane %v1581, 1
        %v1594 = vrot.slane %v1583, 1
        %v1595 = vsel %vm1139, %v1593, %v1594
        %v1596 = vrot.slane %v1582, 1
        %v1597 = vrot.slane %v1584, 1
        %v1598 = vsel %vm1139, %v1596, %v1597
        %v1599 = vrot.slane %v1585, 1
        %v1600 = vsel %vm1139, %v1594, %v1599
        %v1601 = vrot.slane %v1586, 1
        %v1602 = vsel %vm1139, %v1597, %v1601
        %1603 = vrot.lane.b32.xlu0 %v1595, 126
        %v1604 = vpop.permute.xlu0 %1603
        %1605 = vrot.lane.b32.xlu0 %v1598, 126
        %v1606 = vpop.permute.xlu0 %1605
        %1607 = vrot.lane.b32.xlu0 %v1600, 126
        %v1608 = vpop.permute.xlu0 %1607
        %1609 = vrot.lane.b32.xlu0 %v1602, 126
        %v1610 = vpop.permute.xlu0 %1609
        %v1611 = vsel %vm250, %v1604, %v1606
        %v1612 = vsel %vm250, %v1608, %v1610
        %v1615 = vadd.f32 %v1576, %v1611
        %v1616 = vadd.f32 %v1577, %v1612
        %s1617 = sadd.s32 %s258, 12
        %s1618 = sld [smem:[#allocation2 + %s1617]]
        %v1619 = vstv %s1618
        %v1620 = vmul.f32 %v1619, %v1515
        %v1621 = vmul.f32 %v1619, %v1517
        %v1622 = vmul.f32 %v1619, %v1519
        %v1626 = vrot.slane %v1620, 1
        %v1627 = vrot.slane %v1621, 1
        %v1628 = vsel %vm1139, %v1626, %v1627
        %v1629 = vrot.slane %v1622, 1
        %v1630 = vsel %vm1139, %v1627, %v1629
        %v1633 = vadd.f32 %v1321, %v1628
        %v1634 = vadd.f32 %v1322, %v1630
        %s1635 = sadd.s32 %s258, 13
        %s1636 = sld [smem:[#allocation2 + %s1635]]
        %v1637 = vstv %s1636
        %v1638 = vmul.f32 %v1637, %v1515
        %v1639 = vmul.f32 %v1637, %v1516
        %v1640 = vmul.f32 %v1637, %v1517
        %v1641 = vmul.f32 %v1637, %v1518
        %v1642 = vmul.f32 %v1637, %v1519
        %v1643 = vmul.f32 %v1637, %v1520
        %v1650 = vrot.slane %v1638, 1
        %v1651 = vrot.slane %v1640, 1
        %v1652 = vsel %vm1139, %v1650, %v1651
        %v1653 = vrot.slane %v1639, 1
        %v1654 = vrot.slane %v1641, 1
        %v1655 = vsel %vm1139, %v1653, %v1654
        %v1656 = vrot.slane %v1642, 1
        %v1657 = vsel %vm1139, %v1651, %v1656
        %v1658 = vrot.slane %v1643, 1
        %v1659 = vsel %vm1139, %v1654, %v1658
        %1660 = vrot.lane.b32.xlu0 %v1652, 127
        %v1661 = vpop.permute.xlu0 %1660
        %1662 = vrot.lane.b32.xlu0 %v1655, 127
        %v1663 = vpop.permute.xlu0 %1662
        %1664 = vrot.lane.b32.xlu0 %v1657, 127
        %v1665 = vpop.permute.xlu0 %1664
        %1666 = vrot.lane.b32.xlu0 %v1659, 127
        %v1667 = vpop.permute.xlu0 %1666
        %v1668 = vsel %vm224, %v1661, %v1663
        %v1669 = vsel %vm224, %v1665, %v1667
        %v1672 = vadd.f32 %v1633, %v1668
        %v1673 = vadd.f32 %v1634, %v1669
        %s1674 = sadd.s32 %s258, 14
        %s1675 = sld [smem:[#allocation2 + %s1674]]
        %v1676 = vstv %s1675
        %v1677 = vmul.f32 %v1676, %v1515
        %v1678 = vmul.f32 %v1676, %v1516
        %v1679 = vmul.f32 %v1676, %v1517
        %v1680 = vmul.f32 %v1676, %v1518
        %v1681 = vmul.f32 %v1676, %v1519
        %v1682 = vmul.f32 %v1676, %v1520
        %v1689 = vrot.slane %v1677, 1
        %v1690 = vrot.slane %v1679, 1
        %v1691 = vsel %vm1139, %v1689, %v1690
        %v1692 = vrot.slane %v1678, 1
        %v1693 = vrot.slane %v1680, 1
        %v1694 = vsel %vm1139, %v1692, %v1693
        %v1695 = vrot.slane %v1681, 1
        %v1696 = vsel %vm1139, %v1690, %v1695
        %v1697 = vrot.slane %v1682, 1
        %v1698 = vsel %vm1139, %v1693, %v1697
        %1699 = vrot.lane.b32.xlu0 %v1691, 126
        %v1700 = vpop.permute.xlu0 %1699
        %1701 = vrot.lane.b32.xlu0 %v1694, 126
        %v1702 = vpop.permute.xlu0 %1701
        %1703 = vrot.lane.b32.xlu0 %v1696, 126
        %v1704 = vpop.permute.xlu0 %1703
        %1705 = vrot.lane.b32.xlu0 %v1698, 126
        %v1706 = vpop.permute.xlu0 %1705
        %v1707 = vsel %vm250, %v1700, %v1702
        %v1708 = vsel %vm250, %v1704, %v1706
        %v1711 = vadd.f32 %v1672, %v1707
        %v1712 = vadd.f32 %v1673, %v1708
        %s1713 = sadd.s32 %s314, 12
        %s1714 = sld [smem:[#allocation2 + %s1713]]
        %v1715 = vstv %s1714
        %v1716 = vmul.f32 %v1715, %v1515
        %v1717 = vmul.f32 %v1715, %v1517
        %v1718 = vmul.f32 %v1715, %v1519
        %v1722 = vrot.slane %v1716, 1
        %v1723 = vrot.slane %v1717, 1
        %v1724 = vsel %vm1139, %v1722, %v1723
        %v1725 = vrot.slane %v1718, 1
        %v1726 = vsel %vm1139, %v1723, %v1725
        %v1729 = vadd.f32 %v1417, %v1724
        %v1730 = vadd.f32 %v1418, %v1726
        %s1731 = sadd.s32 %s314, 13
        %s1732 = sld [smem:[#allocation2 + %s1731]]
        %v1733 = vstv %s1732
        %v1734 = vmul.f32 %v1733, %v1515
        %v1735 = vmul.f32 %v1733, %v1516
        %v1736 = vmul.f32 %v1733, %v1517
        %v1737 = vmul.f32 %v1733, %v1518
        %v1738 = vmul.f32 %v1733, %v1519
        %v1739 = vmul.f32 %v1733, %v1520
        %v1746 = vrot.slane %v1734, 1
        %v1747 = vrot.slane %v1736, 1
        %v1748 = vsel %vm1139, %v1746, %v1747
        %v1749 = vrot.slane %v1735, 1
        %v1750 = vrot.slane %v1737, 1
        %v1751 = vsel %vm1139, %v1749, %v1750
        %v1752 = vrot.slane %v1738, 1
        %v1753 = vsel %vm1139, %v1747, %v1752
        %v1754 = vrot.slane %v1739, 1
        %v1755 = vsel %vm1139, %v1750, %v1754
        %1756 = vrot.lane.b32.xlu0 %v1748, 127
        %v1757 = vpop.permute.xlu0 %1756
        %1758 = vrot.lane.b32.xlu0 %v1751, 127
        %v1759 = vpop.permute.xlu0 %1758
        %1760 = vrot.lane.b32.xlu0 %v1753, 127
        %v1761 = vpop.permute.xlu0 %1760
        %1762 = vrot.lane.b32.xlu0 %v1755, 127
        %v1763 = vpop.permute.xlu0 %1762
        %v1764 = vsel %vm224, %v1757, %v1759
        %v1765 = vsel %vm224, %v1761, %v1763
        %v1768 = vadd.f32 %v1729, %v1764
        %v1769 = vadd.f32 %v1730, %v1765
        %s1770 = sadd.s32 %s314, 14
        %s1771 = sld [smem:[#allocation2 + %s1770]]
        %v1772 = vstv %s1771
        %v1773 = vmul.f32 %v1772, %v1515
        %v1774 = vmul.f32 %v1772, %v1516
        %v1775 = vmul.f32 %v1772, %v1517
        %v1776 = vmul.f32 %v1772, %v1518
        %v1777 = vmul.f32 %v1772, %v1519
        %v1778 = vmul.f32 %v1772, %v1520
        %v1785 = vrot.slane %v1773, 1
        %v1786 = vrot.slane %v1775, 1
        %v1787 = vsel %vm1139, %v1785, %v1786
        %v1788 = vrot.slane %v1774, 1
        %v1789 = vrot.slane %v1776, 1
        %v1790 = vsel %vm1139, %v1788, %v1789
        %v1791 = vrot.slane %v1777, 1
        %v1792 = vsel %vm1139, %v1786, %v1791
        %v1793 = vrot.slane %v1778, 1
        %v1794 = vsel %vm1139, %v1789, %v1793
        %1795 = vrot.lane.b32.xlu0 %v1787, 126
        %v1796 = vpop.permute.xlu0 %1795
        %1797 = vrot.lane.b32.xlu0 %v1790, 126
        %v1798 = vpop.permute.xlu0 %1797
        %1799 = vrot.lane.b32.xlu0 %v1792, 126
        %v1800 = vpop.permute.xlu0 %1799
        %1801 = vrot.lane.b32.xlu0 %v1794, 126
        %v1802 = vpop.permute.xlu0 %1801
        %v1803 = vsel %vm250, %v1796, %v1798
        %v1804 = vsel %vm250, %v1800, %v1802
        %v1807 = vadd.f32 %v1768, %v1803
        %v1808 = vadd.f32 %v1769, %v1804
        %s1809 = sadd.s32 %s370, 12
        %s1810 = sld [smem:[#allocation2 + %s1809]]
        %v1811 = vstv %s1810
        %v1812 = vmul.f32 %v1811, %v1515
        %v1813 = vmul.f32 %v1811, %v1517
        %v1814 = vmul.f32 %v1811, %v1519
        %v1818 = vrot.slane %v1812, 1
        %v1819 = vrot.slane %v1813, 1
        %v1820 = vsel %vm1139, %v1818, %v1819
        %v1821 = vrot.slane %v1814, 1
        %v1822 = vsel %vm1139, %v1819, %v1821
        %v1825 = vadd.f32 %v1513, %v1820
        %v1826 = vadd.f32 %v1514, %v1822
        %s1827 = sadd.s32 %s370, 13
        %s1828 = sld [smem:[#allocation2 + %s1827]]
        %v1829 = vstv %s1828
        %v1830 = vmul.f32 %v1829, %v1515
        %v1831 = vmul.f32 %v1829, %v1516
        %v1832 = vmul.f32 %v1829, %v1517
        %v1833 = vmul.f32 %v1829, %v1518
        %v1834 = vmul.f32 %v1829, %v1519
        %v1835 = vmul.f32 %v1829, %v1520
        %v1842 = vrot.slane %v1830, 1
        %v1843 = vrot.slane %v1832, 1
        %v1844 = vsel %vm1139, %v1842, %v1843
        %v1845 = vrot.slane %v1831, 1
        %v1846 = vrot.slane %v1833, 1
        %v1847 = vsel %vm1139, %v1845, %v1846
        %v1848 = vrot.slane %v1834, 1
        %v1849 = vsel %vm1139, %v1843, %v1848
        %v1850 = vrot.slane %v1835, 1
        %v1851 = vsel %vm1139, %v1846, %v1850
        %1852 = vrot.lane.b32.xlu0 %v1844, 127
        %v1853 = vpop.permute.xlu0 %1852
        %1854 = vrot.lane.b32.xlu0 %v1847, 127
        %v1855 = vpop.permute.xlu0 %1854
        %1856 = vrot.lane.b32.xlu0 %v1849, 127
        %v1857 = vpop.permute.xlu0 %1856
        %1858 = vrot.lane.b32.xlu0 %v1851, 127
        %v1859 = vpop.permute.xlu0 %1858
        %v1860 = vsel %vm224, %v1853, %v1855
        %v1861 = vsel %vm224, %v1857, %v1859
        %v1864 = vadd.f32 %v1825, %v1860
        %v1865 = vadd.f32 %v1826, %v1861
        %s1866 = sadd.s32 %s370, 14
        %s1867 = sld [smem:[#allocation2 + %s1866]]
        %v1868 = vstv %s1867
        %v1869 = vmul.f32 %v1868, %v1515
        %v1870 = vmul.f32 %v1868, %v1516
        %v1871 = vmul.f32 %v1868, %v1517
        %v1872 = vmul.f32 %v1868, %v1518
        %v1873 = vmul.f32 %v1868, %v1519
        %v1874 = vmul.f32 %v1868, %v1520
        %v1881 = vrot.slane %v1869, 1
        %v1882 = vrot.slane %v1871, 1
        %v1883 = vsel %vm1139, %v1881, %v1882
        %v1884 = vrot.slane %v1870, 1
        %v1885 = vrot.slane %v1872, 1
        %v1886 = vsel %vm1139, %v1884, %v1885
        %v1887 = vrot.slane %v1873, 1
        %v1888 = vsel %vm1139, %v1882, %v1887
        %v1889 = vrot.slane %v1874, 1
        %v1890 = vsel %vm1139, %v1885, %v1889
        %1891 = vrot.lane.b32.xlu0 %v1883, 126
        %v1892 = vpop.permute.xlu0 %1891
        %1893 = vrot.lane.b32.xlu0 %v1886, 126
        %v1894 = vpop.permute.xlu0 %1893
        %1895 = vrot.lane.b32.xlu0 %v1888, 126
        %v1896 = vpop.permute.xlu0 %1895
        %1897 = vrot.lane.b32.xlu0 %v1890, 126
        %v1898 = vpop.permute.xlu0 %1897
        %v1899 = vsel %vm250, %v1892, %v1894
        %v1900 = vsel %vm250, %v1896, %v1898
        %v1903 = vadd.f32 %v1864, %v1899
        %v1904 = vadd.f32 %v1865, %v1900
        %v1905 = vld [vmem:[%s658] sm:$0xfe]
        %v1906 = vld [vmem:[%s658 + $0x8] sm:$0xfe]
        %v1907 = vld [vmem:[%s658 + $0x10] sm:$0xff]
        %v1908 = vld [vmem:[%s658 + $0x18] sm:$0xff]
        %v1909 = vld [vmem:[%s658 + $0x20] sm:$0x1]
        %v1910 = vld [vmem:[%s658 + $0x28] sm:$0x1]
        %s1911 = sadd.s32 %s200, 21
        %s1912 = sld [smem:[#allocation2 + %s1911]]
        %v1913 = vstv %s1912
        %v1914 = vmul.f32 %v1913, %v1905
        %v1915 = vmul.f32 %v1913, %v1907
        %v1916 = vmul.f32 %v1913, %v1909
        %v1920 = vrot.slane %v1914, 1
        %v1921 = vrot.slane %v1915, 1
        %v1922 = vsel %vm1139, %v1920, %v1921
        %v1923 = vrot.slane %v1916, 1
        %v1924 = vsel %vm1139, %v1921, %v1923
        %v1927 = vadd.f32 %v1615, %v1922
        %v1928 = vadd.f32 %v1616, %v1924
        %s1929 = sadd.s32 %s200, 22
        %s1930 = sld [smem:[#allocation2 + %s1929]]
        %v1931 = vstv %s1930
        %v1932 = vmul.f32 %v1931, %v1905
        %v1933 = vmul.f32 %v1931, %v1906
        %v1934 = vmul.f32 %v1931, %v1907
        %v1935 = vmul.f32 %v1931, %v1908
        %v1936 = vmul.f32 %v1931, %v1909
        %v1937 = vmul.f32 %v1931, %v1910
        %v1944 = vrot.slane %v1932, 1
        %v1945 = vrot.slane %v1934, 1
        %v1946 = vsel %vm1139, %v1944, %v1945
        %v1947 = vrot.slane %v1933, 1
        %v1948 = vrot.slane %v1935, 1
        %v1949 = vsel %vm1139, %v1947, %v1948
        %v1950 = vrot.slane %v1936, 1
        %v1951 = vsel %vm1139, %v1945, %v1950
        %v1952 = vrot.slane %v1937, 1
        %v1953 = vsel %vm1139, %v1948, %v1952
        %1954 = vrot.lane.b32.xlu0 %v1946, 127
        %v1955 = vpop.permute.xlu0 %1954
        %1956 = vrot.lane.b32.xlu0 %v1949, 127
        %v1957 = vpop.permute.xlu0 %1956
        %1958 = vrot.lane.b32.xlu0 %v1951, 127
        %v1959 = vpop.permute.xlu0 %1958
        %1960 = vrot.lane.b32.xlu0 %v1953, 127
        %v1961 = vpop.permute.xlu0 %1960
        %v1962 = vsel %vm224, %v1955, %v1957
        %v1963 = vsel %vm224, %v1959, %v1961
        %v1966 = vadd.f32 %v1927, %v1962
        %v1967 = vadd.f32 %v1928, %v1963
        %s1968 = sadd.s32 %s200, 23
        %s1969 = sld [smem:[#allocation2 + %s1968]]
        %v1970 = vstv %s1969
        %v1971 = vmul.f32 %v1970, %v1905
        %v1972 = vmul.f32 %v1970, %v1906
        %v1973 = vmul.f32 %v1970, %v1907
        %v1974 = vmul.f32 %v1970, %v1908
        %v1975 = vmul.f32 %v1970, %v1909
        %v1976 = vmul.f32 %v1970, %v1910
        %v1983 = vrot.slane %v1971, 1
        %v1984 = vrot.slane %v1973, 1
        %v1985 = vsel %vm1139, %v1983, %v1984
        %v1986 = vrot.slane %v1972, 1
        %v1987 = vrot.slane %v1974, 1
        %v1988 = vsel %vm1139, %v1986, %v1987
        %v1989 = vrot.slane %v1975, 1
        %v1990 = vsel %vm1139, %v1984, %v1989
        %v1991 = vrot.slane %v1976, 1
        %v1992 = vsel %vm1139, %v1987, %v1991
        %1993 = vrot.lane.b32.xlu0 %v1985, 126
        %v1994 = vpop.permute.xlu0 %1993
        %1995 = vrot.lane.b32.xlu0 %v1988, 126
        %v1996 = vpop.permute.xlu0 %1995
        %1997 = vrot.lane.b32.xlu0 %v1990, 126
        %v1998 = vpop.permute.xlu0 %1997
        %1999 = vrot.lane.b32.xlu0 %v1992, 126
        %v2000 = vpop.permute.xlu0 %1999
        %v2001 = vsel %vm250, %v1994, %v1996
        %v2002 = vsel %vm250, %v1998, %v2000
        %v2005 = vadd.f32 %v1966, %v2001
        %v2006 = vadd.f32 %v1967, %v2002
        %s2007 = sadd.s32 %s258, 21
        %s2008 = sld [smem:[#allocation2 + %s2007]]
        %v2009 = vstv %s2008
        %v2010 = vmul.f32 %v2009, %v1905
        %v2011 = vmul.f32 %v2009, %v1907
        %v2012 = vmul.f32 %v2009, %v1909
        %v2016 = vrot.slane %v2010, 1
        %v2017 = vrot.slane %v2011, 1
        %v2018 = vsel %vm1139, %v2016, %v2017
        %v2019 = vrot.slane %v2012, 1
        %v2020 = vsel %vm1139, %v2017, %v2019
        %v2023 = vadd.f32 %v1711, %v2018
        %v2024 = vadd.f32 %v1712, %v2020
        %s2025 = sadd.s32 %s258, 22
        %s2026 = sld [smem:[#allocation2 + %s2025]]
        %v2027 = vstv %s2026
        %v2028 = vmul.f32 %v2027, %v1905
        %v2029 = vmul.f32 %v2027, %v1906
        %v2030 = vmul.f32 %v2027, %v1907
        %v2031 = vmul.f32 %v2027, %v1908
        %v2032 = vmul.f32 %v2027, %v1909
        %v2033 = vmul.f32 %v2027, %v1910
        %v2040 = vrot.slane %v2028, 1
        %v2041 = vrot.slane %v2030, 1
        %v2042 = vsel %vm1139, %v2040, %v2041
        %v2043 = vrot.slane %v2029, 1
        %v2044 = vrot.slane %v2031, 1
        %v2045 = vsel %vm1139, %v2043, %v2044
        %v2046 = vrot.slane %v2032, 1
        %v2047 = vsel %vm1139, %v2041, %v2046
        %v2048 = vrot.slane %v2033, 1
        %v2049 = vsel %vm1139, %v2044, %v2048
        %2050 = vrot.lane.b32.xlu0 %v2042, 127
        %v2051 = vpop.permute.xlu0 %2050
        %2052 = vrot.lane.b32.xlu0 %v2045, 127
        %v2053 = vpop.permute.xlu0 %2052
        %2054 = vrot.lane.b32.xlu0 %v2047, 127
        %v2055 = vpop.permute.xlu0 %2054
        %2056 = vrot.lane.b32.xlu0 %v2049, 127
        %v2057 = vpop.permute.xlu0 %2056
        %v2058 = vsel %vm224, %v2051, %v2053
        %v2059 = vsel %vm224, %v2055, %v2057
        %v2062 = vadd.f32 %v2023, %v2058
        %v2063 = vadd.f32 %v2024, %v2059
        %s2064 = sadd.s32 %s258, 23
        %s2065 = sld [smem:[#allocation2 + %s2064]]
        %v2066 = vstv %s2065
        %v2067 = vmul.f32 %v2066, %v1905
        %v2068 = vmul.f32 %v2066, %v1906
        %v2069 = vmul.f32 %v2066, %v1907
        %v2070 = vmul.f32 %v2066, %v1908
        %v2071 = vmul.f32 %v2066, %v1909
        %v2072 = vmul.f32 %v2066, %v1910
        %v2079 = vrot.slane %v2067, 1
        %v2080 = vrot.slane %v2069, 1
        %v2081 = vsel %vm1139, %v2079, %v2080
        %v2082 = vrot.slane %v2068, 1
        %v2083 = vrot.slane %v2070, 1
        %v2084 = vsel %vm1139, %v2082, %v2083
        %v2085 = vrot.slane %v2071, 1
        %v2086 = vsel %vm1139, %v2080, %v2085
        %v2087 = vrot.slane %v2072, 1
        %v2088 = vsel %vm1139, %v2083, %v2087
        %2089 = vrot.lane.b32.xlu0 %v2081, 126
        %v2090 = vpop.permute.xlu0 %2089
        %2091 = vrot.lane.b32.xlu0 %v2084, 126
        %v2092 = vpop.permute.xlu0 %2091
        %2093 = vrot.lane.b32.xlu0 %v2086, 126
        %v2094 = vpop.permute.xlu0 %2093
        %2095 = vrot.lane.b32.xlu0 %v2088, 126
        %v2096 = vpop.permute.xlu0 %2095
        %v2097 = vsel %vm250, %v2090, %v2092
        %v2098 = vsel %vm250, %v2094, %v2096
        %v2101 = vadd.f32 %v2062, %v2097
        %v2102 = vadd.f32 %v2063, %v2098
        %s2103 = sadd.s32 %s314, 21
        %s2104 = sld [smem:[#allocation2 + %s2103]]
        %v2105 = vstv %s2104
        %v2106 = vmul.f32 %v2105, %v1905
        %v2107 = vmul.f32 %v2105, %v1907
        %v2108 = vmul.f32 %v2105, %v1909
        %v2112 = vrot.slane %v2106, 1
        %v2113 = vrot.slane %v2107, 1
        %v2114 = vsel %vm1139, %v2112, %v2113
        %v2115 = vrot.slane %v2108, 1
        %v2116 = vsel %vm1139, %v2113, %v2115
        %v2119 = vadd.f32 %v1807, %v2114
        %v2120 = vadd.f32 %v1808, %v2116
        %s2121 = sadd.s32 %s314, 22
        %s2122 = sld [smem:[#allocation2 + %s2121]]
        %v2123 = vstv %s2122
        %v2124 = vmul.f32 %v2123, %v1905
        %v2125 = vmul.f32 %v2123, %v1906
        %v2126 = vmul.f32 %v2123, %v1907
        %v2127 = vmul.f32 %v2123, %v1908
        %v2128 = vmul.f32 %v2123, %v1909
        %v2129 = vmul.f32 %v2123, %v1910
        %v2136 = vrot.slane %v2124, 1
        %v2137 = vrot.slane %v2126, 1
        %v2138 = vsel %vm1139, %v2136, %v2137
        %v2139 = vrot.slane %v2125, 1
        %v2140 = vrot.slane %v2127, 1
        %v2141 = vsel %vm1139, %v2139, %v2140
        %v2142 = vrot.slane %v2128, 1
        %v2143 = vsel %vm1139, %v2137, %v2142
        %v2144 = vrot.slane %v2129, 1
        %v2145 = vsel %vm1139, %v2140, %v2144
        %2146 = vrot.lane.b32.xlu0 %v2138, 127
        %v2147 = vpop.permute.xlu0 %2146
        %2148 = vrot.lane.b32.xlu0 %v2141, 127
        %v2149 = vpop.permute.xlu0 %2148
        %2150 = vrot.lane.b32.xlu0 %v2143, 127
        %v2151 = vpop.permute.xlu0 %2150
        %2152 = vrot.lane.b32.xlu0 %v2145, 127
        %v2153 = vpop.permute.xlu0 %2152
        %v2154 = vsel %vm224, %v2147, %v2149
        %v2155 = vsel %vm224, %v2151, %v2153
        %v2158 = vadd.f32 %v2119, %v2154
        %v2159 = vadd.f32 %v2120, %v2155
        %s2160 = sadd.s32 %s314, 23
        %s2161 = sld [smem:[#allocation2 + %s2160]]
        %v2162 = vstv %s2161
        %v2163 = vmul.f32 %v2162, %v1905
        %v2164 = vmul.f32 %v2162, %v1906
        %v2165 = vmul.f32 %v2162, %v1907
        %v2166 = vmul.f32 %v2162, %v1908
        %v2167 = vmul.f32 %v2162, %v1909
        %v2168 = vmul.f32 %v2162, %v1910
        %v2175 = vrot.slane %v2163, 1
        %v2176 = vrot.slane %v2165, 1
        %v2177 = vsel %vm1139, %v2175, %v2176
        %v2178 = vrot.slane %v2164, 1
        %v2179 = vrot.slane %v2166, 1
        %v2180 = vsel %vm1139, %v2178, %v2179
        %v2181 = vrot.slane %v2167, 1
        %v2182 = vsel %vm1139, %v2176, %v2181
        %v2183 = vrot.slane %v2168, 1
        %v2184 = vsel %vm1139, %v2179, %v2183
        %2185 = vrot.lane.b32.xlu0 %v2177, 126
        %v2186 = vpop.permute.xlu0 %2185
        %2187 = vrot.lane.b32.xlu0 %v2180, 126
        %v2188 = vpop.permute.xlu0 %2187
        %2189 = vrot.lane.b32.xlu0 %v2182, 126
        %v2190 = vpop.permute.xlu0 %2189
        %2191 = vrot.lane.b32.xlu0 %v2184, 126
        %v2192 = vpop.permute.xlu0 %2191
        %v2193 = vsel %vm250, %v2186, %v2188
        %v2194 = vsel %vm250, %v2190, %v2192
        %v2197 = vadd.f32 %v2158, %v2193
        %v2198 = vadd.f32 %v2159, %v2194
        %s2199 = sadd.s32 %s370, 21
        %s2200 = sld [smem:[#allocation2 + %s2199]]
        %v2201 = vstv %s2200
        %v2202 = vmul.f32 %v2201, %v1905
        %v2203 = vmul.f32 %v2201, %v1907
        %v2204 = vmul.f32 %v2201, %v1909
        %v2208 = vrot.slane %v2202, 1
        %v2209 = vrot.slane %v2203, 1
        %v2210 = vsel %vm1139, %v2208, %v2209
        %v2211 = vrot.slane %v2204, 1
        %v2212 = vsel %vm1139, %v2209, %v2211
        %v2215 = vadd.f32 %v1903, %v2210
        %v2216 = vadd.f32 %v1904, %v2212
        %s2217 = sadd.s32 %s370, 22
        %s2218 = sld [smem:[#allocation2 + %s2217]]
        %v2219 = vstv %s2218
        %v2220 = vmul.f32 %v2219, %v1905
        %v2221 = vmul.f32 %v2219, %v1906
        %v2222 = vmul.f32 %v2219, %v1907
        %v2223 = vmul.f32 %v2219, %v1908
        %v2224 = vmul.f32 %v2219, %v1909
        %v2225 = vmul.f32 %v2219, %v1910
        %v2232 = vrot.slane %v2220, 1
        %v2233 = vrot.slane %v2222, 1
        %v2234 = vsel %vm1139, %v2232, %v2233
        %v2235 = vrot.slane %v2221, 1
        %v2236 = vrot.slane %v2223, 1
        %v2237 = vsel %vm1139, %v2235, %v2236
        %v2238 = vrot.slane %v2224, 1
        %v2239 = vsel %vm1139, %v2233, %v2238
        %v2240 = vrot.slane %v2225, 1
        %v2241 = vsel %vm1139, %v2236, %v2240
        %2242 = vrot.lane.b32.xlu0 %v2234, 127
        %v2243 = vpop.permute.xlu0 %2242
        %2244 = vrot.lane.b32.xlu0 %v2237, 127
        %v2245 = vpop.permute.xlu0 %2244
        %2246 = vrot.lane.b32.xlu0 %v2239, 127
        %v2247 = vpop.permute.xlu0 %2246
        %2248 = vrot.lane.b32.xlu0 %v2241, 127
        %v2249 = vpop.permute.xlu0 %2248
        %v2250 = vsel %vm224, %v2243, %v2245
        %v2251 = vsel %vm224, %v2247, %v2249
        %v2254 = vadd.f32 %v2215, %v2250
        %v2255 = vadd.f32 %v2216, %v2251
        %s2256 = sadd.s32 %s370, 23
        %s2257 = sld [smem:[#allocation2 + %s2256]]
        %v2258 = vstv %s2257
        %v2259 = vmul.f32 %v2258, %v1905
        %v2260 = vmul.f32 %v2258, %v1906
        %v2261 = vmul.f32 %v2258, %v1907
        %v2262 = vmul.f32 %v2258, %v1908
        %v2263 = vmul.f32 %v2258, %v1909
        %v2264 = vmul.f32 %v2258, %v1910
        %v2271 = vrot.slane %v2259, 1
        %v2272 = vrot.slane %v2261, 1
        %v2273 = vsel %vm1139, %v2271, %v2272
        %v2274 = vrot.slane %v2260, 1
        %v2275 = vrot.slane %v2262, 1
        %v2276 = vsel %vm1139, %v2274, %v2275
        %v2277 = vrot.slane %v2263, 1
        %v2278 = vsel %vm1139, %v2272, %v2277
        %v2279 = vrot.slane %v2264, 1
        %v2280 = vsel %vm1139, %v2275, %v2279
        %2281 = vrot.lane.b32.xlu0 %v2273, 126
        %v2282 = vpop.permute.xlu0 %2281
        %2283 = vrot.lane.b32.xlu0 %v2276, 126
        %v2284 = vpop.permute.xlu0 %2283
        %2285 = vrot.lane.b32.xlu0 %v2278, 126
        %v2286 = vpop.permute.xlu0 %2285
        %2287 = vrot.lane.b32.xlu0 %v2280, 126
        %v2288 = vpop.permute.xlu0 %2287
        %v2289 = vsel %vm250, %v2282, %v2284
        %v2290 = vsel %vm250, %v2286, %v2288
        %v2293 = vadd.f32 %v2254, %v2289
        %v2294 = vadd.f32 %v2255, %v2290
        %v2295 = vld [vmem:[%s891] sm:$0xfe]
        %v2296 = vld [vmem:[%s891 + $0x8] sm:$0xfe]
        %v2297 = vld [vmem:[%s891 + $0x10] sm:$0xff]
        %v2298 = vld [vmem:[%s891 + $0x18] sm:$0xff]
        %v2299 = vld [vmem:[%s891 + $0x20] sm:$0x1]
        %v2300 = vld [vmem:[%s891 + $0x28] sm:$0x1]
        %s2301 = sadd.s32 %s200, 30
        %s2302 = sld [smem:[#allocation2 + %s2301]]
        %v2303 = vstv %s2302
        %v2304 = vmul.f32 %v2303, %v2295
        %v2305 = vmul.f32 %v2303, %v2297
        %v2306 = vmul.f32 %v2303, %v2299
        %v2310 = vrot.slane %v2304, 1
        %v2311 = vrot.slane %v2305, 1
        %v2312 = vsel %vm1139, %v2310, %v2311
        %v2313 = vrot.slane %v2306, 1
        %v2314 = vsel %vm1139, %v2311, %v2313
        %v2317 = vadd.f32 %v2005, %v2312
        %v2318 = vadd.f32 %v2006, %v2314
        %s2319 = sadd.s32 %s200, 31
        %s2320 = sld [smem:[#allocation2 + %s2319]]
        %v2321 = vstv %s2320
        %v2322 = vmul.f32 %v2321, %v2295
        %v2323 = vmul.f32 %v2321, %v2296
        %v2324 = vmul.f32 %v2321, %v2297
        %v2325 = vmul.f32 %v2321, %v2298
        %v2326 = vmul.f32 %v2321, %v2299
        %v2327 = vmul.f32 %v2321, %v2300
        %v2334 = vrot.slane %v2322, 1
        %v2335 = vrot.slane %v2324, 1
        %v2336 = vsel %vm1139, %v2334, %v2335
        %v2337 = vrot.slane %v2323, 1
        %v2338 = vrot.slane %v2325, 1
        %v2339 = vsel %vm1139, %v2337, %v2338
        %v2340 = vrot.slane %v2326, 1
        %v2341 = vsel %vm1139, %v2335, %v2340
        %v2342 = vrot.slane %v2327, 1
        %v2343 = vsel %vm1139, %v2338, %v2342
        %2344 = vrot.lane.b32.xlu0 %v2336, 127
        %v2345 = vpop.permute.xlu0 %2344
        %2346 = vrot.lane.b32.xlu0 %v2339, 127
        %v2347 = vpop.permute.xlu0 %2346
        %2348 = vrot.lane.b32.xlu0 %v2341, 127
        %v2349 = vpop.permute.xlu0 %2348
        %2350 = vrot.lane.b32.xlu0 %v2343, 127
        %v2351 = vpop.permute.xlu0 %2350
        %v2352 = vsel %vm224, %v2345, %v2347
        %v2353 = vsel %vm224, %v2349, %v2351
        %v2356 = vadd.f32 %v2317, %v2352
        %v2357 = vadd.f32 %v2318, %v2353
        %s2358 = sadd.s32 %s200, 32
        %s2359 = sld [smem:[#allocation2 + %s2358]]
        %v2360 = vstv %s2359
        %v2361 = vmul.f32 %v2360, %v2295
        %v2362 = vmul.f32 %v2360, %v2296
        %v2363 = vmul.f32 %v2360, %v2297
        %v2364 = vmul.f32 %v2360, %v2298
        %v2365 = vmul.f32 %v2360, %v2299
        %v2366 = vmul.f32 %v2360, %v2300
        %v2373 = vrot.slane %v2361, 1
        %v2374 = vrot.slane %v2363, 1
        %v2375 = vsel %vm1139, %v2373, %v2374
        %v2376 = vrot.slane %v2362, 1
        %v2377 = vrot.slane %v2364, 1
        %v2378 = vsel %vm1139, %v2376, %v2377
        %v2379 = vrot.slane %v2365, 1
        %v2380 = vsel %vm1139, %v2374, %v2379
        %v2381 = vrot.slane %v2366, 1
        %v2382 = vsel %vm1139, %v2377, %v2381
        %2383 = vrot.lane.b32.xlu0 %v2375, 126
        %v2384 = vpop.permute.xlu0 %2383
        %2385 = vrot.lane.b32.xlu0 %v2378, 126
        %v2386 = vpop.permute.xlu0 %2385
        %2387 = vrot.lane.b32.xlu0 %v2380, 126
        %v2388 = vpop.permute.xlu0 %2387
        %2389 = vrot.lane.b32.xlu0 %v2382, 126
        %v2390 = vpop.permute.xlu0 %2389
        %v2391 = vsel %vm250, %v2384, %v2386
        %v2392 = vsel %vm250, %v2388, %v2390
        %v2395 = vadd.f32 %v2356, %v2391
        %v2396 = vadd.f32 %v2357, %v2392
        %s2397 = sadd.s32 %s258, 30
        %s2398 = sld [smem:[#allocation2 + %s2397]]
        %v2399 = vstv %s2398
        %v2400 = vmul.f32 %v2399, %v2295
        %v2401 = vmul.f32 %v2399, %v2297
        %v2402 = vmul.f32 %v2399, %v2299
        %v2406 = vrot.slane %v2400, 1
        %v2407 = vrot.slane %v2401, 1
        %v2408 = vsel %vm1139, %v2406, %v2407
        %v2409 = vrot.slane %v2402, 1
        %v2410 = vsel %vm1139, %v2407, %v2409
        %v2413 = vadd.f32 %v2101, %v2408
        %v2414 = vadd.f32 %v2102, %v2410
        %s2415 = sadd.s32 %s258, 31
        %s2416 = sld [smem:[#allocation2 + %s2415]]
        %v2417 = vstv %s2416
        %v2418 = vmul.f32 %v2417, %v2295
        %v2419 = vmul.f32 %v2417, %v2296
        %v2420 = vmul.f32 %v2417, %v2297
        %v2421 = vmul.f32 %v2417, %v2298
        %v2422 = vmul.f32 %v2417, %v2299
        %v2423 = vmul.f32 %v2417, %v2300
        %v2430 = vrot.slane %v2418, 1
        %v2431 = vrot.slane %v2420, 1
        %v2432 = vsel %vm1139, %v2430, %v2431
        %v2433 = vrot.slane %v2419, 1
        %v2434 = vrot.slane %v2421, 1
        %v2435 = vsel %vm1139, %v2433, %v2434
        %v2436 = vrot.slane %v2422, 1
        %v2437 = vsel %vm1139, %v2431, %v2436
        %v2438 = vrot.slane %v2423, 1
        %v2439 = vsel %vm1139, %v2434, %v2438
        %2440 = vrot.lane.b32.xlu0 %v2432, 127
        %v2441 = vpop.permute.xlu0 %2440
        %2442 = vrot.lane.b32.xlu0 %v2435, 127
        %v2443 = vpop.permute.xlu0 %2442
        %2444 = vrot.lane.b32.xlu0 %v2437, 127
        %v2445 = vpop.permute.xlu0 %2444
        %2446 = vrot.lane.b32.xlu0 %v2439, 127
        %v2447 = vpop.permute.xlu0 %2446
        %v2448 = vsel %vm224, %v2441, %v2443
        %v2449 = vsel %vm224, %v2445, %v2447
        %v2452 = vadd.f32 %v2413, %v2448
        %v2453 = vadd.f32 %v2414, %v2449
        %s2454 = sadd.s32 %s258, 32
        %s2455 = sld [smem:[#allocation2 + %s2454]]
        %v2456 = vstv %s2455
        %v2457 = vmul.f32 %v2456, %v2295
        %v2458 = vmul.f32 %v2456, %v2296
        %v2459 = vmul.f32 %v2456, %v2297
        %v2460 = vmul.f32 %v2456, %v2298
        %v2461 = vmul.f32 %v2456, %v2299
        %v2462 = vmul.f32 %v2456, %v2300
        %v2469 = vrot.slane %v2457, 1
        %v2470 = vrot.slane %v2459, 1
        %v2471 = vsel %vm1139, %v2469, %v2470
        %v2472 = vrot.slane %v2458, 1
        %v2473 = vrot.slane %v2460, 1
        %v2474 = vsel %vm1139, %v2472, %v2473
        %v2475 = vrot.slane %v2461, 1
        %v2476 = vsel %vm1139, %v2470, %v2475
        %v2477 = vrot.slane %v2462, 1
        %v2478 = vsel %vm1139, %v2473, %v2477
        %2479 = vrot.lane.b32.xlu0 %v2471, 126
        %v2480 = vpop.permute.xlu0 %2479
        %2481 = vrot.lane.b32.xlu0 %v2474, 126
        %v2482 = vpop.permute.xlu0 %2481
        %2483 = vrot.lane.b32.xlu0 %v2476, 126
        %v2484 = vpop.permute.xlu0 %2483
        %2485 = vrot.lane.b32.xlu0 %v2478, 126
        %v2486 = vpop.permute.xlu0 %2485
        %v2487 = vsel %vm250, %v2480, %v2482
        %v2488 = vsel %vm250, %v2484, %v2486
        %v2491 = vadd.f32 %v2452, %v2487
        %v2492 = vadd.f32 %v2453, %v2488
        %s2493 = sadd.s32 %s314, 30
        %s2494 = sld [smem:[#allocation2 + %s2493]]
        %v2495 = vstv %s2494
        %v2496 = vmul.f32 %v2495, %v2295
        %v2497 = vmul.f32 %v2495, %v2297
        %v2498 = vmul.f32 %v2495, %v2299
        %v2502 = vrot.slane %v2496, 1
        %v2503 = vrot.slane %v2497, 1
        %v2504 = vsel %vm1139, %v2502, %v2503
        %v2505 = vrot.slane %v2498, 1
        %v2506 = vsel %vm1139, %v2503, %v2505
        %v2509 = vadd.f32 %v2197, %v2504
        %v2510 = vadd.f32 %v2198, %v2506
        %s2511 = sadd.s32 %s314, 31
        %s2512 = sld [smem:[#allocation2 + %s2511]]
        %v2513 = vstv %s2512
        %v2514 = vmul.f32 %v2513, %v2295
        %v2515 = vmul.f32 %v2513, %v2296
        %v2516 = vmul.f32 %v2513, %v2297
        %v2517 = vmul.f32 %v2513, %v2298
        %v2518 = vmul.f32 %v2513, %v2299
        %v2519 = vmul.f32 %v2513, %v2300
        %v2526 = vrot.slane %v2514, 1
        %v2527 = vrot.slane %v2516, 1
        %v2528 = vsel %vm1139, %v2526, %v2527
        %v2529 = vrot.slane %v2515, 1
        %v2530 = vrot.slane %v2517, 1
        %v2531 = vsel %vm1139, %v2529, %v2530
        %v2532 = vrot.slane %v2518, 1
        %v2533 = vsel %vm1139, %v2527, %v2532
        %v2534 = vrot.slane %v2519, 1
        %v2535 = vsel %vm1139, %v2530, %v2534
        %2536 = vrot.lane.b32.xlu0 %v2528, 127
        %v2537 = vpop.permute.xlu0 %2536
        %2538 = vrot.lane.b32.xlu0 %v2531, 127
        %v2539 = vpop.permute.xlu0 %2538
        %2540 = vrot.lane.b32.xlu0 %v2533, 127
        %v2541 = vpop.permute.xlu0 %2540
        %2542 = vrot.lane.b32.xlu0 %v2535, 127
        %v2543 = vpop.permute.xlu0 %2542
        %v2544 = vsel %vm224, %v2537, %v2539
        %v2545 = vsel %vm224, %v2541, %v2543
        %v2548 = vadd.f32 %v2509, %v2544
        %v2549 = vadd.f32 %v2510, %v2545
        %s2550 = sadd.s32 %s314, 32
        %s2551 = sld [smem:[#allocation2 + %s2550]]
        %v2552 = vstv %s2551
        %v2553 = vmul.f32 %v2552, %v2295
        %v2554 = vmul.f32 %v2552, %v2296
        %v2555 = vmul.f32 %v2552, %v2297
        %v2556 = vmul.f32 %v2552, %v2298
        %v2557 = vmul.f32 %v2552, %v2299
        %v2558 = vmul.f32 %v2552, %v2300
        %v2565 = vrot.slane %v2553, 1
        %v2566 = vrot.slane %v2555, 1
        %v2567 = vsel %vm1139, %v2565, %v2566
        %v2568 = vrot.slane %v2554, 1
        %v2569 = vrot.slane %v2556, 1
        %v2570 = vsel %vm1139, %v2568, %v2569
        %v2571 = vrot.slane %v2557, 1
        %v2572 = vsel %vm1139, %v2566, %v2571
        %v2573 = vrot.slane %v2558, 1
        %v2574 = vsel %vm1139, %v2569, %v2573
        %2575 = vrot.lane.b32.xlu0 %v2567, 126
        %v2576 = vpop.permute.xlu0 %2575
        %2577 = vrot.lane.b32.xlu0 %v2570, 126
        %v2578 = vpop.permute.xlu0 %2577
        %2579 = vrot.lane.b32.xlu0 %v2572, 126
        %v2580 = vpop.permute.xlu0 %2579
        %2581 = vrot.lane.b32.xlu0 %v2574, 126
        %v2582 = vpop.permute.xlu0 %2581
        %v2583 = vsel %vm250, %v2576, %v2578
        %v2584 = vsel %vm250, %v2580, %v2582
        %v2587 = vadd.f32 %v2548, %v2583
        %v2588 = vadd.f32 %v2549, %v2584
        %s2589 = sadd.s32 %s370, 30
        %s2590 = sld [smem:[#allocation2 + %s2589]]
        %v2591 = vstv %s2590
        %v2592 = vmul.f32 %v2591, %v2295
        %v2593 = vmul.f32 %v2591, %v2297
        %v2594 = vmul.f32 %v2591, %v2299
        %v2598 = vrot.slane %v2592, 1
        %v2599 = vrot.slane %v2593, 1
        %v2600 = vsel %vm1139, %v2598, %v2599
        %v2601 = vrot.slane %v2594, 1
        %v2602 = vsel %vm1139, %v2599, %v2601
        %v2605 = vadd.f32 %v2293, %v2600
        %v2606 = vadd.f32 %v2294, %v2602
        %s2607 = sadd.s32 %s370, 31
        %s2608 = sld [smem:[#allocation2 + %s2607]]
        %v2609 = vstv %s2608
        %v2610 = vmul.f32 %v2609, %v2295
        %v2611 = vmul.f32 %v2609, %v2296
        %v2612 = vmul.f32 %v2609, %v2297
        %v2613 = vmul.f32 %v2609, %v2298
        %v2614 = vmul.f32 %v2609, %v2299
        %v2615 = vmul.f32 %v2609, %v2300
        %v2622 = vrot.slane %v2610, 1
        %v2623 = vrot.slane %v2612, 1
        %v2624 = vsel %vm1139, %v2622, %v2623
        %v2625 = vrot.slane %v2611, 1
        %v2626 = vrot.slane %v2613, 1
        %v2627 = vsel %vm1139, %v2625, %v2626
        %v2628 = vrot.slane %v2614, 1
        %v2629 = vsel %vm1139, %v2623, %v2628
        %v2630 = vrot.slane %v2615, 1
        %v2631 = vsel %vm1139, %v2626, %v2630
        %2632 = vrot.lane.b32.xlu0 %v2624, 127
        %v2633 = vpop.permute.xlu0 %2632
        %2634 = vrot.lane.b32.xlu0 %v2627, 127
        %v2635 = vpop.permute.xlu0 %2634
        %2636 = vrot.lane.b32.xlu0 %v2629, 127
        %v2637 = vpop.permute.xlu0 %2636
        %2638 = vrot.lane.b32.xlu0 %v2631, 127
        %v2639 = vpop.permute.xlu0 %2638
        %v2640 = vsel %vm224, %v2633, %v2635
        %v2641 = vsel %vm224, %v2637, %v2639
        %v2644 = vadd.f32 %v2605, %v2640
        %v2645 = vadd.f32 %v2606, %v2641
        %s2646 = sadd.s32 %s370, 32
        %s2647 = sld [smem:[#allocation2 + %s2646]]
        %v2648 = vstv %s2647
        %v2649 = vmul.f32 %v2648, %v2295
        %v2650 = vmul.f32 %v2648, %v2296
        %v2651 = vmul.f32 %v2648, %v2297
        %v2652 = vmul.f32 %v2648, %v2298
        %v2653 = vmul.f32 %v2648, %v2299
        %v2654 = vmul.f32 %v2648, %v2300
        %v2661 = vrot.slane %v2649, 1
        %v2662 = vrot.slane %v2651, 1
        %v2663 = vsel %vm1139, %v2661, %v2662
        %v2664 = vrot.slane %v2650, 1
        %v2665 = vrot.slane %v2652, 1
        %v2666 = vsel %vm1139, %v2664, %v2665
        %v2667 = vrot.slane %v2653, 1
        %v2668 = vsel %vm1139, %v2662, %v2667
        %v2669 = vrot.slane %v2654, 1
        %v2670 = vsel %vm1139, %v2665, %v2669
        %2671 = vrot.lane.b32.xlu0 %v2663, 126
        %v2672 = vpop.permute.xlu0 %2671
        %2673 = vrot.lane.b32.xlu0 %v2666, 126
        %v2674 = vpop.permute.xlu0 %2673
        %2675 = vrot.lane.b32.xlu0 %v2668, 126
        %v2676 = vpop.permute.xlu0 %2675
        %2677 = vrot.lane.b32.xlu0 %v2670, 126
        %v2678 = vpop.permute.xlu0 %2677
        %v2679 = vsel %vm250, %v2672, %v2674
        %v2680 = vsel %vm250, %v2676, %v2678
        %v2683 = vadd.f32 %v2644, %v2679
        %v2684 = vadd.f32 %v2645, %v2680
        %v2685 = vld [vmem:[%s192] sm:$0xfc]
        %v2686 = vld [vmem:[%s192 + $0x8] sm:$0xfc]
        %v2687 = vld [vmem:[%s192 + $0x20] sm:$0x3]
        %v2688 = vld [vmem:[%s192 + $0x28] sm:$0x3]
        %s2689 = sadd.s32 %s200, 6
        %s2690 = sld [smem:[#allocation2 + %s2689]]
        %v2691 = vstv %s2690
        %v2692 = vmul.f32 %v2691, %v2685
        %v2693 = vmul.f32 %v2691, %v1126
        %v2694 = vmul.f32 %v2691, %v2687
        %vm2698 = vcmask 1045504
        %v2699 = vrot.slane %v2692, 2
        %v2700 = vrot.slane %v2693, 2
        %v2701 = vsel %vm2698, %v2699, %v2700
        %v2702 = vrot.slane %v2694, 2
        %v2703 = vsel %vm2698, %v2700, %v2702
        %v2706 = vadd.f32 %v2395, %v2701
        %v2707 = vadd.f32 %v2396, %v2703
        %s2708 = sadd.s32 %s200, 7
        %s2709 = sld [smem:[#allocation2 + %s2708]]
        %v2710 = vstv %s2709
        %v2711 = vmul.f32 %v2710, %v2685
        %v2712 = vmul.f32 %v2710, %v2686
        %v2713 = vmul.f32 %v2710, %v1126
        %v2714 = vmul.f32 %v2710, %v1127
        %v2715 = vmul.f32 %v2710, %v2687
        %v2716 = vmul.f32 %v2710, %v2688
        %v2723 = vrot.slane %v2711, 2
        %v2724 = vrot.slane %v2713, 2
        %v2725 = vsel %vm2698, %v2723, %v2724
        %v2726 = vrot.slane %v2712, 2
        %v2727 = vrot.slane %v2714, 2
        %v2728 = vsel %vm2698, %v2726, %v2727
        %v2729 = vrot.slane %v2715, 2
        %v2730 = vsel %vm2698, %v2724, %v2729
        %v2731 = vrot.slane %v2716, 2
        %v2732 = vsel %vm2698, %v2727, %v2731
        %2733 = vrot.lane.b32.xlu0 %v2725, 127
        %v2734 = vpop.permute.xlu0 %2733
        %2735 = vrot.lane.b32.xlu0 %v2728, 127
        %v2736 = vpop.permute.xlu0 %2735
        %2737 = vrot.lane.b32.xlu0 %v2730, 127
        %v2738 = vpop.permute.xlu0 %2737
        %2739 = vrot.lane.b32.xlu0 %v2732, 127
        %v2740 = vpop.permute.xlu0 %2739
        %v2741 = vsel %vm224, %v2734, %v2736
        %v2742 = vsel %vm224, %v2738, %v2740
        %v2745 = vadd.f32 %v2706, %v2741
        %v2746 = vadd.f32 %v2707, %v2742
        %s2747 = sadd.s32 %s200, 8
        %s2748 = sld [smem:[#allocation2 + %s2747]]
        %v2749 = vstv %s2748
        %v2750 = vmul.f32 %v2749, %v2685
        %v2751 = vmul.f32 %v2749, %v2686
        %v2752 = vmul.f32 %v2749, %v1126
        %v2753 = vmul.f32 %v2749, %v1127
        %v2754 = vmul.f32 %v2749, %v2687
        %v2755 = vmul.f32 %v2749, %v2688
        %v2762 = vrot.slane %v2750, 2
        %v2763 = vrot.slane %v2752, 2
        %v2764 = vsel %vm2698, %v2762, %v2763
        %v2765 = vrot.slane %v2751, 2
        %v2766 = vrot.slane %v2753, 2
        %v2767 = vsel %vm2698, %v2765, %v2766
        %v2768 = vrot.slane %v2754, 2
        %v2769 = vsel %vm2698, %v2763, %v2768
        %v2770 = vrot.slane %v2755, 2
        %v2771 = vsel %vm2698, %v2766, %v2770
        %2772 = vrot.lane.b32.xlu0 %v2764, 126
        %v2773 = vpop.permute.xlu0 %2772
        %2774 = vrot.lane.b32.xlu0 %v2767, 126
        %v2775 = vpop.permute.xlu0 %2774
        %2776 = vrot.lane.b32.xlu0 %v2769, 126
        %v2777 = vpop.permute.xlu0 %2776
        %2778 = vrot.lane.b32.xlu0 %v2771, 126
        %v2779 = vpop.permute.xlu0 %2778
        %v2780 = vsel %vm250, %v2773, %v2775
        %v2781 = vsel %vm250, %v2777, %v2779
        %v2784 = vadd.f32 %v2745, %v2780
        %v2785 = vadd.f32 %v2746, %v2781
        %s2786 = sadd.s32 %s258, 6
        %s2787 = sld [smem:[#allocation2 + %s2786]]
        %v2788 = vstv %s2787
        %v2789 = vmul.f32 %v2788, %v2685
        %v2790 = vmul.f32 %v2788, %v1126
        %v2791 = vmul.f32 %v2788, %v2687
        %v2795 = vrot.slane %v2789, 2
        %v2796 = vrot.slane %v2790, 2
        %v2797 = vsel %vm2698, %v2795, %v2796
        %v2798 = vrot.slane %v2791, 2
        %v2799 = vsel %vm2698, %v2796, %v2798
        %v2802 = vadd.f32 %v2491, %v2797
        %v2803 = vadd.f32 %v2492, %v2799
        %s2804 = sadd.s32 %s258, 7
        %s2805 = sld [smem:[#allocation2 + %s2804]]
        %v2806 = vstv %s2805
        %v2807 = vmul.f32 %v2806, %v2685
        %v2808 = vmul.f32 %v2806, %v2686
        %v2809 = vmul.f32 %v2806, %v1126
        %v2810 = vmul.f32 %v2806, %v1127
        %v2811 = vmul.f32 %v2806, %v2687
        %v2812 = vmul.f32 %v2806, %v2688
        %v2819 = vrot.slane %v2807, 2
        %v2820 = vrot.slane %v2809, 2
        %v2821 = vsel %vm2698, %v2819, %v2820
        %v2822 = vrot.slane %v2808, 2
        %v2823 = vrot.slane %v2810, 2
        %v2824 = vsel %vm2698, %v2822, %v2823
        %v2825 = vrot.slane %v2811, 2
        %v2826 = vsel %vm2698, %v2820, %v2825
        %v2827 = vrot.slane %v2812, 2
        %v2828 = vsel %vm2698, %v2823, %v2827
        %2829 = vrot.lane.b32.xlu0 %v2821, 127
        %v2830 = vpop.permute.xlu0 %2829
        %2831 = vrot.lane.b32.xlu0 %v2824, 127
        %v2832 = vpop.permute.xlu0 %2831
        %2833 = vrot.lane.b32.xlu0 %v2826, 127
        %v2834 = vpop.permute.xlu0 %2833
        %2835 = vrot.lane.b32.xlu0 %v2828, 127
        %v2836 = vpop.permute.xlu0 %2835
        %v2837 = vsel %vm224, %v2830, %v2832
        %v2838 = vsel %vm224, %v2834, %v2836
        %v2841 = vadd.f32 %v2802, %v2837
        %v2842 = vadd.f32 %v2803, %v2838
        %s2843 = sadd.s32 %s258, 8
        %s2844 = sld [smem:[#allocation2 + %s2843]]
        %v2845 = vstv %s2844
        %v2846 = vmul.f32 %v2845, %v2685
        %v2847 = vmul.f32 %v2845, %v2686
        %v2848 = vmul.f32 %v2845, %v1126
        %v2849 = vmul.f32 %v2845, %v1127
        %v2850 = vmul.f32 %v2845, %v2687
        %v2851 = vmul.f32 %v2845, %v2688
        %v2858 = vrot.slane %v2846, 2
        %v2859 = vrot.slane %v2848, 2
        %v2860 = vsel %vm2698, %v2858, %v2859
        %v2861 = vrot.slane %v2847, 2
        %v2862 = vrot.slane %v2849, 2
        %v2863 = vsel %vm2698, %v2861, %v2862
        %v2864 = vrot.slane %v2850, 2
        %v2865 = vsel %vm2698, %v2859, %v2864
        %v2866 = vrot.slane %v2851, 2
        %v2867 = vsel %vm2698, %v2862, %v2866
        %2868 = vrot.lane.b32.xlu0 %v2860, 126
        %v2869 = vpop.permute.xlu0 %2868
        %2870 = vrot.lane.b32.xlu0 %v2863, 126
        %v2871 = vpop.permute.xlu0 %2870
        %2872 = vrot.lane.b32.xlu0 %v2865, 126
        %v2873 = vpop.permute.xlu0 %2872
        %2874 = vrot.lane.b32.xlu0 %v2867, 126
        %v2875 = vpop.permute.xlu0 %2874
        %v2876 = vsel %vm250, %v2869, %v2871
        %v2877 = vsel %vm250, %v2873, %v2875
        %v2880 = vadd.f32 %v2841, %v2876
        %v2881 = vadd.f32 %v2842, %v2877
        %s2882 = sadd.s32 %s314, 6
        %s2883 = sld [smem:[#allocation2 + %s2882]]
        %v2884 = vstv %s2883
        %v2885 = vmul.f32 %v2884, %v2685
        %v2886 = vmul.f32 %v2884, %v1126
        %v2887 = vmul.f32 %v2884, %v2687
        %v2891 = vrot.slane %v2885, 2
        %v2892 = vrot.slane %v2886, 2
        %v2893 = vsel %vm2698, %v2891, %v2892
        %v2894 = vrot.slane %v2887, 2
        %v2895 = vsel %vm2698, %v2892, %v2894
        %v2898 = vadd.f32 %v2587, %v2893
        %v2899 = vadd.f32 %v2588, %v2895
        %s2900 = sadd.s32 %s314, 7
        %s2901 = sld [smem:[#allocation2 + %s2900]]
        %v2902 = vstv %s2901
        %v2903 = vmul.f32 %v2902, %v2685
        %v2904 = vmul.f32 %v2902, %v2686
        %v2905 = vmul.f32 %v2902, %v1126
        %v2906 = vmul.f32 %v2902, %v1127
        %v2907 = vmul.f32 %v2902, %v2687
        %v2908 = vmul.f32 %v2902, %v2688
        %v2915 = vrot.slane %v2903, 2
        %v2916 = vrot.slane %v2905, 2
        %v2917 = vsel %vm2698, %v2915, %v2916
        %v2918 = vrot.slane %v2904, 2
        %v2919 = vrot.slane %v2906, 2
        %v2920 = vsel %vm2698, %v2918, %v2919
        %v2921 = vrot.slane %v2907, 2
        %v2922 = vsel %vm2698, %v2916, %v2921
        %v2923 = vrot.slane %v2908, 2
        %v2924 = vsel %vm2698, %v2919, %v2923
        %2925 = vrot.lane.b32.xlu0 %v2917, 127
        %v2926 = vpop.permute.xlu0 %2925
        %2927 = vrot.lane.b32.xlu0 %v2920, 127
        %v2928 = vpop.permute.xlu0 %2927
        %2929 = vrot.lane.b32.xlu0 %v2922, 127
        %v2930 = vpop.permute.xlu0 %2929
        %2931 = vrot.lane.b32.xlu0 %v2924, 127
        %v2932 = vpop.permute.xlu0 %2931
        %v2933 = vsel %vm224, %v2926, %v2928
        %v2934 = vsel %vm224, %v2930, %v2932
        %v2937 = vadd.f32 %v2898, %v2933
        %v2938 = vadd.f32 %v2899, %v2934
        %s2939 = sadd.s32 %s314, 8
        %s2940 = sld [smem:[#allocation2 + %s2939]]
        %v2941 = vstv %s2940
        %v2942 = vmul.f32 %v2941, %v2685
        %v2943 = vmul.f32 %v2941, %v2686
        %v2944 = vmul.f32 %v2941, %v1126
        %v2945 = vmul.f32 %v2941, %v1127
        %v2946 = vmul.f32 %v2941, %v2687
        %v2947 = vmul.f32 %v2941, %v2688
        %v2954 = vrot.slane %v2942, 2
        %v2955 = vrot.slane %v2944, 2
        %v2956 = vsel %vm2698, %v2954, %v2955
        %v2957 = vrot.slane %v2943, 2
        %v2958 = vrot.slane %v2945, 2
        %v2959 = vsel %vm2698, %v2957, %v2958
        %v2960 = vrot.slane %v2946, 2
        %v2961 = vsel %vm2698, %v2955, %v2960
        %v2962 = vrot.slane %v2947, 2
        %v2963 = vsel %vm2698, %v2958, %v2962
        %2964 = vrot.lane.b32.xlu0 %v2956, 126
        %v2965 = vpop.permute.xlu0 %2964
        %2966 = vrot.lane.b32.xlu0 %v2959, 126
        %v2967 = vpop.permute.xlu0 %2966
        %2968 = vrot.lane.b32.xlu0 %v2961, 126
        %v2969 = vpop.permute.xlu0 %2968
        %2970 = vrot.lane.b32.xlu0 %v2963, 126
        %v2971 = vpop.permute.xlu0 %2970
        %v2972 = vsel %vm250, %v2965, %v2967
        %v2973 = vsel %vm250, %v2969, %v2971
        %v2976 = vadd.f32 %v2937, %v2972
        %v2977 = vadd.f32 %v2938, %v2973
        %s2978 = sadd.s32 %s370, 6
        %s2979 = sld [smem:[#allocation2 + %s2978]]
        %v2980 = vstv %s2979
        %v2981 = vmul.f32 %v2980, %v2685
        %v2982 = vmul.f32 %v2980, %v1126
        %v2983 = vmul.f32 %v2980, %v2687
        %v2987 = vrot.slane %v2981, 2
        %v2988 = vrot.slane %v2982, 2
        %v2989 = vsel %vm2698, %v2987, %v2988
        %v2990 = vrot.slane %v2983, 2
        %v2991 = vsel %vm2698, %v2988, %v2990
        %v2994 = vadd.f32 %v2683, %v2989
        %v2995 = vadd.f32 %v2684, %v2991
        %s2996 = sadd.s32 %s370, 7
        %s2997 = sld [smem:[#allocation2 + %s2996]]
        %v2998 = vstv %s2997
        %v2999 = vmul.f32 %v2998, %v2685
        %v3000 = vmul.f32 %v2998, %v2686
        %v3001 = vmul.f32 %v2998, %v1126
        %v3002 = vmul.f32 %v2998, %v1127
        %v3003 = vmul.f32 %v2998, %v2687
        %v3004 = vmul.f32 %v2998, %v2688
        %v3011 = vrot.slane %v2999, 2
        %v3012 = vrot.slane %v3001, 2
        %v3013 = vsel %vm2698, %v3011, %v3012
        %v3014 = vrot.slane %v3000, 2
        %v3015 = vrot.slane %v3002, 2
        %v3016 = vsel %vm2698, %v3014, %v3015
        %v3017 = vrot.slane %v3003, 2
        %v3018 = vsel %vm2698, %v3012, %v3017
        %v3019 = vrot.slane %v3004, 2
        %v3020 = vsel %vm2698, %v3015, %v3019
        %3021 = vrot.lane.b32.xlu0 %v3013, 127
        %v3022 = vpop.permute.xlu0 %3021
        %3023 = vrot.lane.b32.xlu0 %v3016, 127
        %v3024 = vpop.permute.xlu0 %3023
        %3025 = vrot.lane.b32.xlu0 %v3018, 127
        %v3026 = vpop.permute.xlu0 %3025
        %3027 = vrot.lane.b32.xlu0 %v3020, 127
        %v3028 = vpop.permute.xlu0 %3027
        %v3029 = vsel %vm224, %v3022, %v3024
        %v3030 = vsel %vm224, %v3026, %v3028
        %v3033 = vadd.f32 %v2994, %v3029
        %v3034 = vadd.f32 %v2995, %v3030
        %s3035 = sadd.s32 %s370, 8
        %s3036 = sld [smem:[#allocation2 + %s3035]]
        %v3037 = vstv %s3036
        %v3038 = vmul.f32 %v3037, %v2685
        %v3039 = vmul.f32 %v3037, %v2686
        %v3040 = vmul.f32 %v3037, %v1126
        %v3041 = vmul.f32 %v3037, %v1127
        %v3042 = vmul.f32 %v3037, %v2687
        %v3043 = vmul.f32 %v3037, %v2688
        %v3050 = vrot.slane %v3038, 2
        %v3051 = vrot.slane %v3040, 2
        %v3052 = vsel %vm2698, %v3050, %v3051
        %v3053 = vrot.slane %v3039, 2
        %v3054 = vrot.slane %v3041, 2
        %v3055 = vsel %vm2698, %v3053, %v3054
        %v3056 = vrot.slane %v3042, 2
        %v3057 = vsel %vm2698, %v3051, %v3056
        %v3058 = vrot.slane %v3043, 2
        %v3059 = vsel %vm2698, %v3054, %v3058
        %3060 = vrot.lane.b32.xlu0 %v3052, 126
        %v3061 = vpop.permute.xlu0 %3060
        %3062 = vrot.lane.b32.xlu0 %v3055, 126
        %v3063 = vpop.permute.xlu0 %3062
        %3064 = vrot.lane.b32.xlu0 %v3057, 126
        %v3065 = vpop.permute.xlu0 %3064
        %3066 = vrot.lane.b32.xlu0 %v3059, 126
        %v3067 = vpop.permute.xlu0 %3066
        %v3068 = vsel %vm250, %v3061, %v3063
        %v3069 = vsel %vm250, %v3065, %v3067
        %v3072 = vadd.f32 %v3033, %v3068
        %v3073 = vadd.f32 %v3034, %v3069
        %v3074 = vld [vmem:[%s425] sm:$0xfc]
        %v3075 = vld [vmem:[%s425 + $0x8] sm:$0xfc]
        %v3076 = vld [vmem:[%s425 + $0x20] sm:$0x3]
        %v3077 = vld [vmem:[%s425 + $0x28] sm:$0x3]
        %s3078 = sadd.s32 %s200, 15
        %s3079 = sld [smem:[#allocation2 + %s3078]]
        %v3080 = vstv %s3079
        %v3081 = vmul.f32 %v3080, %v3074
        %v3082 = vmul.f32 %v3080, %v1517
        %v3083 = vmul.f32 %v3080, %v3076
        %v3087 = vrot.slane %v3081, 2
        %v3088 = vrot.slane %v3082, 2
        %v3089 = vsel %vm2698, %v3087, %v3088
        %v3090 = vrot.slane %v3083, 2
        %v3091 = vsel %vm2698, %v3088, %v3090
        %v3094 = vadd.f32 %v2784, %v3089
        %v3095 = vadd.f32 %v2785, %v3091
        %s3096 = sadd.s32 %s200, 16
        %s3097 = sld [smem:[#allocation2 + %s3096]]
        %v3098 = vstv %s3097
        %v3099 = vmul.f32 %v3098, %v3074
        %v3100 = vmul.f32 %v3098, %v3075
        %v3101 = vmul.f32 %v3098, %v1517
        %v3102 = vmul.f32 %v3098, %v1518
        %v3103 = vmul.f32 %v3098, %v3076
        %v3104 = vmul.f32 %v3098, %v3077
        %v3111 = vrot.slane %v3099, 2
        %v3112 = vrot.slane %v3101, 2
        %v3113 = vsel %vm2698, %v3111, %v3112
        %v3114 = vrot.slane %v3100, 2
        %v3115 = vrot.slane %v3102, 2
        %v3116 = vsel %vm2698, %v3114, %v3115
        %v3117 = vrot.slane %v3103, 2
        %v3118 = vsel %vm2698, %v3112, %v3117
        %v3119 = vrot.slane %v3104, 2
        %v3120 = vsel %vm2698, %v3115, %v3119
        %3121 = vrot.lane.b32.xlu0 %v3113, 127
        %v3122 = vpop.permute.xlu0 %3121
        %3123 = vrot.lane.b32.xlu0 %v3116, 127
        %v3124 = vpop.permute.xlu0 %3123
        %3125 = vrot.lane.b32.xlu0 %v3118, 127
        %v3126 = vpop.permute.xlu0 %3125
        %3127 = vrot.lane.b32.xlu0 %v3120, 127
        %v3128 = vpop.permute.xlu0 %3127
        %v3129 = vsel %vm224, %v3122, %v3124
        %v3130 = vsel %vm224, %v3126, %v3128
        %v3133 = vadd.f32 %v3094, %v3129
        %v3134 = vadd.f32 %v3095, %v3130
        %s3135 = sadd.s32 %s200, 17
        %s3136 = sld [smem:[#allocation2 + %s3135]]
        %v3137 = vstv %s3136
        %v3138 = vmul.f32 %v3137, %v3074
        %v3139 = vmul.f32 %v3137, %v3075
        %v3140 = vmul.f32 %v3137, %v1517
        %v3141 = vmul.f32 %v3137, %v1518
        %v3142 = vmul.f32 %v3137, %v3076
        %v3143 = vmul.f32 %v3137, %v3077
        %v3150 = vrot.slane %v3138, 2
        %v3151 = vrot.slane %v3140, 2
        %v3152 = vsel %vm2698, %v3150, %v3151
        %v3153 = vrot.slane %v3139, 2
        %v3154 = vrot.slane %v3141, 2
        %v3155 = vsel %vm2698, %v3153, %v3154
        %v3156 = vrot.slane %v3142, 2
        %v3157 = vsel %vm2698, %v3151, %v3156
        %v3158 = vrot.slane %v3143, 2
        %v3159 = vsel %vm2698, %v3154, %v3158
        %3160 = vrot.lane.b32.xlu0 %v3152, 126
        %v3161 = vpop.permute.xlu0 %3160
        %3162 = vrot.lane.b32.xlu0 %v3155, 126
        %v3163 = vpop.permute.xlu0 %3162
        %3164 = vrot.lane.b32.xlu0 %v3157, 126
        %v3165 = vpop.permute.xlu0 %3164
        %3166 = vrot.lane.b32.xlu0 %v3159, 126
        %v3167 = vpop.permute.xlu0 %3166
        %v3168 = vsel %vm250, %v3161, %v3163
        %v3169 = vsel %vm250, %v3165, %v3167
        %v3172 = vadd.f32 %v3133, %v3168
        %v3173 = vadd.f32 %v3134, %v3169
        %s3174 = sadd.s32 %s258, 15
        %s3175 = sld [smem:[#allocation2 + %s3174]]
        %v3176 = vstv %s3175
        %v3177 = vmul.f32 %v3176, %v3074
        %v3178 = vmul.f32 %v3176, %v1517
        %v3179 = vmul.f32 %v3176, %v3076
        %v3183 = vrot.slane %v3177, 2
        %v3184 = vrot.slane %v3178, 2
        %v3185 = vsel %vm2698, %v3183, %v3184
        %v3186 = vrot.slane %v3179, 2
        %v3187 = vsel %vm2698, %v3184, %v3186
        %v3190 = vadd.f32 %v2880, %v3185
        %v3191 = vadd.f32 %v2881, %v3187
        %s3192 = sadd.s32 %s258, 16
        %s3193 = sld [smem:[#allocation2 + %s3192]]
        %v3194 = vstv %s3193
        %v3195 = vmul.f32 %v3194, %v3074
        %v3196 = vmul.f32 %v3194, %v3075
        %v3197 = vmul.f32 %v3194, %v1517
        %v3198 = vmul.f32 %v3194, %v1518
        %v3199 = vmul.f32 %v3194, %v3076
        %v3200 = vmul.f32 %v3194, %v3077
        %v3207 = vrot.slane %v3195, 2
        %v3208 = vrot.slane %v3197, 2
        %v3209 = vsel %vm2698, %v3207, %v3208
        %v3210 = vrot.slane %v3196, 2
        %v3211 = vrot.slane %v3198, 2
        %v3212 = vsel %vm2698, %v3210, %v3211
        %v3213 = vrot.slane %v3199, 2
        %v3214 = vsel %vm2698, %v3208, %v3213
        %v3215 = vrot.slane %v3200, 2
        %v3216 = vsel %vm2698, %v3211, %v3215
        %3217 = vrot.lane.b32.xlu0 %v3209, 127
        %v3218 = vpop.permute.xlu0 %3217
        %3219 = vrot.lane.b32.xlu0 %v3212, 127
        %v3220 = vpop.permute.xlu0 %3219
        %3221 = vrot.lane.b32.xlu0 %v3214, 127
        %v3222 = vpop.permute.xlu0 %3221
        %3223 = vrot.lane.b32.xlu0 %v3216, 127
        %v3224 = vpop.permute.xlu0 %3223
        %v3225 = vsel %vm224, %v3218, %v3220
        %v3226 = vsel %vm224, %v3222, %v3224
        %v3229 = vadd.f32 %v3190, %v3225
        %v3230 = vadd.f32 %v3191, %v3226
        %s3231 = sadd.s32 %s258, 17
        %s3232 = sld [smem:[#allocation2 + %s3231]]
        %v3233 = vstv %s3232
        %v3234 = vmul.f32 %v3233, %v3074
        %v3235 = vmul.f32 %v3233, %v3075
        %v3236 = vmul.f32 %v3233, %v1517
        %v3237 = vmul.f32 %v3233, %v1518
        %v3238 = vmul.f32 %v3233, %v3076
        %v3239 = vmul.f32 %v3233, %v3077
        %v3246 = vrot.slane %v3234, 2
        %v3247 = vrot.slane %v3236, 2
        %v3248 = vsel %vm2698, %v3246, %v3247
        %v3249 = vrot.slane %v3235, 2
        %v3250 = vrot.slane %v3237, 2
        %v3251 = vsel %vm2698, %v3249, %v3250
        %v3252 = vrot.slane %v3238, 2
        %v3253 = vsel %vm2698, %v3247, %v3252
        %v3254 = vrot.slane %v3239, 2
        %v3255 = vsel %vm2698, %v3250, %v3254
        %3256 = vrot.lane.b32.xlu0 %v3248, 126
        %v3257 = vpop.permute.xlu0 %3256
        %3258 = vrot.lane.b32.xlu0 %v3251, 126
        %v3259 = vpop.permute.xlu0 %3258
        %3260 = vrot.lane.b32.xlu0 %v3253, 126
        %v3261 = vpop.permute.xlu0 %3260
        %3262 = vrot.lane.b32.xlu0 %v3255, 126
        %v3263 = vpop.permute.xlu0 %3262
        %v3264 = vsel %vm250, %v3257, %v3259
        %v3265 = vsel %vm250, %v3261, %v3263
        %v3268 = vadd.f32 %v3229, %v3264
        %v3269 = vadd.f32 %v3230, %v3265
        %s3270 = sadd.s32 %s314, 15
        %s3271 = sld [smem:[#allocation2 + %s3270]]
        %v3272 = vstv %s3271
        %v3273 = vmul.f32 %v3272, %v3074
        %v3274 = vmul.f32 %v3272, %v1517
        %v3275 = vmul.f32 %v3272, %v3076
        %v3279 = vrot.slane %v3273, 2
        %v3280 = vrot.slane %v3274, 2
        %v3281 = vsel %vm2698, %v3279, %v3280
        %v3282 = vrot.slane %v3275, 2
        %v3283 = vsel %vm2698, %v3280, %v3282
        %v3286 = vadd.f32 %v2976, %v3281
        %v3287 = vadd.f32 %v2977, %v3283
        %s3288 = sadd.s32 %s314, 16
        %s3289 = sld [smem:[#allocation2 + %s3288]]
        %v3290 = vstv %s3289
        %v3291 = vmul.f32 %v3290, %v3074
        %v3292 = vmul.f32 %v3290, %v3075
        %v3293 = vmul.f32 %v3290, %v1517
        %v3294 = vmul.f32 %v3290, %v1518
        %v3295 = vmul.f32 %v3290, %v3076
        %v3296 = vmul.f32 %v3290, %v3077
        %v3303 = vrot.slane %v3291, 2
        %v3304 = vrot.slane %v3293, 2
        %v3305 = vsel %vm2698, %v3303, %v3304
        %v3306 = vrot.slane %v3292, 2
        %v3307 = vrot.slane %v3294, 2
        %v3308 = vsel %vm2698, %v3306, %v3307
        %v3309 = vrot.slane %v3295, 2
        %v3310 = vsel %vm2698, %v3304, %v3309
        %v3311 = vrot.slane %v3296, 2
        %v3312 = vsel %vm2698, %v3307, %v3311
        %3313 = vrot.lane.b32.xlu0 %v3305, 127
        %v3314 = vpop.permute.xlu0 %3313
        %3315 = vrot.lane.b32.xlu0 %v3308, 127
        %v3316 = vpop.permute.xlu0 %3315
        %3317 = vrot.lane.b32.xlu0 %v3310, 127
        %v3318 = vpop.permute.xlu0 %3317
        %3319 = vrot.lane.b32.xlu0 %v3312, 127
        %v3320 = vpop.permute.xlu0 %3319
        %v3321 = vsel %vm224, %v3314, %v3316
        %v3322 = vsel %vm224, %v3318, %v3320
        %v3325 = vadd.f32 %v3286, %v3321
        %v3326 = vadd.f32 %v3287, %v3322
        %s3327 = sadd.s32 %s314, 17
        %s3328 = sld [smem:[#allocation2 + %s3327]]
        %v3329 = vstv %s3328
        %v3330 = vmul.f32 %v3329, %v3074
        %v3331 = vmul.f32 %v3329, %v3075
        %v3332 = vmul.f32 %v3329, %v1517
        %v3333 = vmul.f32 %v3329, %v1518
        %v3334 = vmul.f32 %v3329, %v3076
        %v3335 = vmul.f32 %v3329, %v3077
        %v3342 = vrot.slane %v3330, 2
        %v3343 = vrot.slane %v3332, 2
        %v3344 = vsel %vm2698, %v3342, %v3343
        %v3345 = vrot.slane %v3331, 2
        %v3346 = vrot.slane %v3333, 2
        %v3347 = vsel %vm2698, %v3345, %v3346
        %v3348 = vrot.slane %v3334, 2
        %v3349 = vsel %vm2698, %v3343, %v3348
        %v3350 = vrot.slane %v3335, 2
        %v3351 = vsel %vm2698, %v3346, %v3350
        %3352 = vrot.lane.b32.xlu0 %v3344, 126
        %v3353 = vpop.permute.xlu0 %3352
        %3354 = vrot.lane.b32.xlu0 %v3347, 126
        %v3355 = vpop.permute.xlu0 %3354
        %3356 = vrot.lane.b32.xlu0 %v3349, 126
        %v3357 = vpop.permute.xlu0 %3356
        %3358 = vrot.lane.b32.xlu0 %v3351, 126
        %v3359 = vpop.permute.xlu0 %3358
        %v3360 = vsel %vm250, %v3353, %v3355
        %v3361 = vsel %vm250, %v3357, %v3359
        %v3364 = vadd.f32 %v3325, %v3360
        %v3365 = vadd.f32 %v3326, %v3361
        %s3366 = sadd.s32 %s370, 15
        %s3367 = sld [smem:[#allocation2 + %s3366]]
        %v3368 = vstv %s3367
        %v3369 = vmul.f32 %v3368, %v3074
        %v3370 = vmul.f32 %v3368, %v1517
        %v3371 = vmul.f32 %v3368, %v3076
        %v3375 = vrot.slane %v3369, 2
        %v3376 = vrot.slane %v3370, 2
        %v3377 = vsel %vm2698, %v3375, %v3376
        %v3378 = vrot.slane %v3371, 2
        %v3379 = vsel %vm2698, %v3376, %v3378
        %v3382 = vadd.f32 %v3072, %v3377
        %v3383 = vadd.f32 %v3073, %v3379
        %s3384 = sadd.s32 %s370, 16
        %s3385 = sld [smem:[#allocation2 + %s3384]]
        %v3386 = vstv %s3385
        %v3387 = vmul.f32 %v3386, %v3074
        %v3388 = vmul.f32 %v3386, %v3075
        %v3389 = vmul.f32 %v3386, %v1517
        %v3390 = vmul.f32 %v3386, %v1518
        %v3391 = vmul.f32 %v3386, %v3076
        %v3392 = vmul.f32 %v3386, %v3077
        %v3399 = vrot.slane %v3387, 2
        %v3400 = vrot.slane %v3389, 2
        %v3401 = vsel %vm2698, %v3399, %v3400
        %v3402 = vrot.slane %v3388, 2
        %v3403 = vrot.slane %v3390, 2
        %v3404 = vsel %vm2698, %v3402, %v3403
        %v3405 = vrot.slane %v3391, 2
        %v3406 = vsel %vm2698, %v3400, %v3405
        %v3407 = vrot.slane %v3392, 2
        %v3408 = vsel %vm2698, %v3403, %v3407
        %3409 = vrot.lane.b32.xlu0 %v3401, 127
        %v3410 = vpop.permute.xlu0 %3409
        %3411 = vrot.lane.b32.xlu0 %v3404, 127
        %v3412 = vpop.permute.xlu0 %3411
        %3413 = vrot.lane.b32.xlu0 %v3406, 127
        %v3414 = vpop.permute.xlu0 %3413
        %3415 = vrot.lane.b32.xlu0 %v3408, 127
        %v3416 = vpop.permute.xlu0 %3415
        %v3417 = vsel %vm224, %v3410, %v3412
        %v3418 = vsel %vm224, %v3414, %v3416
        %v3421 = vadd.f32 %v3382, %v3417
        %v3422 = vadd.f32 %v3383, %v3418
        %s3423 = sadd.s32 %s370, 17
        %s3424 = sld [smem:[#allocation2 + %s3423]]
        %v3425 = vstv %s3424
        %v3426 = vmul.f32 %v3425, %v3074
        %v3427 = vmul.f32 %v3425, %v3075
        %v3428 = vmul.f32 %v3425, %v1517
        %v3429 = vmul.f32 %v3425, %v1518
        %v3430 = vmul.f32 %v3425, %v3076
        %v3431 = vmul.f32 %v3425, %v3077
        %v3438 = vrot.slane %v3426, 2
        %v3439 = vrot.slane %v3428, 2
        %v3440 = vsel %vm2698, %v3438, %v3439
        %v3441 = vrot.slane %v3427, 2
        %v3442 = vrot.slane %v3429, 2
        %v3443 = vsel %vm2698, %v3441, %v3442
        %v3444 = vrot.slane %v3430, 2
        %v3445 = vsel %vm2698, %v3439, %v3444
        %v3446 = vrot.slane %v3431, 2
        %v3447 = vsel %vm2698, %v3442, %v3446
        %3448 = vrot.lane.b32.xlu0 %v3440, 126
        %v3449 = vpop.permute.xlu0 %3448
        %3450 = vrot.lane.b32.xlu0 %v3443, 126
        %v3451 = vpop.permute.xlu0 %3450
        %3452 = vrot.lane.b32.xlu0 %v3445, 126
        %v3453 = vpop.permute.xlu0 %3452
        %3454 = vrot.lane.b32.xlu0 %v3447, 126
        %v3455 = vpop.permute.xlu0 %3454
        %v3456 = vsel %vm250, %v3449, %v3451
        %v3457 = vsel %vm250, %v3453, %v3455
        %v3460 = vadd.f32 %v3421, %v3456
        %v3461 = vadd.f32 %v3422, %v3457
        %v3462 = vld [vmem:[%s658] sm:$0xfc]
        %v3463 = vld [vmem:[%s658 + $0x8] sm:$0xfc]
        %v3464 = vld [vmem:[%s658 + $0x20] sm:$0x3]
        %v3465 = vld [vmem:[%s658 + $0x28] sm:$0x3]
        %s3466 = sadd.s32 %s200, 24
        %s3467 = sld [smem:[#allocation2 + %s3466]]
        %v3468 = vstv %s3467
        %v3469 = vmul.f32 %v3468, %v3462
        %v3470 = vmul.f32 %v3468, %v1907
        %v3471 = vmul.f32 %v3468, %v3464
        %v3475 = vrot.slane %v3469, 2
        %v3476 = vrot.slane %v3470, 2
        %v3477 = vsel %vm2698, %v3475, %v3476
        %v3478 = vrot.slane %v3471, 2
        %v3479 = vsel %vm2698, %v3476, %v3478
        %v3482 = vadd.f32 %v3172, %v3477
        %v3483 = vadd.f32 %v3173, %v3479
        %s3484 = sadd.s32 %s200, 25
        %s3485 = sld [smem:[#allocation2 + %s3484]]
        %v3486 = vstv %s3485
        %v3487 = vmul.f32 %v3486, %v3462
        %v3488 = vmul.f32 %v3486, %v3463
        %v3489 = vmul.f32 %v3486, %v1907
        %v3490 = vmul.f32 %v3486, %v1908
        %v3491 = vmul.f32 %v3486, %v3464
        %v3492 = vmul.f32 %v3486, %v3465
        %v3499 = vrot.slane %v3487, 2
        %v3500 = vrot.slane %v3489, 2
        %v3501 = vsel %vm2698, %v3499, %v3500
        %v3502 = vrot.slane %v3488, 2
        %v3503 = vrot.slane %v3490, 2
        %v3504 = vsel %vm2698, %v3502, %v3503
        %v3505 = vrot.slane %v3491, 2
        %v3506 = vsel %vm2698, %v3500, %v3505
        %v3507 = vrot.slane %v3492, 2
        %v3508 = vsel %vm2698, %v3503, %v3507
        %3509 = vrot.lane.b32.xlu0 %v3501, 127
        %v3510 = vpop.permute.xlu0 %3509
        %3511 = vrot.lane.b32.xlu0 %v3504, 127
        %v3512 = vpop.permute.xlu0 %3511
        %3513 = vrot.lane.b32.xlu0 %v3506, 127
        %v3514 = vpop.permute.xlu0 %3513
        %3515 = vrot.lane.b32.xlu0 %v3508, 127
        %v3516 = vpop.permute.xlu0 %3515
        %v3517 = vsel %vm224, %v3510, %v3512
        %v3518 = vsel %vm224, %v3514, %v3516
        %v3521 = vadd.f32 %v3482, %v3517
        %v3522 = vadd.f32 %v3483, %v3518
        %s3523 = sadd.s32 %s200, 26
        %s3524 = sld [smem:[#allocation2 + %s3523]]
        %v3525 = vstv %s3524
        %v3526 = vmul.f32 %v3525, %v3462
        %v3527 = vmul.f32 %v3525, %v3463
        %v3528 = vmul.f32 %v3525, %v1907
        %v3529 = vmul.f32 %v3525, %v1908
        %v3530 = vmul.f32 %v3525, %v3464
        %v3531 = vmul.f32 %v3525, %v3465
        %v3538 = vrot.slane %v3526, 2
        %v3539 = vrot.slane %v3528, 2
        %v3540 = vsel %vm2698, %v3538, %v3539
        %v3541 = vrot.slane %v3527, 2
        %v3542 = vrot.slane %v3529, 2
        %v3543 = vsel %vm2698, %v3541, %v3542
        %v3544 = vrot.slane %v3530, 2
        %v3545 = vsel %vm2698, %v3539, %v3544
        %v3546 = vrot.slane %v3531, 2
        %v3547 = vsel %vm2698, %v3542, %v3546
        %3548 = vrot.lane.b32.xlu0 %v3540, 126
        %v3549 = vpop.permute.xlu0 %3548
        %3550 = vrot.lane.b32.xlu0 %v3543, 126
        %v3551 = vpop.permute.xlu0 %3550
        %3552 = vrot.lane.b32.xlu0 %v3545, 126
        %v3553 = vpop.permute.xlu0 %3552
        %3554 = vrot.lane.b32.xlu0 %v3547, 126
        %v3555 = vpop.permute.xlu0 %3554
        %v3556 = vsel %vm250, %v3549, %v3551
        %v3557 = vsel %vm250, %v3553, %v3555
        %v3560 = vadd.f32 %v3521, %v3556
        %v3561 = vadd.f32 %v3522, %v3557
        %s3562 = sadd.s32 %s258, 24
        %s3563 = sld [smem:[#allocation2 + %s3562]]
        %v3564 = vstv %s3563
        %v3565 = vmul.f32 %v3564, %v3462
        %v3566 = vmul.f32 %v3564, %v1907
        %v3567 = vmul.f32 %v3564, %v3464
        %v3571 = vrot.slane %v3565, 2
        %v3572 = vrot.slane %v3566, 2
        %v3573 = vsel %vm2698, %v3571, %v3572
        %v3574 = vrot.slane %v3567, 2
        %v3575 = vsel %vm2698, %v3572, %v3574
        %v3578 = vadd.f32 %v3268, %v3573
        %v3579 = vadd.f32 %v3269, %v3575
        %s3580 = sadd.s32 %s258, 25
        %s3581 = sld [smem:[#allocation2 + %s3580]]
        %v3582 = vstv %s3581
        %v3583 = vmul.f32 %v3582, %v3462
        %v3584 = vmul.f32 %v3582, %v3463
        %v3585 = vmul.f32 %v3582, %v1907
        %v3586 = vmul.f32 %v3582, %v1908
        %v3587 = vmul.f32 %v3582, %v3464
        %v3588 = vmul.f32 %v3582, %v3465
        %v3595 = vrot.slane %v3583, 2
        %v3596 = vrot.slane %v3585, 2
        %v3597 = vsel %vm2698, %v3595, %v3596
        %v3598 = vrot.slane %v3584, 2
        %v3599 = vrot.slane %v3586, 2
        %v3600 = vsel %vm2698, %v3598, %v3599
        %v3601 = vrot.slane %v3587, 2
        %v3602 = vsel %vm2698, %v3596, %v3601
        %v3603 = vrot.slane %v3588, 2
        %v3604 = vsel %vm2698, %v3599, %v3603
        %3605 = vrot.lane.b32.xlu0 %v3597, 127
        %v3606 = vpop.permute.xlu0 %3605
        %3607 = vrot.lane.b32.xlu0 %v3600, 127
        %v3608 = vpop.permute.xlu0 %3607
        %3609 = vrot.lane.b32.xlu0 %v3602, 127
        %v3610 = vpop.permute.xlu0 %3609
        %3611 = vrot.lane.b32.xlu0 %v3604, 127
        %v3612 = vpop.permute.xlu0 %3611
        %v3613 = vsel %vm224, %v3606, %v3608
        %v3614 = vsel %vm224, %v3610, %v3612
        %v3617 = vadd.f32 %v3578, %v3613
        %v3618 = vadd.f32 %v3579, %v3614
        %s3619 = sadd.s32 %s258, 26
        %s3620 = sld [smem:[#allocation2 + %s3619]]
        %v3621 = vstv %s3620
        %v3622 = vmul.f32 %v3621, %v3462
        %v3623 = vmul.f32 %v3621, %v3463
        %v3624 = vmul.f32 %v3621, %v1907
        %v3625 = vmul.f32 %v3621, %v1908
        %v3626 = vmul.f32 %v3621, %v3464
        %v3627 = vmul.f32 %v3621, %v3465
        %v3634 = vrot.slane %v3622, 2
        %v3635 = vrot.slane %v3624, 2
        %v3636 = vsel %vm2698, %v3634, %v3635
        %v3637 = vrot.slane %v3623, 2
        %v3638 = vrot.slane %v3625, 2
        %v3639 = vsel %vm2698, %v3637, %v3638
        %v3640 = vrot.slane %v3626, 2
        %v3641 = vsel %vm2698, %v3635, %v3640
        %v3642 = vrot.slane %v3627, 2
        %v3643 = vsel %vm2698, %v3638, %v3642
        %3644 = vrot.lane.b32.xlu0 %v3636, 126
        %v3645 = vpop.permute.xlu0 %3644
        %3646 = vrot.lane.b32.xlu0 %v3639, 126
        %v3647 = vpop.permute.xlu0 %3646
        %3648 = vrot.lane.b32.xlu0 %v3641, 126
        %v3649 = vpop.permute.xlu0 %3648
        %3650 = vrot.lane.b32.xlu0 %v3643, 126
        %v3651 = vpop.permute.xlu0 %3650
        %v3652 = vsel %vm250, %v3645, %v3647
        %v3653 = vsel %vm250, %v3649, %v3651
        %v3656 = vadd.f32 %v3617, %v3652
        %v3657 = vadd.f32 %v3618, %v3653
        %s3658 = sadd.s32 %s314, 24
        %s3659 = sld [smem:[#allocation2 + %s3658]]
        %v3660 = vstv %s3659
        %v3661 = vmul.f32 %v3660, %v3462
        %v3662 = vmul.f32 %v3660, %v1907
        %v3663 = vmul.f32 %v3660, %v3464
        %v3667 = vrot.slane %v3661, 2
        %v3668 = vrot.slane %v3662, 2
        %v3669 = vsel %vm2698, %v3667, %v3668
        %v3670 = vrot.slane %v3663, 2
        %v3671 = vsel %vm2698, %v3668, %v3670
        %v3674 = vadd.f32 %v3364, %v3669
        %v3675 = vadd.f32 %v3365, %v3671
        %s3676 = sadd.s32 %s314, 25
        %s3677 = sld [smem:[#allocation2 + %s3676]]
        %v3678 = vstv %s3677
        %v3679 = vmul.f32 %v3678, %v3462
        %v3680 = vmul.f32 %v3678, %v3463
        %v3681 = vmul.f32 %v3678, %v1907
        %v3682 = vmul.f32 %v3678, %v1908
        %v3683 = vmul.f32 %v3678, %v3464
        %v3684 = vmul.f32 %v3678, %v3465
        %v3691 = vrot.slane %v3679, 2
        %v3692 = vrot.slane %v3681, 2
        %v3693 = vsel %vm2698, %v3691, %v3692
        %v3694 = vrot.slane %v3680, 2
        %v3695 = vrot.slane %v3682, 2
        %v3696 = vsel %vm2698, %v3694, %v3695
        %v3697 = vrot.slane %v3683, 2
        %v3698 = vsel %vm2698, %v3692, %v3697
        %v3699 = vrot.slane %v3684, 2
        %v3700 = vsel %vm2698, %v3695, %v3699
        %3701 = vrot.lane.b32.xlu0 %v3693, 127
        %v3702 = vpop.permute.xlu0 %3701
        %3703 = vrot.lane.b32.xlu0 %v3696, 127
        %v3704 = vpop.permute.xlu0 %3703
        %3705 = vrot.lane.b32.xlu0 %v3698, 127
        %v3706 = vpop.permute.xlu0 %3705
        %3707 = vrot.lane.b32.xlu0 %v3700, 127
        %v3708 = vpop.permute.xlu0 %3707
        %v3709 = vsel %vm224, %v3702, %v3704
        %v3710 = vsel %vm224, %v3706, %v3708
        %v3713 = vadd.f32 %v3674, %v3709
        %v3714 = vadd.f32 %v3675, %v3710
        %s3715 = sadd.s32 %s314, 26
        %s3716 = sld [smem:[#allocation2 + %s3715]]
        %v3717 = vstv %s3716
        %v3718 = vmul.f32 %v3717, %v3462
        %v3719 = vmul.f32 %v3717, %v3463
        %v3720 = vmul.f32 %v3717, %v1907
        %v3721 = vmul.f32 %v3717, %v1908
        %v3722 = vmul.f32 %v3717, %v3464
        %v3723 = vmul.f32 %v3717, %v3465
        %v3730 = vrot.slane %v3718, 2
        %v3731 = vrot.slane %v3720, 2
        %v3732 = vsel %vm2698, %v3730, %v3731
        %v3733 = vrot.slane %v3719, 2
        %v3734 = vrot.slane %v3721, 2
        %v3735 = vsel %vm2698, %v3733, %v3734
        %v3736 = vrot.slane %v3722, 2
        %v3737 = vsel %vm2698, %v3731, %v3736
        %v3738 = vrot.slane %v3723, 2
        %v3739 = vsel %vm2698, %v3734, %v3738
        %3740 = vrot.lane.b32.xlu0 %v3732, 126
        %v3741 = vpop.permute.xlu0 %3740
        %3742 = vrot.lane.b32.xlu0 %v3735, 126
        %v3743 = vpop.permute.xlu0 %3742
        %3744 = vrot.lane.b32.xlu0 %v3737, 126
        %v3745 = vpop.permute.xlu0 %3744
        %3746 = vrot.lane.b32.xlu0 %v3739, 126
        %v3747 = vpop.permute.xlu0 %3746
        %v3748 = vsel %vm250, %v3741, %v3743
        %v3749 = vsel %vm250, %v3745, %v3747
        %v3752 = vadd.f32 %v3713, %v3748
        %v3753 = vadd.f32 %v3714, %v3749
        %s3754 = sadd.s32 %s370, 24
        %s3755 = sld [smem:[#allocation2 + %s3754]]
        %v3756 = vstv %s3755
        %v3757 = vmul.f32 %v3756, %v3462
        %v3758 = vmul.f32 %v3756, %v1907
        %v3759 = vmul.f32 %v3756, %v3464
        %v3763 = vrot.slane %v3757, 2
        %v3764 = vrot.slane %v3758, 2
        %v3765 = vsel %vm2698, %v3763, %v3764
        %v3766 = vrot.slane %v3759, 2
        %v3767 = vsel %vm2698, %v3764, %v3766
        %v3770 = vadd.f32 %v3460, %v3765
        %v3771 = vadd.f32 %v3461, %v3767
        %s3772 = sadd.s32 %s370, 25
        %s3773 = sld [smem:[#allocation2 + %s3772]]
        %v3774 = vstv %s3773
        %v3775 = vmul.f32 %v3774, %v3462
        %v3776 = vmul.f32 %v3774, %v3463
        %v3777 = vmul.f32 %v3774, %v1907
        %v3778 = vmul.f32 %v3774, %v1908
        %v3779 = vmul.f32 %v3774, %v3464
        %v3780 = vmul.f32 %v3774, %v3465
        %v3787 = vrot.slane %v3775, 2
        %v3788 = vrot.slane %v3777, 2
        %v3789 = vsel %vm2698, %v3787, %v3788
        %v3790 = vrot.slane %v3776, 2
        %v3791 = vrot.slane %v3778, 2
        %v3792 = vsel %vm2698, %v3790, %v3791
        %v3793 = vrot.slane %v3779, 2
        %v3794 = vsel %vm2698, %v3788, %v3793
        %v3795 = vrot.slane %v3780, 2
        %v3796 = vsel %vm2698, %v3791, %v3795
        %3797 = vrot.lane.b32.xlu0 %v3789, 127
        %v3798 = vpop.permute.xlu0 %3797
        %3799 = vrot.lane.b32.xlu0 %v3792, 127
        %v3800 = vpop.permute.xlu0 %3799
        %3801 = vrot.lane.b32.xlu0 %v3794, 127
        %v3802 = vpop.permute.xlu0 %3801
        %3803 = vrot.lane.b32.xlu0 %v3796, 127
        %v3804 = vpop.permute.xlu0 %3803
        %v3805 = vsel %vm224, %v3798, %v3800
        %v3806 = vsel %vm224, %v3802, %v3804
        %v3809 = vadd.f32 %v3770, %v3805
        %v3810 = vadd.f32 %v3771, %v3806
        %s3811 = sadd.s32 %s370, 26
        %s3812 = sld [smem:[#allocation2 + %s3811]]
        %v3813 = vstv %s3812
        %v3814 = vmul.f32 %v3813, %v3462
        %v3815 = vmul.f32 %v3813, %v3463
        %v3816 = vmul.f32 %v3813, %v1907
        %v3817 = vmul.f32 %v3813, %v1908
        %v3818 = vmul.f32 %v3813, %v3464
        %v3819 = vmul.f32 %v3813, %v3465
        %v3826 = vrot.slane %v3814, 2
        %v3827 = vrot.slane %v3816, 2
        %v3828 = vsel %vm2698, %v3826, %v3827
        %v3829 = vrot.slane %v3815, 2
        %v3830 = vrot.slane %v3817, 2
        %v3831 = vsel %vm2698, %v3829, %v3830
        %v3832 = vrot.slane %v3818, 2
        %v3833 = vsel %vm2698, %v3827, %v3832
        %v3834 = vrot.slane %v3819, 2
        %v3835 = vsel %vm2698, %v3830, %v3834
        %3836 = vrot.lane.b32.xlu0 %v3828, 126
        %v3837 = vpop.permute.xlu0 %3836
        %3838 = vrot.lane.b32.xlu0 %v3831, 126
        %v3839 = vpop.permute.xlu0 %3838
        %3840 = vrot.lane.b32.xlu0 %v3833, 126
        %v3841 = vpop.permute.xlu0 %3840
        %3842 = vrot.lane.b32.xlu0 %v3835, 126
        %v3843 = vpop.permute.xlu0 %3842
        %v3844 = vsel %vm250, %v3837, %v3839
        %v3845 = vsel %vm250, %v3841, %v3843
        %v3848 = vadd.f32 %v3809, %v3844
        %v3849 = vadd.f32 %v3810, %v3845
        %v3850 = vld [vmem:[%s891] sm:$0xfc]
        %v3851 = vld [vmem:[%s891 + $0x8] sm:$0xfc]
        %v3852 = vld [vmem:[%s891 + $0x20] sm:$0x3]
        %v3853 = vld [vmem:[%s891 + $0x28] sm:$0x3]
        %s3854 = sadd.s32 %s200, 33
        %s3855 = sld [smem:[#allocation2 + %s3854]]
        %v3856 = vstv %s3855
        %v3857 = vmul.f32 %v3856, %v3850
        %v3858 = vmul.f32 %v3856, %v2297
        %v3859 = vmul.f32 %v3856, %v3852
        %v3863 = vrot.slane %v3857, 2
        %v3864 = vrot.slane %v3858, 2
        %v3865 = vsel %vm2698, %v3863, %v3864
        %v3866 = vrot.slane %v3859, 2
        %v3867 = vsel %vm2698, %v3864, %v3866
        %v3870 = vadd.f32 %v3560, %v3865
        %v3871 = vadd.f32 %v3561, %v3867
        %s3872 = sadd.s32 %s200, 34
        %s3873 = sld [smem:[#allocation2 + %s3872]]
        %v3874 = vstv %s3873
        %v3875 = vmul.f32 %v3874, %v3850
        %v3876 = vmul.f32 %v3874, %v3851
        %v3877 = vmul.f32 %v3874, %v2297
        %v3878 = vmul.f32 %v3874, %v2298
        %v3879 = vmul.f32 %v3874, %v3852
        %v3880 = vmul.f32 %v3874, %v3853
        %v3887 = vrot.slane %v3875, 2
        %v3888 = vrot.slane %v3877, 2
        %v3889 = vsel %vm2698, %v3887, %v3888
        %v3890 = vrot.slane %v3876, 2
        %v3891 = vrot.slane %v3878, 2
        %v3892 = vsel %vm2698, %v3890, %v3891
        %v3893 = vrot.slane %v3879, 2
        %v3894 = vsel %vm2698, %v3888, %v3893
        %v3895 = vrot.slane %v3880, 2
        %v3896 = vsel %vm2698, %v3891, %v3895
        %3897 = vrot.lane.b32.xlu0 %v3889, 127
        %v3898 = vpop.permute.xlu0 %3897
        %3899 = vrot.lane.b32.xlu0 %v3892, 127
        %v3900 = vpop.permute.xlu0 %3899
        %3901 = vrot.lane.b32.xlu0 %v3894, 127
        %v3902 = vpop.permute.xlu0 %3901
        %3903 = vrot.lane.b32.xlu0 %v3896, 127
        %v3904 = vpop.permute.xlu0 %3903
        %v3905 = vsel %vm224, %v3898, %v3900
        %v3906 = vsel %vm224, %v3902, %v3904
        %v3909 = vadd.f32 %v3870, %v3905
        %v3910 = vadd.f32 %v3871, %v3906
        %s3911 = sadd.s32 %s200, 35
        %s3912 = sld [smem:[#allocation2 + %s3911]]
        %v3913 = vstv %s3912
        %v3914 = vmul.f32 %v3913, %v3850
        %v3915 = vmul.f32 %v3913, %v3851
        %v3916 = vmul.f32 %v3913, %v2297
        %v3917 = vmul.f32 %v3913, %v2298
        %v3918 = vmul.f32 %v3913, %v3852
        %v3919 = vmul.f32 %v3913, %v3853
        %v3926 = vrot.slane %v3914, 2
        %v3927 = vrot.slane %v3916, 2
        %v3928 = vsel %vm2698, %v3926, %v3927
        %v3929 = vrot.slane %v3915, 2
        %v3930 = vrot.slane %v3917, 2
        %v3931 = vsel %vm2698, %v3929, %v3930
        %v3932 = vrot.slane %v3918, 2
        %v3933 = vsel %vm2698, %v3927, %v3932
        %v3934 = vrot.slane %v3919, 2
        %v3935 = vsel %vm2698, %v3930, %v3934
        %3936 = vrot.lane.b32.xlu0 %v3928, 126
        %v3937 = vpop.permute.xlu0 %3936
        %3938 = vrot.lane.b32.xlu0 %v3931, 126
        %v3939 = vpop.permute.xlu0 %3938
        %3940 = vrot.lane.b32.xlu0 %v3933, 126
        %v3941 = vpop.permute.xlu0 %3940
        %3942 = vrot.lane.b32.xlu0 %v3935, 126
        %v3943 = vpop.permute.xlu0 %3942
        %v3944 = vsel %vm250, %v3937, %v3939
        %v3945 = vsel %vm250, %v3941, %v3943
        %v3948 = vadd.f32 %v3909, %v3944
        %v3949 = vadd.f32 %v3910, %v3945
        %s3950 = sadd.s32 %s258, 33
        %s3951 = sld [smem:[#allocation2 + %s3950]]
        %v3952 = vstv %s3951
        %v3953 = vmul.f32 %v3952, %v3850
        %v3954 = vmul.f32 %v3952, %v2297
        %v3955 = vmul.f32 %v3952, %v3852
        %v3959 = vrot.slane %v3953, 2
        %v3960 = vrot.slane %v3954, 2
        %v3961 = vsel %vm2698, %v3959, %v3960
        %v3962 = vrot.slane %v3955, 2
        %v3963 = vsel %vm2698, %v3960, %v3962
        %v3966 = vadd.f32 %v3656, %v3961
        %v3967 = vadd.f32 %v3657, %v3963
        %s3968 = sadd.s32 %s258, 34
        %s3969 = sld [smem:[#allocation2 + %s3968]]
        %v3970 = vstv %s3969
        %v3971 = vmul.f32 %v3970, %v3850
        %v3972 = vmul.f32 %v3970, %v3851
        %v3973 = vmul.f32 %v3970, %v2297
        %v3974 = vmul.f32 %v3970, %v2298
        %v3975 = vmul.f32 %v3970, %v3852
        %v3976 = vmul.f32 %v3970, %v3853
        %v3983 = vrot.slane %v3971, 2
        %v3984 = vrot.slane %v3973, 2
        %v3985 = vsel %vm2698, %v3983, %v3984
        %v3986 = vrot.slane %v3972, 2
        %v3987 = vrot.slane %v3974, 2
        %v3988 = vsel %vm2698, %v3986, %v3987
        %v3989 = vrot.slane %v3975, 2
        %v3990 = vsel %vm2698, %v3984, %v3989
        %v3991 = vrot.slane %v3976, 2
        %v3992 = vsel %vm2698, %v3987, %v3991
        %3993 = vrot.lane.b32.xlu0 %v3985, 127
        %v3994 = vpop.permute.xlu0 %3993
        %3995 = vrot.lane.b32.xlu0 %v3988, 127
        %v3996 = vpop.permute.xlu0 %3995
        %3997 = vrot.lane.b32.xlu0 %v3990, 127
        %v3998 = vpop.permute.xlu0 %3997
        %3999 = vrot.lane.b32.xlu0 %v3992, 127
        %v4000 = vpop.permute.xlu0 %3999
        %v4001 = vsel %vm224, %v3994, %v3996
        %v4002 = vsel %vm224, %v3998, %v4000
        %v4005 = vadd.f32 %v3966, %v4001
        %v4006 = vadd.f32 %v3967, %v4002
        %s4007 = sadd.s32 %s258, 35
        %s4008 = sld [smem:[#allocation2 + %s4007]]
        %v4009 = vstv %s4008
        %v4010 = vmul.f32 %v4009, %v3850
        %v4011 = vmul.f32 %v4009, %v3851
        %v4012 = vmul.f32 %v4009, %v2297
        %v4013 = vmul.f32 %v4009, %v2298
        %v4014 = vmul.f32 %v4009, %v3852
        %v4015 = vmul.f32 %v4009, %v3853
        %v4022 = vrot.slane %v4010, 2
        %v4023 = vrot.slane %v4012, 2
        %v4024 = vsel %vm2698, %v4022, %v4023
        %v4025 = vrot.slane %v4011, 2
        %v4026 = vrot.slane %v4013, 2
        %v4027 = vsel %vm2698, %v4025, %v4026
        %v4028 = vrot.slane %v4014, 2
        %v4029 = vsel %vm2698, %v4023, %v4028
        %v4030 = vrot.slane %v4015, 2
        %v4031 = vsel %vm2698, %v4026, %v4030
        %4032 = vrot.lane.b32.xlu0 %v4024, 126
        %v4033 = vpop.permute.xlu0 %4032
        %4034 = vrot.lane.b32.xlu0 %v4027, 126
        %v4035 = vpop.permute.xlu0 %4034
        %4036 = vrot.lane.b32.xlu0 %v4029, 126
        %v4037 = vpop.permute.xlu0 %4036
        %4038 = vrot.lane.b32.xlu0 %v4031, 126
        %v4039 = vpop.permute.xlu0 %4038
        %v4040 = vsel %vm250, %v4033, %v4035
        %v4041 = vsel %vm250, %v4037, %v4039
        %v4044 = vadd.f32 %v4005, %v4040
        %v4045 = vadd.f32 %v4006, %v4041
        %s4046 = sadd.s32 %s314, 33
        %s4047 = sld [smem:[#allocation2 + %s4046]]
        %v4048 = vstv %s4047
        %v4049 = vmul.f32 %v4048, %v3850
        %v4050 = vmul.f32 %v4048, %v2297
        %v4051 = vmul.f32 %v4048, %v3852
        %v4055 = vrot.slane %v4049, 2
        %v4056 = vrot.slane %v4050, 2
        %v4057 = vsel %vm2698, %v4055, %v4056
        %v4058 = vrot.slane %v4051, 2
        %v4059 = vsel %vm2698, %v4056, %v4058
        %v4062 = vadd.f32 %v3752, %v4057
        %v4063 = vadd.f32 %v3753, %v4059
        %s4064 = sadd.s32 %s314, 34
        %s4065 = sld [smem:[#allocation2 + %s4064]]
        %v4066 = vstv %s4065
        %v4067 = vmul.f32 %v4066, %v3850
        %v4068 = vmul.f32 %v4066, %v3851
        %v4069 = vmul.f32 %v4066, %v2297
        %v4070 = vmul.f32 %v4066, %v2298
        %v4071 = vmul.f32 %v4066, %v3852
        %v4072 = vmul.f32 %v4066, %v3853
        %v4079 = vrot.slane %v4067, 2
        %v4080 = vrot.slane %v4069, 2
        %v4081 = vsel %vm2698, %v4079, %v4080
        %v4082 = vrot.slane %v4068, 2
        %v4083 = vrot.slane %v4070, 2
        %v4084 = vsel %vm2698, %v4082, %v4083
        %v4085 = vrot.slane %v4071, 2
        %v4086 = vsel %vm2698, %v4080, %v4085
        %v4087 = vrot.slane %v4072, 2
        %v4088 = vsel %vm2698, %v4083, %v4087
        %4089 = vrot.lane.b32.xlu0 %v4081, 127
        %v4090 = vpop.permute.xlu0 %4089
        %4091 = vrot.lane.b32.xlu0 %v4084, 127
        %v4092 = vpop.permute.xlu0 %4091
        %4093 = vrot.lane.b32.xlu0 %v4086, 127
        %v4094 = vpop.permute.xlu0 %4093
        %4095 = vrot.lane.b32.xlu0 %v4088, 127
        %v4096 = vpop.permute.xlu0 %4095
        %v4097 = vsel %vm224, %v4090, %v4092
        %v4098 = vsel %vm224, %v4094, %v4096
        %v4101 = vadd.f32 %v4062, %v4097
        %v4102 = vadd.f32 %v4063, %v4098
        %s4103 = sadd.s32 %s314, 35
        %s4104 = sld [smem:[#allocation2 + %s4103]]
        %v4105 = vstv %s4104
        %v4106 = vmul.f32 %v4105, %v3850
        %v4107 = vmul.f32 %v4105, %v3851
        %v4108 = vmul.f32 %v4105, %v2297
        %v4109 = vmul.f32 %v4105, %v2298
        %v4110 = vmul.f32 %v4105, %v3852
        %v4111 = vmul.f32 %v4105, %v3853
        %v4118 = vrot.slane %v4106, 2
        %v4119 = vrot.slane %v4108, 2
        %v4120 = vsel %vm2698, %v4118, %v4119
        %v4121 = vrot.slane %v4107, 2
        %v4122 = vrot.slane %v4109, 2
        %v4123 = vsel %vm2698, %v4121, %v4122
        %v4124 = vrot.slane %v4110, 2
        %v4125 = vsel %vm2698, %v4119, %v4124
        %v4126 = vrot.slane %v4111, 2
        %v4127 = vsel %vm2698, %v4122, %v4126
        %4128 = vrot.lane.b32.xlu0 %v4120, 126
        %v4129 = vpop.permute.xlu0 %4128
        %4130 = vrot.lane.b32.xlu0 %v4123, 126
        %v4131 = vpop.permute.xlu0 %4130
        %4132 = vrot.lane.b32.xlu0 %v4125, 126
        %v4133 = vpop.permute.xlu0 %4132
        %4134 = vrot.lane.b32.xlu0 %v4127, 126
        %v4135 = vpop.permute.xlu0 %4134
        %v4136 = vsel %vm250, %v4129, %v4131
        %v4137 = vsel %vm250, %v4133, %v4135
        %v4140 = vadd.f32 %v4101, %v4136
        %v4141 = vadd.f32 %v4102, %v4137
        %s4142 = sadd.s32 %s370, 33
        %s4143 = sld [smem:[#allocation2 + %s4142]]
        %v4144 = vstv %s4143
        %v4145 = vmul.f32 %v4144, %v3850
        %v4146 = vmul.f32 %v4144, %v2297
        %v4147 = vmul.f32 %v4144, %v3852
        %v4151 = vrot.slane %v4145, 2
        %v4152 = vrot.slane %v4146, 2
        %v4153 = vsel %vm2698, %v4151, %v4152
        %v4154 = vrot.slane %v4147, 2
        %v4155 = vsel %vm2698, %v4152, %v4154
        %v4158 = vadd.f32 %v3848, %v4153
        %v4159 = vadd.f32 %v3849, %v4155
        %s4160 = sadd.s32 %s370, 34
        %s4161 = sld [smem:[#allocation2 + %s4160]]
        %v4162 = vstv %s4161
        %v4163 = vmul.f32 %v4162, %v3850
        %v4164 = vmul.f32 %v4162, %v3851
        %v4165 = vmul.f32 %v4162, %v2297
        %v4166 = vmul.f32 %v4162, %v2298
        %v4167 = vmul.f32 %v4162, %v3852
        %v4168 = vmul.f32 %v4162, %v3853
        %v4175 = vrot.slane %v4163, 2
        %v4176 = vrot.slane %v4165, 2
        %v4177 = vsel %vm2698, %v4175, %v4176
        %v4178 = vrot.slane %v4164, 2
        %v4179 = vrot.slane %v4166, 2
        %v4180 = vsel %vm2698, %v4178, %v4179
        %v4181 = vrot.slane %v4167, 2
        %v4182 = vsel %vm2698, %v4176, %v4181
        %v4183 = vrot.slane %v4168, 2
        %v4184 = vsel %vm2698, %v4179, %v4183
        %4185 = vrot.lane.b32.xlu0 %v4177, 127
        %v4186 = vpop.permute.xlu0 %4185
        %4187 = vrot.lane.b32.xlu0 %v4180, 127
        %v4188 = vpop.permute.xlu0 %4187
        %4189 = vrot.lane.b32.xlu0 %v4182, 127
        %v4190 = vpop.permute.xlu0 %4189
        %4191 = vrot.lane.b32.xlu0 %v4184, 127
        %v4192 = vpop.permute.xlu0 %4191
        %v4193 = vsel %vm224, %v4186, %v4188
        %v4194 = vsel %vm224, %v4190, %v4192
        %v4197 = vadd.f32 %v4158, %v4193
        %v4198 = vadd.f32 %v4159, %v4194
        %s4199 = sadd.s32 %s370, 35
        %s4200 = sld [smem:[#allocation2 + %s4199]]
        %v4201 = vstv %s4200
        %v4202 = vmul.f32 %v4201, %v3850
        %v4203 = vmul.f32 %v4201, %v3851
        %v4204 = vmul.f32 %v4201, %v2297
        %v4205 = vmul.f32 %v4201, %v2298
        %v4206 = vmul.f32 %v4201, %v3852
        %v4207 = vmul.f32 %v4201, %v3853
        %v4214 = vrot.slane %v4202, 2
        %v4215 = vrot.slane %v4204, 2
        %v4216 = vsel %vm2698, %v4214, %v4215
        %v4217 = vrot.slane %v4203, 2
        %v4218 = vrot.slane %v4205, 2
        %v4219 = vsel %vm2698, %v4217, %v4218
        %v4220 = vrot.slane %v4206, 2
        %v4221 = vsel %vm2698, %v4215, %v4220
        %v4222 = vrot.slane %v4207, 2
        %v4223 = vsel %vm2698, %v4218, %v4222
        %4224 = vrot.lane.b32.xlu0 %v4216, 126
        %v4225 = vpop.permute.xlu0 %4224
        %4226 = vrot.lane.b32.xlu0 %v4219, 126
        %v4227 = vpop.permute.xlu0 %4226
        %4228 = vrot.lane.b32.xlu0 %v4221, 126
        %v4229 = vpop.permute.xlu0 %4228
        %4230 = vrot.lane.b32.xlu0 %v4223, 126
        %v4231 = vpop.permute.xlu0 %4230
        %v4232 = vsel %vm250, %v4225, %v4227
        %v4233 = vsel %vm250, %v4229, %v4231
        %v4236 = vadd.f32 %v4197, %v4232
        %v4237 = vadd.f32 %v4198, %v4233
        %4238 = vst [vmem:[%s183] sm:$0xff] %v3948
        %4239 = vst [vmem:[%s183 + $0x8] sm:$0xff] %v3949
        %s4240 = scalar_lea.vmem %s183, 16 [#allocation5]
        %4241 = vst [vmem:[%s4240] sm:$0xff] %v4044
        %4242 = vst [vmem:[%s4240 + $0x8] sm:$0xff] %v4045
        %s4243 = scalar_lea.vmem %s183, 32 [#allocation5]
        %4244 = vst [vmem:[%s4243] sm:$0xff] %v4140
        %4245 = vst [vmem:[%s4243 + $0x8] sm:$0xff] %v4141
        %s4246 = scalar_lea.vmem %s183, 48 [#allocation5]
        %4247 = vst [vmem:[%s4246] sm:$0xff] %v4236
        %4248 = vst [vmem:[%s4246 + $0x8] sm:$0xff] %v4237
        %s4249 = sand.u32 %s97, 1
        %s4250 = scalar_lea.sflag [#allocation3], %s4249
        %s4251 = sand.u32 %s97, 1
        %s4252 = smul.addr %s4251, 64
        %s4253 = scalar_lea.vmem [#allocation5], %s4252
        // Predicated region
        $region33: #{tpu_custom_call.1} parent=27 // pred_check
          %p4254 = pneg %p107
        $region34: #{tpu_custom_call.1} parent=27 // pred_check_branch
          %4256 = sbr.rel (%p4254) target = $region36
        $region35: #{tpu_custom_call.1} parent=27 // pred_region
          %s4257 = smul.u32 4, %s24
          %s4258 = smul.u32 2, %s23
          %s4260 = ssub.s32 1024, 1024
          %4261 = vsyncadd %s4250, %s4260
          %s4262 = smul.addr %s4257, 2
          %s4263 = sadd.s32 %s4258, %s4262
          %s4264 = smul.addr %s22, 8
          %s4265 = sadd.s32 %s4263, %s4264
          %s4266 = smul.addr %s4265, 128
          %s4267 = scalar_lea.hbm %s2, %s4266
          %s4268 = sshll.u32 %s4253, 4
          %s4269 = int_to_ptr.vmem [resolvable:$true] %s4268
          %4274 = dma.vmem_to_hbm [thread:$0]  %s4269, 1024, %s4267, %s4250, 128, 128, 8
        $region36: #{tpu_custom_call.1} parent=27 // pred_fallthru
          _
      $region28: #{tpu_custom_call.1} parent=5 // pred_fallthru
        _
      %p4275 = scmp.le.s32.totalorder 2, %s12
      // Predicated region
      $region37: #{tpu_custom_call.1} parent=5 // pred_check
        %p4276 = pneg %p4275
      $region38: #{tpu_custom_call.1} parent=5 // pred_check_branch
        %4278 = sbr.rel (%p4276) target = $region40
      $region39: #{tpu_custom_call.1} parent=5 // pred_region
        %s4279 = ssub.s32 %s12, 2
        // Predicated region
        $region41: #{tpu_custom_call.1} parent=39 // pred_check
          %p4280 = pneg %p113
        $region42: #{tpu_custom_call.1} parent=39 // pred_check_branch
          %4282 = sbr.rel (%p4280) target = $region44
        $region43: #{tpu_custom_call.1} parent=39 // pred_region
          %s4283 = sand.u32 %s98, 1
          %s4284 = scalar_lea.sflag [#allocation3], %s4283
          %s4285 = sand.u32 %s98, 1
          %s4286 = smul.addr %s4285, 64
          %s4287 = scalar_lea.vmem [#allocation5], %s4286
          %4288 = dma.done %s4284, 1024
        $region44: #{tpu_custom_call.1} parent=39 // pred_fallthru
          _
      $region40: #{tpu_custom_call.1} parent=5 // pred_fallthru
        _
    $region6: #{tpu_custom_call.1} parent=1 // loop_footer
      %s16 = sadd.s32 1, %s12
    $region7: #{tpu_custom_call.1} parent=1 // loop_footer_branch
      %11 = sbr.rel target = $region3
    $region8: #{tpu_custom_call.1} parent=1 // loop_exit
      _
    %4289 = vsyncpa [#allocation3], 1
    %s4290 = scalar_lea.sflag [#allocation3], 1
    %4291 = vsyncpa %s4290, 1
    %4292 = vsyncpa [#allocation4], 1
    %s4293 = scalar_lea.sflag [#allocation4], 1
    %4294 = vsyncpa %s4293, 1

</llo_original>
